<compile_context>
chip_gen: v7x
topology: tpu7x:2x2x1
jax: 0.10.0
libtpu: 0.0.40
codegen_flags: <defaults>
</compile_context>

<pallas_src>
import functools

import numpy as np
import jax
import jax.numpy as jnp
from jax import lax
from jax.experimental import pallas as pl
from jax.experimental.pallas import tpu as pltpu

_PAD = 8  # sublane-aligned slack on both ends of the conv1 strip scratch


# ----------------------------------------------------------------------------
# Fused kernel
# ----------------------------------------------------------------------------

def _bottleneck_fused_kernel(x_blk_ref, x_hbm_ref,
                             w1_ref, b1_ref, w2c_ref, b2_ref, w3_ref, b3_ref,
                             o_ref,
                             halo_buf, t1_scr, sem):
    _, th, W, Cin = x_blk_ref.shape          # interior rows of this tile
    H = x_hbm_ref.shape[1]
    planes = w1_ref.shape[1]
    Cout = w3_ref.shape[1]
    RW = (th + 2) * W                        # rows of the halo'd conv1 strip
    MW = th * W                              # rows of the output tile

    n = pl.program_id(0)
    r = pl.program_id(1)
    num_r = pl.num_programs(1)

    # ---- kick off the two 1-row halo fetches.  Row indices are clamped at
    #      the image border; the clamped rows are replaced by zeros below, so
    #      the DMAs can be unconditional. ------------------------------------
    top_row = jnp.maximum(r * th - 1, 0)
    bot_row = jnp.minimum(r * th + th, H - 1)
    cp_top = pltpu.make_async_copy(
        x_hbm_ref.at[pl.ds(n, 1), pl.ds(top_row, 1), :, :],
        halo_buf.at[pl.ds(0, 1)], sem.at[0])
    cp_bot = pltpu.make_async_copy(
        x_hbm_ref.at[pl.ds(n, 1), pl.ds(bot_row, 1), :, :],
        halo_buf.at[pl.ds(1, 1)], sem.at[1])
    cp_top.start()
    cp_bot.start()

    # ---- everything that does not depend on the halo rows runs while the
    #      DMAs are in flight (conv1 interior, pad init, edge-mask setup). ----
    # conv1 (1x1) + bn1 + relu on the interior rows.
    x_in = x_blk_ref[...].reshape(MW, Cin)                            # bf16
    t1_mid = jnp.dot(x_in, w1_ref[...], preferred_element_type=jnp.float32)
    t1_scr[_PAD + W:_PAD + (th + 1) * W, :] = jnp.maximum(t1_mid + b1_ref[...], 0.0)

    # Zero the pad rows so the +-1 tap reads below never see stale VMEM
    # (they are select-masked, but keep them defined regardless).
    pad_zeros = jnp.zeros((_PAD, planes), jnp.float32)
    t1_scr[0:_PAD, :] = pad_zeros
    t1_scr[_PAD + RW:_PAD + RW + _PAD, :] = pad_zeros

    # Column index built from a narrow (RW, 1) iota (replaces the old
    # full-strip (RW, planes) iota + mod); one cheap lane-splat broadcast.
    col = lax.broadcasted_iota(jnp.int32, (RW, 1), 0) % W
    col_b = jnp.broadcast_to(col, (RW, planes))

    # ---- conv1 on the two halo rows; zero them at the true image border ----
    cp_top.wait()
    cp_bot.wait()
    xh = halo_buf[...].reshape(2 * W, Cin)
    t1_h = jnp.maximum(
        jnp.dot(xh, w1_ref[...], preferred_element_type=jnp.float32) + b1_ref[...],
        0.0)
    t1_scr[_PAD:_PAD + W, :] = jnp.where(r > 0, t1_h[0:W], 0.0)
    t1_scr[_PAD + (th + 1) * W:_PAD + RW, :] = jnp.where(
        r < num_r - 1, t1_h[W:2 * W], 0.0)

    # ---- conv2 (3x3, stride 1, pad 1) + bn2 + relu --------------------------
    # Column (kw) taps: the +-1-row reads stay in f32 (sublane-granular offsets
    # that bf16 packing cannot express without realignment); bf16 only at the
    # matmul operand boundary, after the shifted windows are built.
    center = t1_scr[_PAD:_PAD + RW, :]
    left = jnp.where(col_b == 0, 0.0, t1_scr[_PAD - 1:_PAD - 1 + RW, :])
    right = jnp.where(col_b == W - 1, 0.0, t1_scr[_PAD + 1:_PAD + 1 + RW, :])

    def to_mxu(v):
        return v.astype(jnp.bfloat16)

    parts = []
    if planes % 128 == 0:
        # K-concat path: one matmul per kh row with K = 3*planes (the lane
        # concat is 128-aligned here).  3 dots per tile instead of 9.
        taps = jnp.concatenate([left, center, right], axis=1)        # (RW, 3P)
        if W % 16 == 0:
            taps = to_mxu(taps)                  # slices below stay 16-aligned
            wins = [taps[kh * W:kh * W + MW, :] for kh in range(3)]
        else:
            wins = [to_mxu(taps[kh * W:kh * W + MW, :]) for kh in range(3)]
        for kh in range(3):
            parts.append(jnp.dot(wins[kh], w2c_ref[kh],
                                 preferred_element_type=jnp.float32))
    else:
        # Narrow stages: 9 dots, expressed as a plain sum of dot results
        # (no zeros init / interleaved accumulator chain).
        if W % 16 == 0:
            taps = [to_mxu(left), to_mxu(center), to_mxu(right)]

            def win(kw, kh):
                return taps[kw][kh * W:kh * W + MW, :]
        else:
            taps = [left, center, right]

            def win(kw, kh):
                return to_mxu(taps[kw][kh * W:kh * W + MW, :])

        for kh in range(3):
            w2_kh = w2c_ref[kh]                  # (3*planes, planes) bf16
            for kw in range(3):
                parts.append(jnp.dot(
                    win(kw, kh),
                    w2_kh[kw * planes:(kw + 1) * planes, :],
                    preferred_element_type=jnp.float32))

    y2 = functools.reduce(lambda a, b: a + b, parts)
    t2 = jnp.maximum(y2 + b2_ref[...], 0.0).astype(jnp.bfloat16)

    # ---- conv3 (1x1) + bn3 + (identity SE) + residual + relu ----------------
    # NOTE: the residual is the bf16-cast input (deliberate precision trade).
    y = jnp.dot(t2, w3_ref[...], preferred_element_type=jnp.float32)
    y = y + b3_ref[...] + x_in.astype(jnp.float32)
    o_ref[...] = jnp.maximum(y, 0.0).reshape(1, th, W, Cout).astype(o_ref.dtype)


# ----------------------------------------------------------------------------
# Wrapper
# ----------------------------------------------------------------------------

def _device_vmem_capacity_bytes():
    """Generation-aware VMEM capacity; conservative 64 MiB fallback (v7x-like)
    if the query API is unavailable on the deployed toolchain."""
    try:
        return int(pltpu.get_tpu_info().vmem_capacity_bytes)
    except Exception:
        return 64 * 1024 * 1024


def _pick_th(H, W, N, target_rows, min_steps=4):
    """Largest divisor of H with th*W <= target_rows, preferring tilings that
    leave at least `min_steps` grid steps (>= 2 per TensorCore)."""
    divisors = [d for d in range(1, H + 1) if H % d == 0 and d * W <= target_rows]
    if not divisors:
        return 1
    parallel_enough = [d for d in divisors if N * (H // d) >= min_steps]
    return max(parallel_enough) if parallel_enough else max(divisors)


def _fold_params(p):
    """Fold the BN scales into the conv weights, cast weights to bf16 (MXU),
    keep the per-channel biases in f32 for the epilogue.  conv2 weights are
    re-laid (9, P, P) -> (3, 3P, P) so the three kw taps of one kh row share a
    single K-concatenated operand."""
    planes = p["w1"].shape[1]
    w1 = (p["w1"] * p["s1"][0]).astype(jnp.bfloat16)
    w2c = (p["w2"] * p["s2"][0]).reshape(3, 3 * planes, planes).astype(jnp.bfloat16)
    w3 = (p["w3"] * p["s3"][0]).astype(jnp.bfloat16)
    return dict(w1=w1, b1=p["b1"], w2c=w2c, b2=p["b2"], w3=w3, b3=p["b3"])


def bottleneck_forward_nhwc(x, params, *, th=None):
    """x: (N, H, W, inplanes) NHWC.  Returns NHWC bf16.  Use this entry point
    inside a full network so no layout transposes are needed between blocks."""
    x = x.astype(jnp.bfloat16)
    N, H, W, Cin = x.shape
    planes = params["w1"].shape[1]
    Cout = params["w3"].shape[1]
    assert Cin == Cout, "downsample=None requires inplanes == planes * expansion"
    assert W % 8 == 0, "W must be a multiple of 8 (sublane alignment)"

    vmem_cap = _device_vmem_capacity_bytes()
    vmem_limit = max(16 << 20, min(int(vmem_cap * 3 // 4), vmem_cap - (8 << 20)))
    target_rows = 2048 if vmem_cap >= (96 << 20) else 1024
    if th is None:
        th = _pick_th(H, W, N, target_rows)
    assert H % th == 0

    f = _fold_params(params)

    out = pl.pallas_call(
        _bottleneck_fused_kernel,
        out_shape=jax.ShapeDtypeStruct((N, H, W, Cout), jnp.bfloat16),
        grid=(N, H // th),
        in_specs=[
            # interior rows of the tile (also used as the residual)
            pl.BlockSpec((1, th, W, Cin), lambda n, r: (n, r, 0, 0)),
            # raw HBM view of x for the two 1-row halo DMAs
            pl.BlockSpec(memory_space=pl.ANY),
            # folded weights / biases, resident across the grid
            pl.BlockSpec((Cin, planes), lambda n, r: (0, 0)),
            pl.BlockSpec((1, planes), lambda n, r: (0, 0)),
            pl.BlockSpec((3, 3 * planes, planes), lambda n, r: (0, 0, 0)),
            pl.BlockSpec((1, planes), lambda n, r: (0, 0)),
            pl.BlockSpec((planes, Cout), lambda n, r: (0, 0)),
            pl.BlockSpec((1, Cout), lambda n, r: (0, 0)),
        ],
        out_specs=pl.BlockSpec((1, th, W, Cout), lambda n, r: (n, r, 0, 0)),
        scratch_shapes=[
            pltpu.VMEM((2, 1, W, Cin), jnp.bfloat16),                      # halo rows
            pltpu.VMEM((_PAD + (th + 2) * W + _PAD, planes), jnp.float32),  # conv1 strip
            pltpu.SemaphoreType.DMA((2,)),
        ],
        compiler_params=pltpu.CompilerParams(
            dimension_semantics=("parallel", "parallel"),
            vmem_limit_bytes=vmem_limit,
        ),
    )(x, x, f["w1"], f["b1"], f["w2c"], f["b2"], f["w3"], f["b3"])
    return out


def bottleneck_forward(x_nchw, params, *, th=None):
    """NCHW interface matching the PyTorch module.  The two transposes run in
    bf16 (half the HBM bytes); a full network should stay in NHWC and call
    bottleneck_forward_nhwc directly."""
    x = jnp.transpose(x_nchw.astype(jnp.bfloat16), (0, 2, 3, 1))
    out = bottleneck_forward_nhwc(x, params, th=th)
    return jnp.transpose(out, (0, 3, 1, 2))


# ----------------------------------------------------------------------------
# Parameters (inference-mode BN folded to scale/bias) + pure-JAX reference
# ----------------------------------------------------------------------------

def fold_bn(gamma, beta, mean, var, eps=1e-5):
    scale = gamma / jnp.sqrt(var + eps)
    bias = beta - mean * scale
    return scale[None, :], bias[None, :]                   # (1, C)


def init_bottleneck_params(key, inplanes, planes):
    """Deterministic synthetic parameters matching the PyTorch module shapes."""
    expansion = 4
    ks = jax.random.split(key, 12)

    def conv_w(k, cin, cout, kh=1, kw=1):
        fan_in = cin * kh * kw
        bound = 1.0 / np.sqrt(fan_in)
        return jax.random.uniform(k, (kh, kw, cin, cout), jnp.float32,
                                  -bound, bound)

    def bn(kg, kb, km, kv, c):
        gamma = jax.random.uniform(kg, (c,), jnp.float32, 0.5, 1.5)
        beta = jax.random.uniform(kb, (c,), jnp.float32, -0.5, 0.5)
        mean = jax.random.uniform(km, (c,), jnp.float32, -0.5, 0.5)
        var = jax.random.uniform(kv, (c,), jnp.float32, 0.5, 1.5)
        return fold_bn(gamma, beta, mean, var)

    w1 = conv_w(ks[0], inplanes, planes)[0, 0]                         # (Cin, planes)
    w2 = conv_w(ks[1], planes, planes, 3, 3).reshape(9, planes, planes)
    w3 = conv_w(ks[2], planes, planes * expansion)[0, 0]               # (planes, planes*4)
    s1, b1 = bn(ks[3], ks[4], ks[5], ks[6], planes)
    s2, b2 = bn(ks[7], ks[8], ks[9], ks[10], planes)
    k3 = jax.random.split(ks[11], 4)
    s3, b3 = bn(k3[0], k3[1], k3[2], k3[3], planes * expansion)
    return dict(w1=w1, w2=w2, w3=w3, s1=s1, b1=b1, s2=s2, b2=b2, s3=s3, b3=b3)


def bottleneck_reference(x_nchw, p):
    x = jnp.transpose(x_nchw, (0, 2, 3, 1))
    y = jnp.einsum("nhwc,co->nhwo", x, p["w1"])
    y = jnp.maximum(y * p["s1"] + p["b1"], 0.0)
    w2 = p["w2"].reshape(3, 3, p["w1"].shape[1], p["w1"].shape[1])
    y = lax.conv_general_dilated(
        y, w2, (1, 1), "SAME", dimension_numbers=("NHWC", "HWIO", "NHWC"))
    y = jnp.maximum(y * p["s2"] + p["b2"], 0.0)
    y = jnp.einsum("nhwc,co->nhwo", y, p["w3"])
    y = y * p["s3"] + p["b3"] + x
    y = jnp.maximum(y, 0.0)
    return jnp.transpose(y, (0, 3, 1, 2))


# ----------------------------------------------------------------------------

if __name__ == "__main__":
    # Small but lane-friendly shapes: inplanes = planes*4 = 128 keeps the only
    # HBM store (output / residual channels) lane-dense.
    N, planes, H, W = 2, 32, 16, 16
    inplanes = planes * 4

    key = jax.random.PRNGKey(0)
    kx, kp = jax.random.split(key)
    x = jax.random.normal(kx, (N, inplanes, H, W), jnp.float32)
    params = init_bottleneck_params(kp, inplanes, planes)

    ref = np.asarray(bottleneck_reference(x, params))

    # Default (auto) row tile.
    out = jax.block_until_ready(jax.jit(bottleneck_forward)(x, params))
    np.testing.assert_allclose(np.asarray(out.astype(jnp.float32)), ref,
                               rtol=5e-2, atol=5e-2)

    # Small row tiles: exercises the interior halo-DMA path explicitly.
    fwd_small = jax.jit(functools.partial(bottleneck_forward, th=4))
    out_small = jax.block_until_ready(fwd_small(x, params))
    np.testing.assert_allclose(np.asarray(out_small.astype(jnp.float32)), ref,
                               rtol=5e-2, atol=5e-2)

    assert out.shape == (N, inplanes, H, W)
    print("KERNEL_OK")
</pallas_src>

<mosaic_0001>
module attributes {stable_mosaic.version = 11 : i64} {
  func.func @_bottleneck_fused_kernel(%arg0: i32, %arg1: i32, %arg2: memref<1x8x16x128xbf16, #tpu.memory_space<vmem>>, %arg3: memref<2x16x16x128xbf16, #tpu.memory_space<any>>, %arg4: memref<128x32xbf16, #tpu.memory_space<vmem>>, %arg5: memref<1x32xf32, #tpu.memory_space<vmem>>, %arg6: memref<3x96x32xbf16, #tpu.memory_space<vmem>>, %arg7: memref<1x32xf32, #tpu.memory_space<vmem>>, %arg8: memref<32x128xbf16, #tpu.memory_space<vmem>>, %arg9: memref<1x128xf32, #tpu.memory_space<vmem>>, %arg10: memref<1x8x16x128xbf16, #tpu.memory_space<vmem>>, %arg11: memref<2x1x16x128xbf16, #tpu.memory_space<vmem>>, %arg12: memref<176x32xf32, #tpu.memory_space<vmem>>, %arg13: memref<2x!tpu.dma_semaphore, #tpu.memory_space<semaphore_mem>>) attributes {dimension_semantics = [#tpu.dimension_semantics<parallel>, #tpu.dimension_semantics<parallel>], iteration_bounds = array<i64: 2, 2>, scalar_prefetch = 0 : i64, scratch_operands = 3 : i64, tpu.core_type = #tpu.core_type<tc>, window_params = [{transform_indices = @transform_0, window_bounds = array<i64: 1, 8, 16, 128>}, {}, {pipeline_mode = #tpu.pipeline_mode<synchronous>, transform_indices = @transform_2, window_bounds = array<i64: 128, 32>}, {pipeline_mode = #tpu.pipeline_mode<synchronous>, transform_indices = @transform_3, window_bounds = array<i64: 1, 32>}, {pipeline_mode = #tpu.pipeline_mode<synchronous>, transform_indices = @transform_4, window_bounds = array<i64: 3, 96, 32>}, {pipeline_mode = #tpu.pipeline_mode<synchronous>, transform_indices = @transform_5, window_bounds = array<i64: 1, 32>}, {pipeline_mode = #tpu.pipeline_mode<synchronous>, transform_indices = @transform_6, window_bounds = array<i64: 32, 128>}, {pipeline_mode = #tpu.pipeline_mode<synchronous>, transform_indices = @transform_7, window_bounds = array<i64: 1, 128>}, {transform_indices = @transform_8, window_bounds = array<i64: 1, 8, 16, 128>}]} {
    %c8_i32 = arith.constant 8 : i32
    %0 = arith.muli %arg1, %c8_i32 : i32
    %c1_i32 = arith.constant 1 : i32
    %1 = arith.subi %0, %c1_i32 : i32
    %c0_i32 = arith.constant 0 : i32
    %2 = arith.maxsi %1, %c0_i32 : i32
    %c8_i32_0 = arith.constant 8 : i32
    %3 = arith.muli %arg1, %c8_i32_0 : i32
    %c8_i32_1 = arith.constant 8 : i32
    %4 = arith.addi %3, %c8_i32_1 : i32
    %c15_i32 = arith.constant 15 : i32
    %5 = arith.minsi %4, %c15_i32 : i32
    %c0_i32_2 = arith.constant 0 : i32
    %c0_i32_3 = arith.constant 0 : i32
    %c0_i32_4 = arith.constant 0 : i32
    %6 = tpu.memref_slice %arg3[%arg0, %2, %c0_i32_3, %c0_i32_4] : memref<2x16x16x128xbf16, #tpu.memory_space<any>> -> memref<1x1x16x128xbf16, #tpu.memory_space<any>>
    %c0_i32_5 = arith.constant 0 : i32
    %c0_i32_6 = arith.constant 0 : i32
    %c0_i32_7 = arith.constant 0 : i32
    %c0_i32_8 = arith.constant 0 : i32
    %7 = tpu.memref_slice %arg11[%c0_i32_5, %c0_i32_6, %c0_i32_7, %c0_i32_8] : memref<2x1x16x128xbf16, #tpu.memory_space<vmem>> -> memref<1x1x16x128xbf16, #tpu.memory_space<vmem>>
    %8 = tpu.memref_slice %arg13[%c0_i32_2] : memref<2x!tpu.dma_semaphore, #tpu.memory_space<semaphore_mem>> -> memref<1x!tpu.dma_semaphore, #tpu.memory_space<semaphore_mem>>
    %9 = tpu.memref_squeeze %8 : memref<1x!tpu.dma_semaphore, #tpu.memory_space<semaphore_mem>> -> memref<!tpu.dma_semaphore, #tpu.memory_space<semaphore_mem>>
    tpu.enqueue_dma source(%6 : memref<1x1x16x128xbf16, #tpu.memory_space<any>>) target(%7 : memref<1x1x16x128xbf16, #tpu.memory_space<vmem>>) target_semaphore(%9 : memref<!tpu.dma_semaphore, #tpu.memory_space<semaphore_mem>>)
    %c1_i32_9 = arith.constant 1 : i32
    %c0_i32_10 = arith.constant 0 : i32
    %c0_i32_11 = arith.constant 0 : i32
    %10 = tpu.memref_slice %arg3[%arg0, %5, %c0_i32_10, %c0_i32_11] : memref<2x16x16x128xbf16, #tpu.memory_space<any>> -> memref<1x1x16x128xbf16, #tpu.memory_space<any>>
    %c1_i32_12 = arith.constant 1 : i32
    %c0_i32_13 = arith.constant 0 : i32
    %c0_i32_14 = arith.constant 0 : i32
    %c0_i32_15 = arith.constant 0 : i32
    %11 = tpu.memref_slice %arg11[%c1_i32_12, %c0_i32_13, %c0_i32_14, %c0_i32_15] : memref<2x1x16x128xbf16, #tpu.memory_space<vmem>> -> memref<1x1x16x128xbf16, #tpu.memory_space<vmem>>
    %12 = tpu.memref_slice %arg13[%c1_i32_9] : memref<2x!tpu.dma_semaphore, #tpu.memory_space<semaphore_mem>> -> memref<1x!tpu.dma_semaphore, #tpu.memory_space<semaphore_mem>>
    %13 = tpu.memref_squeeze %12 : memref<1x!tpu.dma_semaphore, #tpu.memory_space<semaphore_mem>> -> memref<!tpu.dma_semaphore, #tpu.memory_space<semaphore_mem>>
    tpu.enqueue_dma source(%10 : memref<1x1x16x128xbf16, #tpu.memory_space<any>>) target(%11 : memref<1x1x16x128xbf16, #tpu.memory_space<vmem>>) target_semaphore(%13 : memref<!tpu.dma_semaphore, #tpu.memory_space<semaphore_mem>>)
    %c0 = arith.constant 0 : index
    %c0_16 = arith.constant 0 : index
    %c0_17 = arith.constant 0 : index
    %c0_18 = arith.constant 0 : index
    %14 = vector.load %arg2[%c0, %c0_16, %c0_17, %c0_18] : memref<1x8x16x128xbf16, #tpu.memory_space<vmem>>, vector<1x8x16x128xbf16>
    %15 = vector.shape_cast %14 : vector<1x8x16x128xbf16> to vector<128x128xbf16>
    %c0_19 = arith.constant 0 : index
    %c0_20 = arith.constant 0 : index
    %16 = vector.load %arg4[%c0_19, %c0_20] : memref<128x32xbf16, #tpu.memory_space<vmem>>, vector<128x32xbf16>
    %cst = arith.constant dense<0.000000e+00> : vector<128x32xf32>
    %17 = tpu.matmul %15, %16, %cst {dimension_numbers = #tpu.dot_dimension_numbers<[1], [0], [0], [1], [0, 0, 1, 1], [], []>} : vector<128x128xbf16>, vector<128x32xbf16>, vector<128x32xf32> -> vector<128x32xf32>
    %c0_21 = arith.constant 0 : index
    %c0_22 = arith.constant 0 : index
    %18 = vector.load %arg5[%c0_21, %c0_22] : memref<1x32xf32, #tpu.memory_space<vmem>>, vector<1x32xf32>
    %19 = vector.broadcast %18 : vector<1x32xf32> to vector<128x32xf32>
    %20 = arith.addf %17, %19 : vector<128x32xf32>
    %cst_23 = arith.constant 0.000000e+00 : f32
    %21 = vector.broadcast %cst_23 : f32 to vector<128x32xf32>
    %22 = arith.maximumf %20, %21 : vector<128x32xf32>
    %c24 = arith.constant 24 : index
    %c0_24 = arith.constant 0 : index
    %23 = vector.load %arg12[%c24, %c0_24] : memref<176x32xf32, #tpu.memory_space<vmem>>, vector<128x32xf32>
    tpu.vector_store %arg12[%c24, %c0_24], %22 {strides = array<i32>} : memref<176x32xf32, #tpu.memory_space<vmem>>, vector<128x32xf32>,
    %cst_25 = arith.constant 0.000000e+00 : f32
    %24 = vector.broadcast %cst_25 : f32 to vector<8x32xf32>
    %c0_26 = arith.constant 0 : index
    %c0_27 = arith.constant 0 : index
    %25 = vector.load %arg12[%c0_26, %c0_27] : memref<176x32xf32, #tpu.memory_space<vmem>>, vector<8x32xf32>
    tpu.vector_store %arg12[%c0_26, %c0_27], %24 {strides = array<i32>} : memref<176x32xf32, #tpu.memory_space<vmem>>, vector<8x32xf32>,
    %c168 = arith.constant 168 : index
    %c0_28 = arith.constant 0 : index
    %26 = vector.load %arg12[%c168, %c0_28] : memref<176x32xf32, #tpu.memory_space<vmem>>, vector<8x32xf32>
    tpu.vector_store %arg12[%c168, %c0_28], %24 {strides = array<i32>} : memref<176x32xf32, #tpu.memory_space<vmem>>, vector<8x32xf32>,
    %27 = tpu.iota {dimensions = array<i32: 0>} : vector<160x1xi32>
    %c16_i32 = arith.constant 16 : i32
    %c0_i32_29 = arith.constant 0 : i32
    %28 = arith.cmpi eq, %c16_i32, %c0_i32_29 : i32
    %c1_i32_30 = arith.constant 1 : i32
    %29 = arith.select %28, %c1_i32_30, %c16_i32 : i32
    %30 = vector.broadcast %29 : i32 to vector<160x1xi32>
    %31 = arith.remsi %27, %30 : vector<160x1xi32>
    %c0_i32_31 = arith.constant 0 : i32
    %32 = vector.broadcast %c0_i32_31 : i32 to vector<160x1xi32>
    %33 = arith.cmpi ne, %31, %32 : vector<160x1xi32>
    %c0_i32_32 = arith.constant 0 : i32
    %34 = vector.broadcast %c0_i32_32 : i32 to vector<160x1xi32>
    %35 = arith.cmpi slt, %31, %34 : vector<160x1xi32>
    %c0_i32_33 = arith.constant 0 : i32
    %36 = arith.cmpi slt, %29, %c0_i32_33 : i32
    %37 = vector.broadcast %36 : i1 to vector<160x1xi1>
    %38 = vector.broadcast %37 : vector<160x1xi1> to vector<160x1xi1>
    %39 = arith.xori %35, %38 : vector<160x1xi1>
    %40 = arith.andi %39, %33 : vector<160x1xi1>
    %41 = vector.broadcast %29 : i32 to vector<160x1xi32>
    %42 = arith.addi %31, %41 : vector<160x1xi32>
    %43 = arith.select %40, %42, %31 : vector<160x1xi1>, vector<160x1xi32>
    %44 = vector.shape_cast %43 : vector<160x1xi32> to vector<160x1xi32>
    %45 = vector.broadcast %44 : vector<160x1xi32> to vector<160x32xi32>
    %c0_i32_34 = arith.constant 0 : i32
    %c0_i32_35 = arith.constant 0 : i32
    %c0_i32_36 = arith.constant 0 : i32
    %46 = tpu.memref_slice %arg3[%arg0, %2, %c0_i32_35, %c0_i32_36] : memref<2x16x16x128xbf16, #tpu.memory_space<any>> -> memref<1x1x16x128xbf16, #tpu.memory_space<any>>
    %c0_i32_37 = arith.constant 0 : i32
    %c0_i32_38 = arith.constant 0 : i32
    %c0_i32_39 = arith.constant 0 : i32
    %c0_i32_40 = arith.constant 0 : i32
    %47 = tpu.memref_slice %arg11[%c0_i32_37, %c0_i32_38, %c0_i32_39, %c0_i32_40] : memref<2x1x16x128xbf16, #tpu.memory_space<vmem>> -> memref<1x1x16x128xbf16, #tpu.memory_space<vmem>>
    %48 = tpu.memref_slice %arg13[%c0_i32_34] : memref<2x!tpu.dma_semaphore, #tpu.memory_space<semaphore_mem>> -> memref<1x!tpu.dma_semaphore, #tpu.memory_space<semaphore_mem>>
    %49 = tpu.memref_squeeze %48 : memref<1x!tpu.dma_semaphore, #tpu.memory_space<semaphore_mem>> -> memref<!tpu.dma_semaphore, #tpu.memory_space<semaphore_mem>>
    tpu.wait_dma2 semaphore(%49 : memref<!tpu.dma_semaphore, #tpu.memory_space<semaphore_mem>>) src(%46 : memref<1x1x16x128xbf16, #tpu.memory_space<any>>) dst(%47 : memref<1x1x16x128xbf16, #tpu.memory_space<vmem>>)
    %c1_i32_41 = arith.constant 1 : i32
    %c0_i32_42 = arith.constant 0 : i32
    %c0_i32_43 = arith.constant 0 : i32
    %50 = tpu.memref_slice %arg3[%arg0, %5, %c0_i32_42, %c0_i32_43] : memref<2x16x16x128xbf16, #tpu.memory_space<any>> -> memref<1x1x16x128xbf16, #tpu.memory_space<any>>
    %c1_i32_44 = arith.constant 1 : i32
    %c0_i32_45 = arith.constant 0 : i32
    %c0_i32_46 = arith.constant 0 : i32
    %c0_i32_47 = arith.constant 0 : i32
    %51 = tpu.memref_slice %arg11[%c1_i32_44, %c0_i32_45, %c0_i32_46, %c0_i32_47] : memref<2x1x16x128xbf16, #tpu.memory_space<vmem>> -> memref<1x1x16x128xbf16, #tpu.memory_space<vmem>>
    %52 = tpu.memref_slice %arg13[%c1_i32_41] : memref<2x!tpu.dma_semaphore, #tpu.memory_space<semaphore_mem>> -> memref<1x!tpu.dma_semaphore, #tpu.memory_space<semaphore_mem>>
    %53 = tpu.memref_squeeze %52 : memref<1x!tpu.dma_semaphore, #tpu.memory_space<semaphore_mem>> -> memref<!tpu.dma_semaphore, #tpu.memory_space<semaphore_mem>>
    tpu.wait_dma2 semaphore(%53 : memref<!tpu.dma_semaphore, #tpu.memory_space<semaphore_mem>>) src(%50 : memref<1x1x16x128xbf16, #tpu.memory_space<any>>) dst(%51 : memref<1x1x16x128xbf16, #tpu.memory_space<vmem>>)
    %c0_48 = arith.constant 0 : index
    %c0_49 = arith.constant 0 : index
    %c0_50 = arith.constant 0 : index
    %c0_51 = arith.constant 0 : index
    %54 = vector.load %arg11[%c0_48, %c0_49, %c0_50, %c0_51] : memref<2x1x16x128xbf16, #tpu.memory_space<vmem>>, vector<2x1x16x128xbf16>
    %55 = vector.shape_cast %54 : vector<2x1x16x128xbf16> to vector<32x128xbf16>
    %c0_52 = arith.constant 0 : index
    %c0_53 = arith.constant 0 : index
    %56 = vector.load %arg4[%c0_52, %c0_53] : memref<128x32xbf16, #tpu.memory_space<vmem>>, vector<128x32xbf16>
    %cst_54 = arith.constant dense<0.000000e+00> : vector<32x32xf32>
    %57 = tpu.matmul %55, %56, %cst_54 {dimension_numbers = #tpu.dot_dimension_numbers<[1], [0], [0], [1], [0, 0, 1, 1], [], []>} : vector<32x128xbf16>, vector<128x32xbf16>, vector<32x32xf32> -> vector<32x32xf32>
    %c0_55 = arith.constant 0 : index
    %c0_56 = arith.constant 0 : index
    %58 = vector.load %arg5[%c0_55, %c0_56] : memref<1x32xf32, #tpu.memory_space<vmem>>, vector<1x32xf32>
    %59 = vector.broadcast %58 : vector<1x32xf32> to vector<32x32xf32>
    %60 = arith.addf %57, %59 : vector<32x32xf32>
    %cst_57 = arith.constant 0.000000e+00 : f32
    %61 = vector.broadcast %cst_57 : f32 to vector<32x32xf32>
    %62 = arith.maximumf %60, %61 : vector<32x32xf32>
    %c0_i32_58 = arith.constant 0 : i32
    %63 = arith.cmpi sgt, %arg1, %c0_i32_58 : i32
    %64 = vector.extract_strided_slice %62 {offsets = [0, 0], sizes = [16, 32], strides = [1, 1]} : vector<32x32xf32> to vector<16x32xf32>
    %cst_59 = arith.constant 0.000000e+00 : f32
    %65 = vector.broadcast %cst_59 : f32 to vector<16x32xf32>
    %66 = arith.select %63, %64, %65 : vector<16x32xf32>
    %c8 = arith.constant 8 : index
    %c0_60 = arith.constant 0 : index
    %67 = vector.load %arg12[%c8, %c0_60] : memref<176x32xf32, #tpu.memory_space<vmem>>, vector<16x32xf32>
    tpu.vector_store %arg12[%c8, %c0_60], %66 {strides = array<i32>} : memref<176x32xf32, #tpu.memory_space<vmem>>, vector<16x32xf32>,
    %c1_i32_61 = arith.constant 1 : i32
    %68 = arith.cmpi slt, %arg1, %c1_i32_61 : i32
    %69 = vector.extract_strided_slice %62 {offsets = [16, 0], sizes = [16, 32], strides = [1, 1]} : vector<32x32xf32> to vector<16x32xf32>
    %cst_62 = arith.constant 0.000000e+00 : f32
    %70 = vector.broadcast %cst_62 : f32 to vector<16x32xf32>
    %71 = arith.select %68, %69, %70 : vector<16x32xf32>
    %c152 = arith.constant 152 : index
    %c0_63 = arith.constant 0 : index
    %72 = vector.load %arg12[%c152, %c0_63] : memref<176x32xf32, #tpu.memory_space<vmem>>, vector<16x32xf32>
    tpu.vector_store %arg12[%c152, %c0_63], %71 {strides = array<i32>} : memref<176x32xf32, #tpu.memory_space<vmem>>, vector<16x32xf32>,
    %c8_64 = arith.constant 8 : index
    %c0_65 = arith.constant 0 : index
    %73 = vector.load %arg12[%c8_64, %c0_65] : memref<176x32xf32, #tpu.memory_space<vmem>>, vector<160x32xf32>
    %c0_i32_66 = arith.constant 0 : i32
    %74 = vector.broadcast %c0_i32_66 : i32 to vector<160x32xi32>
    %75 = arith.cmpi eq, %45, %74 : vector<160x32xi32>
    %c7 = arith.constant 7 : index
    %c0_67 = arith.constant 0 : index
    %76 = vector.load %arg12[%c7, %c0_67] : memref<176x32xf32, #tpu.memory_space<vmem>>, vector<160x32xf32>
    %cst_68 = arith.constant 0.000000e+00 : f32
    %77 = vector.broadcast %cst_68 : f32 to vector<160x32xf32>
    %78 = arith.select %75, %77, %76 : vector<160x32xi1>, vector<160x32xf32>
    %c15_i32_69 = arith.constant 15 : i32
    %79 = vector.broadcast %c15_i32_69 : i32 to vector<160x32xi32>
    %80 = arith.cmpi eq, %45, %79 : vector<160x32xi32>
    %c9 = arith.constant 9 : index
    %c0_70 = arith.constant 0 : index
    %81 = vector.load %arg12[%c9, %c0_70] : memref<176x32xf32, #tpu.memory_space<vmem>>, vector<160x32xf32>
    %cst_71 = arith.constant 0.000000e+00 : f32
    %82 = vector.broadcast %cst_71 : f32 to vector<160x32xf32>
    %83 = arith.select %80, %82, %81 : vector<160x32xi1>, vector<160x32xf32>
    %84 = arith.truncf %78 : vector<160x32xf32> to vector<160x32xbf16>
    %85 = arith.truncf %73 : vector<160x32xf32> to vector<160x32xbf16>
    %86 = arith.truncf %83 : vector<160x32xf32> to vector<160x32xbf16>
    %c0_72 = arith.constant 0 : index
    %c0_73 = arith.constant 0 : index
    %c0_74 = arith.constant 0 : index
    %87 = vector.load %arg6[%c0_72, %c0_73, %c0_74] : memref<3x96x32xbf16, #tpu.memory_space<vmem>>, vector<1x96x32xbf16>
    %88 = vector.shape_cast %87 : vector<1x96x32xbf16> to vector<96x32xbf16>
    %89 = vector.extract_strided_slice %84 {offsets = [0, 0], sizes = [128, 32], strides = [1, 1]} : vector<160x32xbf16> to vector<128x32xbf16>
    %90 = vector.extract_strided_slice %88 {offsets = [0, 0], sizes = [32, 32], strides = [1, 1]} : vector<96x32xbf16> to vector<32x32xbf16>
    %cst_75 = arith.constant dense<0.000000e+00> : vector<128x32xf32>
    %91 = tpu.matmul %89, %90, %cst_75 {dimension_numbers = #tpu.dot_dimension_numbers<[1], [0], [0], [1], [0, 0, 1, 1], [], []>} : vector<128x32xbf16>, vector<32x32xbf16>, vector<128x32xf32> -> vector<128x32xf32>
    %92 = vector.extract_strided_slice %85 {offsets = [0, 0], sizes = [128, 32], strides = [1, 1]} : vector<160x32xbf16> to vector<128x32xbf16>
    %93 = vector.extract_strided_slice %88 {offsets = [32, 0], sizes = [32, 32], strides = [1, 1]} : vector<96x32xbf16> to vector<32x32xbf16>
    %cst_76 = arith.constant dense<0.000000e+00> : vector<128x32xf32>
    %94 = tpu.matmul %92, %93, %cst_76 {dimension_numbers = #tpu.dot_dimension_numbers<[1], [0], [0], [1], [0, 0, 1, 1], [], []>} : vector<128x32xbf16>, vector<32x32xbf16>, vector<128x32xf32> -> vector<128x32xf32>
    %95 = vector.extract_strided_slice %86 {offsets = [0, 0], sizes = [128, 32], strides = [1, 1]} : vector<160x32xbf16> to vector<128x32xbf16>
    %96 = vector.extract_strided_slice %88 {offsets = [64, 0], sizes = [32, 32], strides = [1, 1]} : vector<96x32xbf16> to vector<32x32xbf16>
    %cst_77 = arith.constant dense<0.000000e+00> : vector<128x32xf32>
    %97 = tpu.matmul %95, %96, %cst_77 {dimension_numbers = #tpu.dot_dimension_numbers<[1], [0], [0], [1], [0, 0, 1, 1], [], []>} : vector<128x32xbf16>, vector<32x32xbf16>, vector<128x32xf32> -> vector<128x32xf32>
    %c1 = arith.constant 1 : index
    %c0_78 = arith.constant 0 : index
    %c0_79 = arith.constant 0 : index
    %98 = vector.load %arg6[%c1, %c0_78, %c0_79] : memref<3x96x32xbf16, #tpu.memory_space<vmem>>, vector<1x96x32xbf16>
    %99 = vector.shape_cast %98 : vector<1x96x32xbf16> to vector<96x32xbf16>
    %100 = vector.extract_strided_slice %84 {offsets = [16, 0], sizes = [128, 32], strides = [1, 1]} : vector<160x32xbf16> to vector<128x32xbf16>
    %101 = vector.extract_strided_slice %99 {offsets = [0, 0], sizes = [32, 32], strides = [1, 1]} : vector<96x32xbf16> to vector<32x32xbf16>
    %cst_80 = arith.constant dense<0.000000e+00> : vector<128x32xf32>
    %102 = tpu.matmul %100, %101, %cst_80 {dimension_numbers = #tpu.dot_dimension_numbers<[1], [0], [0], [1], [0, 0, 1, 1], [], []>} : vector<128x32xbf16>, vector<32x32xbf16>, vector<128x32xf32> -> vector<128x32xf32>
    %103 = vector.extract_strided_slice %85 {offsets = [16, 0], sizes = [128, 32], strides = [1, 1]} : vector<160x32xbf16> to vector<128x32xbf16>
    %104 = vector.extract_strided_slice %99 {offsets = [32, 0], sizes = [32, 32], strides = [1, 1]} : vector<96x32xbf16> to vector<32x32xbf16>
    %cst_81 = arith.constant dense<0.000000e+00> : vector<128x32xf32>
    %105 = tpu.matmul %103, %104, %cst_81 {dimension_numbers = #tpu.dot_dimension_numbers<[1], [0], [0], [1], [0, 0, 1, 1], [], []>} : vector<128x32xbf16>, vector<32x32xbf16>, vector<128x32xf32> -> vector<128x32xf32>
    %106 = vector.extract_strided_slice %86 {offsets = [16, 0], sizes = [128, 32], strides = [1, 1]} : vector<160x32xbf16> to vector<128x32xbf16>
    %107 = vector.extract_strided_slice %99 {offsets = [64, 0], sizes = [32, 32], strides = [1, 1]} : vector<96x32xbf16> to vector<32x32xbf16>
    %cst_82 = arith.constant dense<0.000000e+00> : vector<128x32xf32>
    %108 = tpu.matmul %106, %107, %cst_82 {dimension_numbers = #tpu.dot_dimension_numbers<[1], [0], [0], [1], [0, 0, 1, 1], [], []>} : vector<128x32xbf16>, vector<32x32xbf16>, vector<128x32xf32> -> vector<128x32xf32>
    %c2 = arith.constant 2 : index
    %c0_83 = arith.constant 0 : index
    %c0_84 = arith.constant 0 : index
    %109 = vector.load %arg6[%c2, %c0_83, %c0_84] : memref<3x96x32xbf16, #tpu.memory_space<vmem>>, vector<1x96x32xbf16>
    %110 = vector.shape_cast %109 : vector<1x96x32xbf16> to vector<96x32xbf16>
    %111 = vector.extract_strided_slice %84 {offsets = [32, 0], sizes = [128, 32], strides = [1, 1]} : vector<160x32xbf16> to vector<128x32xbf16>
    %112 = vector.extract_strided_slice %110 {offsets = [0, 0], sizes = [32, 32], strides = [1, 1]} : vector<96x32xbf16> to vector<32x32xbf16>
    %cst_85 = arith.constant dense<0.000000e+00> : vector<128x32xf32>
    %113 = tpu.matmul %111, %112, %cst_85 {dimension_numbers = #tpu.dot_dimension_numbers<[1], [0], [0], [1], [0, 0, 1, 1], [], []>} : vector<128x32xbf16>, vector<32x32xbf16>, vector<128x32xf32> -> vector<128x32xf32>
    %114 = vector.extract_strided_slice %85 {offsets = [32, 0], sizes = [128, 32], strides = [1, 1]} : vector<160x32xbf16> to vector<128x32xbf16>
    %115 = vector.extract_strided_slice %110 {offsets = [32, 0], sizes = [32, 32], strides = [1, 1]} : vector<96x32xbf16> to vector<32x32xbf16>
    %cst_86 = arith.constant dense<0.000000e+00> : vector<128x32xf32>
    %116 = tpu.matmul %114, %115, %cst_86 {dimension_numbers = #tpu.dot_dimension_numbers<[1], [0], [0], [1], [0, 0, 1, 1], [], []>} : vector<128x32xbf16>, vector<32x32xbf16>, vector<128x32xf32> -> vector<128x32xf32>
    %117 = vector.extract_strided_slice %86 {offsets = [32, 0], sizes = [128, 32], strides = [1, 1]} : vector<160x32xbf16> to vector<128x32xbf16>
    %118 = vector.extract_strided_slice %110 {offsets = [64, 0], sizes = [32, 32], strides = [1, 1]} : vector<96x32xbf16> to vector<32x32xbf16>
    %cst_87 = arith.constant dense<0.000000e+00> : vector<128x32xf32>
    %119 = tpu.matmul %117, %118, %cst_87 {dimension_numbers = #tpu.dot_dimension_numbers<[1], [0], [0], [1], [0, 0, 1, 1], [], []>} : vector<128x32xbf16>, vector<32x32xbf16>, vector<128x32xf32> -> vector<128x32xf32>
    %120 = arith.addf %91, %94 : vector<128x32xf32>
    %121 = arith.addf %120, %97 : vector<128x32xf32>
    %122 = arith.addf %121, %102 : vector<128x32xf32>
    %123 = arith.addf %122, %105 : vector<128x32xf32>
    %124 = arith.addf %123, %108 : vector<128x32xf32>
    %125 = arith.addf %124, %113 : vector<128x32xf32>
    %126 = arith.addf %125, %116 : vector<128x32xf32>
    %127 = arith.addf %126, %119 : vector<128x32xf32>
    %c0_88 = arith.constant 0 : index
    %c0_89 = arith.constant 0 : index
    %128 = vector.load %arg7[%c0_88, %c0_89] : memref<1x32xf32, #tpu.memory_space<vmem>>, vector<1x32xf32>
    %129 = vector.broadcast %128 : vector<1x32xf32> to vector<128x32xf32>
    %130 = arith.addf %127, %129 : vector<128x32xf32>
    %cst_90 = arith.constant 0.000000e+00 : f32
    %131 = vector.broadcast %cst_90 : f32 to vector<128x32xf32>
    %132 = arith.maximumf %130, %131 : vector<128x32xf32>
    %133 = arith.truncf %132 : vector<128x32xf32> to vector<128x32xbf16>
    %c0_91 = arith.constant 0 : index
    %c0_92 = arith.constant 0 : index
    %134 = vector.load %arg8[%c0_91, %c0_92] : memref<32x128xbf16, #tpu.memory_space<vmem>>, vector<32x128xbf16>
    %cst_93 = arith.constant dense<0.000000e+00> : vector<128x128xf32>
    %135 = tpu.matmul %133, %134, %cst_93 {dimension_numbers = #tpu.dot_dimension_numbers<[1], [0], [0], [1], [0, 0, 1, 1], [], []>} : vector<128x32xbf16>, vector<32x128xbf16>, vector<128x128xf32> -> vector<128x128xf32>
    %c0_94 = arith.constant 0 : index
    %c0_95 = arith.constant 0 : index
    %136 = vector.load %arg9[%c0_94, %c0_95] : memref<1x128xf32, #tpu.memory_space<vmem>>, vector<1x128xf32>
    %137 = vector.broadcast %136 : vector<1x128xf32> to vector<128x128xf32>
    %138 = arith.addf %135, %137 : vector<128x128xf32>
    %139 = arith.extf %15 : vector<128x128xbf16> to vector<128x128xf32>
    %140 = arith.addf %138, %139 : vector<128x128xf32>
    %cst_96 = arith.constant 0.000000e+00 : f32
    %141 = vector.broadcast %cst_96 : f32 to vector<128x128xf32>
    %142 = arith.maximumf %140, %141 : vector<128x128xf32>
    %143 = vector.shape_cast %142 : vector<128x128xf32> to vector<1x8x16x128xf32>
    %144 = arith.truncf %143 : vector<1x8x16x128xf32> to vector<1x8x16x128xbf16>
    %c0_97 = arith.constant 0 : index
    %c0_98 = arith.constant 0 : index
    %c0_99 = arith.constant 0 : index
    %c0_100 = arith.constant 0 : index
    %145 = vector.load %arg10[%c0_97, %c0_98, %c0_99, %c0_100] : memref<1x8x16x128xbf16, #tpu.memory_space<vmem>>, vector<1x8x16x128xbf16>
    tpu.vector_store %arg10[%c0_97, %c0_98, %c0_99, %c0_100], %144 {strides = array<i32>} : memref<1x8x16x128xbf16, #tpu.memory_space<vmem>>, vector<1x8x16x128xbf16>,
    return
  }
  func.func @transform_0(%arg0: i32, %arg1: i32) -> (i32, i32, i32, i32) {
    %c0_i32 = arith.constant 0 : i32
    %c0_i32_0 = arith.constant 0 : i32
    %c0_i32_1 = arith.constant 0 : i32
    return %arg0, %arg1, %c0_i32, %c0_i32_0 : i32, i32, i32, i32
  }
  func.func @transform_2(%arg0: i32, %arg1: i32) -> (i32, i32) {
    %c0_i32 = arith.constant 0 : i32
    %c0_i32_0 = arith.constant 0 : i32
    %c0_i32_1 = arith.constant 0 : i32
    return %c0_i32, %c0_i32_0 : i32, i32
  }
  func.func @transform_3(%arg0: i32, %arg1: i32) -> (i32, i32) {
    %c0_i32 = arith.constant 0 : i32
    %c0_i32_0 = arith.constant 0 : i32
    %c0_i32_1 = arith.constant 0 : i32
    return %c0_i32, %c0_i32_0 : i32, i32
  }
  func.func @transform_4(%arg0: i32, %arg1: i32) -> (i32, i32, i32) {
    %c0_i32 = arith.constant 0 : i32
    %c0_i32_0 = arith.constant 0 : i32
    %c0_i32_1 = arith.constant 0 : i32
    %c0_i32_2 = arith.constant 0 : i32
    return %c0_i32, %c0_i32_0, %c0_i32_1 : i32, i32, i32
  }
  func.func @transform_5(%arg0: i32, %arg1: i32) -> (i32, i32) {
    %c0_i32 = arith.constant 0 : i32
    %c0_i32_0 = arith.constant 0 : i32
    %c0_i32_1 = arith.constant 0 : i32
    return %c0_i32, %c0_i32_0 : i32, i32
  }
  func.func @transform_6(%arg0: i32, %arg1: i32) -> (i32, i32) {
    %c0_i32 = arith.constant 0 : i32
    %c0_i32_0 = arith.constant 0 : i32
    %c0_i32_1 = arith.constant 0 : i32
    return %c0_i32, %c0_i32_0 : i32, i32
  }
  func.func @transform_7(%arg0: i32, %arg1: i32) -> (i32, i32) {
    %c0_i32 = arith.constant 0 : i32
    %c0_i32_0 = arith.constant 0 : i32
    %c0_i32_1 = arith.constant 0 : i32
    return %c0_i32, %c0_i32_0 : i32, i32
  }
  func.func @transform_8(%arg0: i32, %arg1: i32) -> (i32, i32, i32, i32) {
    %c0_i32 = arith.constant 0 : i32
    %c0_i32_0 = arith.constant 0 : i32
    %c0_i32_1 = arith.constant 0 : i32
    return %arg0, %arg1, %c0_i32, %c0_i32_0 : i32, i32, i32, i32
  }
}

</mosaic_0001>

<llo_original>
// kernel: bottleneck_forward.1
$region0: #{bottleneck_forward.1}
  #allocation0 [shape = 'u32[]', space=smem, size = 0x4, offset = 0x4, fixed_abs, tag = 'smem constant byte address 0x4 - core index']
  #allocation1 [shape = 'u32[144,128]{1,0:T(1,128)}', space=vmem, size = 0x12000, scoped, tag = 'internal scratch']
  #allocation2 [shape = 'bf16[2,1,16,128]{3,2,1,0:T(16,128)(2,1)}', space=vmem, size = 0x2000, scoped, tag = 'scratch operand']
  #allocation3 [shape = 'f32[176,32]{1,0:T(8,128)}', space=vmem, size = 0x16000, scoped, tag = 'scratch operand']
  #allocation4 [shape = 's32[2]{0}', space=sflag, size = 0x8, scoped, tag = 'scratch operand']
  #allocation7 [shape = 's32[]', space=sflag, size = 0x4, offset = 0, fixed_abs, tag = 'sflag constant byte address 0x0 - dummy sync flag']
  #allocation8 [shape = 's32[]', space=sflag, size = 0x4, offset = 0, fixed_abs, tag = 'sflag constant byte address 0x0 - dummy sync flag']
  %s0 = inlined_call_operand.vmem [shape: bf16[2,16,16,128], index: 0, kind: input, shape index: {}, may-alias: {0,1}]
  %s1 = inlined_call_operand.vmem [shape: bf16[2,16,16,128], index: 1, kind: input, shape index: {}, may-alias: {0,1}]
  %s2 = inlined_call_operand.vmem [shape: bf16[128,32], index: 2, kind: input, shape index: {}]
  %s3 = inlined_call_operand.vmem [shape: f32[1,32], index: 3, kind: input, shape index: {}]
  %s4 = inlined_call_operand.vmem [shape: bf16[3,96,32], index: 4, kind: input, shape index: {}]
  %s5 = inlined_call_operand.vmem [shape: f32[1,32], index: 5, kind: input, shape index: {}]
  %s6 = inlined_call_operand.vmem [shape: bf16[32,128], index: 6, kind: input, shape index: {}]
  %s7 = inlined_call_operand.vmem [shape: f32[1,128], index: 7, kind: input, shape index: {}]
  %s8 = inlined_call_operand.hbm [shape: bf16[2,16,16,128], index: 8, kind: output, shape index: {}]
  %s9 = sld [smem:[#allocation0]]
  $region129: #{bottleneck_forward.1} parent=0
    _
  %s11 = ssub.s32 1, %s9
  %s12 = scalar_select 0, %s11, %s9
  $region1: #{bottleneck_forward.1} parent=0
    #allocation5 [shape = 'u8[65536]{0}', space=vmem, size = 0x10000, scoped, tag = 'output window, operand 0']
    #allocation6 [shape = 's32[2]{0}', space=sflag, size = 0x8, scoped, tag = 'scoped memory for bottleneck_forward.1']
    %13 = vsyncpa [#allocation6], 0
    %s14 = scalar_lea.sflag [#allocation6], 1
    %15 = vsyncpa %s14, 0
    loop: start=0, step=1, limit=6
    $region2: #{bottleneck_forward.1} parent=1 // loop_pre_header
      _
    $region3: #{bottleneck_forward.1} parent=1 // loop_header
      %s17 = sphi 0, %s21
      %p18 = scmp.ge.s32.totalorder %s17, 6
      %s24 = sphi 0, %s36
      %s25 = sphi 0, %s32
      %s26 = sphi 0, %s24
      %s27 = sphi 0, %s25
      %s28 = sphi 0, %s26
      %s29 = sphi 0, %s27
      %s41 = sphi 0, %s43
      %s44 = sphi 0, %s41
      %s45 = sphi 0, %s44
      %s61 = sphi 0, %s45
      %s65 = sphi 0, %s65
      %s67 = sphi 0, %s65
      %s68 = sphi 0, %s67
      %s82 = sphi 0, %s68
      %s86 = sphi 0, %s86
      %s88 = sphi 0, %s86
      %s89 = sphi 0, %s88
      %s103 = sphi 0, %s89
      %s107 = sphi 0, %s107
      %s109 = sphi 0, %s107
      %s110 = sphi 0, %s109
      %s124 = sphi 0, %s110
      %s128 = sphi 0, %s128
      %s130 = sphi 0, %s128
      %s131 = sphi 0, %s130
      %s145 = sphi 0, %s131
      %s149 = sphi 0, %s149
      %s151 = sphi 0, %s149
      %s152 = sphi 0, %s151
      %s166 = sphi 0, %s152
      %s170 = sphi 0, %s170
      %s172 = sphi 0, %s170
      %s173 = sphi 0, %s172
      %s187 = sphi 0, %s173
      %s195 = sphi 0, %s197
      %s198 = sphi 0, %s195
      %s199 = sphi 0, %s198
      %s215 = sphi 0, %s199
    $region4: #{bottleneck_forward.1} parent=1 // loop_header_branch
      %20 = sbr.rel (%p18) target = $region8
    $region5: #{bottleneck_forward.1} parent=1 // loop_body
      %s22 = ssub.s32 %s17, 1
      %s23 = ssub.s32 %s17, 2
      %s30 = sadd.s32 1, %s25
      %p31 = scmp.ge.s32.totalorder %s30, 2
      %s32 = scalar_select %p31, 0, %s30
      %s33 = sadd.s32 1, %s24
      %s34 = scalar_select %p31, %s33, %s24
      %p35 = scmp.ge.s32.totalorder %s34, 2
      %s36 = scalar_select %p35, 0, %s34
      %s37 = ssub.s32 %s24, %s36
      %s38 = ssub.s32 %s25, %s32
      %s39 = sor.u32 %s37, %s38
      %p40 = scmp.eq.s32.totalorder %s39, 0
      %s42 = sadd.s32 %s41, 1
      %s43 = scalar_select %p40, %s41, %s42
      %p46 = pneg %p40
      %p47 = scmp.eq.s32.totalorder %s17, 3
      %p48 = por %p46, %p47
      %p49 = scmp.ne.s32.totalorder %s41, %s44
      %p50 = scmp.eq.s32.totalorder %s17, 0
      %p51 = por %p49, %p50
      %p52 = scmp.ne.s32.totalorder %s41, %s44
      %p53 = scmp.eq.s32.totalorder %s22, 3
      %p54 = por %p52, %p53
      %p55 = scmp.ne.s32.totalorder %s44, %s45
      %p56 = scmp.eq.s32.totalorder %s22, 0
      %p57 = por %p55, %p56
      %p58 = scmp.ne.s32.totalorder %s44, %s45
      %p59 = scmp.eq.s32.totalorder %s23, 3
      %p60 = por %p58, %p59
      %p62 = scmp.ne.s32.totalorder %s45, %s61
      %p63 = scmp.eq.s32.totalorder %s23, 0
      %p64 = por %p62, %p63
      %s66 = sadd.s32 %s65, 1
      %p69 = scmp.eq.s32.totalorder %s17, 3
      %p70 = scmp.ne.s32.totalorder %s65, %s67
      %p71 = scmp.eq.s32.totalorder %s17, 0
      %p72 = por %p70, %p71
      %p73 = scmp.ne.s32.totalorder %s65, %s67
      %p74 = scmp.eq.s32.totalorder %s22, 3
      %p75 = por %p73, %p74
      %p76 = scmp.ne.s32.totalorder %s67, %s68
      %p77 = scmp.eq.s32.totalorder %s22, 0
      %p78 = por %p76, %p77
      %p79 = scmp.ne.s32.totalorder %s67, %s68
      %p80 = scmp.eq.s32.totalorder %s23, 3
      %p81 = por %p79, %p80
      %p83 = scmp.ne.s32.totalorder %s68, %s82
      %p84 = scmp.eq.s32.totalorder %s23, 0
      %p85 = por %p83, %p84
      %s87 = sadd.s32 %s86, 1
      %p90 = scmp.eq.s32.totalorder %s17, 3
      %p91 = scmp.ne.s32.totalorder %s86, %s88
      %p92 = scmp.eq.s32.totalorder %s17, 0
      %p93 = por %p91, %p92
      %p94 = scmp.ne.s32.totalorder %s86, %s88
      %p95 = scmp.eq.s32.totalorder %s22, 3
      %p96 = por %p94, %p95
      %p97 = scmp.ne.s32.totalorder %s88, %s89
      %p98 = scmp.eq.s32.totalorder %s22, 0
      %p99 = por %p97, %p98
      %p100 = scmp.ne.s32.totalorder %s88, %s89
      %p101 = scmp.eq.s32.totalorder %s23, 3
      %p102 = por %p100, %p101
      %p104 = scmp.ne.s32.totalorder %s89, %s103
      %p105 = scmp.eq.s32.totalorder %s23, 0
      %p106 = por %p104, %p105
      %s108 = sadd.s32 %s107, 1
      %p111 = scmp.eq.s32.totalorder %s17, 3
      %p112 = scmp.ne.s32.totalorder %s107, %s109
      %p113 = scmp.eq.s32.totalorder %s17, 0
      %p114 = por %p112, %p113
      %p115 = scmp.ne.s32.totalorder %s107, %s109
      %p116 = scmp.eq.s32.totalorder %s22, 3
      %p117 = por %p115, %p116
      %p118 = scmp.ne.s32.totalorder %s109, %s110
      %p119 = scmp.eq.s32.totalorder %s22, 0
      %p120 = por %p118, %p119
      %p121 = scmp.ne.s32.totalorder %s109, %s110
      %p122 = scmp.eq.s32.totalorder %s23, 3
      %p123 = por %p121, %p122
      %p125 = scmp.ne.s32.totalorder %s110, %s124
      %p126 = scmp.eq.s32.totalorder %s23, 0
      %p127 = por %p125, %p126
      %s129 = sadd.s32 %s128, 1
      %p132 = scmp.eq.s32.totalorder %s17, 3
      %p133 = scmp.ne.s32.totalorder %s128, %s130
      %p134 = scmp.eq.s32.totalorder %s17, 0
      %p135 = por %p133, %p134
      %p136 = scmp.ne.s32.totalorder %s128, %s130
      %p137 = scmp.eq.s32.totalorder %s22, 3
      %p138 = por %p136, %p137
      %p139 = scmp.ne.s32.totalorder %s130, %s131
      %p140 = scmp.eq.s32.totalorder %s22, 0
      %p141 = por %p139, %p140
      %p142 = scmp.ne.s32.totalorder %s130, %s131
      %p143 = scmp.eq.s32.totalorder %s23, 3
      %p144 = por %p142, %p143
      %p146 = scmp.ne.s32.totalorder %s131, %s145
      %p147 = scmp.eq.s32.totalorder %s23, 0
      %p148 = por %p146, %p147
      %s150 = sadd.s32 %s149, 1
      %p153 = scmp.eq.s32.totalorder %s17, 3
      %p154 = scmp.ne.s32.totalorder %s149, %s151
      %p155 = scmp.eq.s32.totalorder %s17, 0
      %p156 = por %p154, %p155
      %p157 = scmp.ne.s32.totalorder %s149, %s151
      %p158 = scmp.eq.s32.totalorder %s22, 3
      %p159 = por %p157, %p158
      %p160 = scmp.ne.s32.totalorder %s151, %s152
      %p161 = scmp.eq.s32.totalorder %s22, 0
      %p162 = por %p160, %p161
      %p163 = scmp.ne.s32.totalorder %s151, %s152
      %p164 = scmp.eq.s32.totalorder %s23, 3
      %p165 = por %p163, %p164
      %p167 = scmp.ne.s32.totalorder %s152, %s166
      %p168 = scmp.eq.s32.totalorder %s23, 0
      %p169 = por %p167, %p168
      %s171 = sadd.s32 %s170, 1
      %p174 = scmp.eq.s32.totalorder %s17, 3
      %p175 = scmp.ne.s32.totalorder %s170, %s172
      %p176 = scmp.eq.s32.totalorder %s17, 0
      %p177 = por %p175, %p176
      %p178 = scmp.ne.s32.totalorder %s170, %s172
      %p179 = scmp.eq.s32.totalorder %s22, 3
      %p180 = por %p178, %p179
      %p181 = scmp.ne.s32.totalorder %s172, %s173
      %p182 = scmp.eq.s32.totalorder %s22, 0
      %p183 = por %p181, %p182
      %p184 = scmp.ne.s32.totalorder %s172, %s173
      %p185 = scmp.eq.s32.totalorder %s23, 3
      %p186 = por %p184, %p185
      %p188 = scmp.ne.s32.totalorder %s173, %s187
      %p189 = scmp.eq.s32.totalorder %s23, 0
      %p190 = por %p188, %p189
      %s191 = ssub.s32 %s24, %s36
      %s192 = ssub.s32 %s25, %s32
      %s193 = sor.u32 %s191, %s192
      %p194 = scmp.eq.s32.totalorder %s193, 0
      %s196 = sadd.s32 %s195, 1
      %s197 = scalar_select %p194, %s195, %s196
      %p200 = pneg %p194
      %p201 = scmp.eq.s32.totalorder %s17, 3
      %p202 = por %p200, %p201
      %p203 = scmp.ne.s32.totalorder %s195, %s198
      %p204 = scmp.eq.s32.totalorder %s17, 0
      %p205 = por %p203, %p204
      %p206 = scmp.ne.s32.totalorder %s195, %s198
      %p207 = scmp.eq.s32.totalorder %s22, 3
      %p208 = por %p206, %p207
      %p209 = scmp.ne.s32.totalorder %s198, %s199
      %p210 = scmp.eq.s32.totalorder %s22, 0
      %p211 = por %p209, %p210
      %p212 = scmp.ne.s32.totalorder %s198, %s199
      %p213 = scmp.eq.s32.totalorder %s23, 3
      %p214 = por %p212, %p213
      %p216 = scmp.ne.s32.totalorder %s199, %s215
      %p217 = scmp.eq.s32.totalorder %s23, 0
      %p218 = por %p216, %p217
      %p219 = scmp.le.s32.totalorder 1, %s17
      %p220 = scmp.lt.s32.totalorder %s17, 5
      %p221 = pnand %p219, %p220
      %p222 = pneg %p221
      // Predicated region
      $region9: #{bottleneck_forward.1} parent=5 // pred_check
        _
      $region10: #{bottleneck_forward.1} parent=5 // pred_check_branch
        %224 = sbr.rel (%p221) target = $region12
      $region11: #{bottleneck_forward.1} parent=5 // pred_region
        %s225 = ssub.s32 %s17, 1
        // Predicated region
        $region13: #{bottleneck_forward.1} parent=11 // pred_check
          %p226 = pneg %p78
        $region14: #{bottleneck_forward.1} parent=11 // pred_check_branch
          %228 = sbr.rel (%p226) target = $region16
        $region15: #{bottleneck_forward.1} parent=11 // pred_region
          _
        $region16: #{bottleneck_forward.1} parent=11 // pred_fallthru
          _
        // Predicated region
        $region17: #{bottleneck_forward.1} parent=11 // pred_check
          %p229 = pneg %p99
        $region18: #{bottleneck_forward.1} parent=11 // pred_check_branch
          %231 = sbr.rel (%p229) target = $region20
        $region19: #{bottleneck_forward.1} parent=11 // pred_region
          _
        $region20: #{bottleneck_forward.1} parent=11 // pred_fallthru
          _
        // Predicated region
        $region21: #{bottleneck_forward.1} parent=11 // pred_check
          %p232 = pneg %p120
        $region22: #{bottleneck_forward.1} parent=11 // pred_check_branch
          %234 = sbr.rel (%p232) target = $region24
        $region23: #{bottleneck_forward.1} parent=11 // pred_region
          _
        $region24: #{bottleneck_forward.1} parent=11 // pred_fallthru
          _
        // Predicated region
        $region25: #{bottleneck_forward.1} parent=11 // pred_check
          %p235 = pneg %p141
        $region26: #{bottleneck_forward.1} parent=11 // pred_check_branch
          %237 = sbr.rel (%p235) target = $region28
        $region27: #{bottleneck_forward.1} parent=11 // pred_region
          _
        $region28: #{bottleneck_forward.1} parent=11 // pred_fallthru
          _
        // Predicated region
        $region29: #{bottleneck_forward.1} parent=11 // pred_check
          %p238 = pneg %p162
        $region30: #{bottleneck_forward.1} parent=11 // pred_check_branch
          %240 = sbr.rel (%p238) target = $region32
        $region31: #{bottleneck_forward.1} parent=11 // pred_region
          _
        $region32: #{bottleneck_forward.1} parent=11 // pred_fallthru
          _
        // Predicated region
        $region33: #{bottleneck_forward.1} parent=11 // pred_check
          %p241 = pneg %p183
        $region34: #{bottleneck_forward.1} parent=11 // pred_check_branch
          %243 = sbr.rel (%p241) target = $region36
        $region35: #{bottleneck_forward.1} parent=11 // pred_region
          _
        $region36: #{bottleneck_forward.1} parent=11 // pred_fallthru
          _
      $region12: #{bottleneck_forward.1} parent=5 // pred_fallthru
        _
      %p244 = scmp.lt.s32.totalorder %s17, 4
      // Predicated region
      $region37: #{bottleneck_forward.1} parent=5 // pred_check
        %p245 = pneg %p244
      $region38: #{bottleneck_forward.1} parent=5 // pred_check_branch
        %247 = sbr.rel (%p245) target = $region40
      $region39: #{bottleneck_forward.1} parent=5 // pred_region
        // Predicated region
        $region41: #{bottleneck_forward.1} parent=39 // pred_check
          %p248 = pneg %p51
        $region42: #{bottleneck_forward.1} parent=39 // pred_check_branch
          %250 = sbr.rel (%p248) target = $region44
        $region43: #{bottleneck_forward.1} parent=39 // pred_region
          %s251 = smul.u32 8, %s25
          %p252 = scmp.lt.s32.totalorder %s24, 1
          %s253 = scalar_select %p252, %s24, 1
          %p254 = scmp.lt.s32.totalorder %s251, 15
          %s255 = scalar_select %p254, %s251, 15
          %s256 = smul.addr %s255, 2
          %s257 = smul.addr %s253, 32
          %s258 = sadd.s32 %s256, %s257
          %s259 = smul.addr %s258, 4
          %s260 = scalar_lea.vmem %s0, %s259
          %s261 = smul.u32 8, %s25
        $region44: #{bottleneck_forward.1} parent=39 // pred_fallthru
          _
      $region40: #{bottleneck_forward.1} parent=5 // pred_fallthru
        _
      %p262 = scmp.le.s32.totalorder 1, %s17
      %p263 = scmp.lt.s32.totalorder %s17, 5
      %p264 = pnand %p262, %p263
      %p265 = pneg %p264
      // Predicated region
      $region45: #{bottleneck_forward.1} parent=5 // pred_check
        _
      $region46: #{bottleneck_forward.1} parent=5 // pred_check_branch
        %267 = sbr.rel (%p264) target = $region48
      $region47: #{bottleneck_forward.1} parent=5 // pred_region
        %s268 = ssub.s32 %s17, 1
        %s269 = smul.u32 8, %s27
        %p270 = scmp.lt.s32.totalorder %s26, 1
        %s271 = scalar_select %p270, %s26, 1
        %p272 = scmp.lt.s32.totalorder %s269, 15
        %s273 = scalar_select %p272, %s269, 15
        %s274 = smul.addr %s273, 2
        %s275 = smul.addr %s271, 32
        %s276 = sadd.s32 %s274, %s275
        %s277 = smul.addr %s276, 4
        %s278 = scalar_lea.vmem %s0, %s277
        %p279 = pneg %p57
        %p280 = pneg %p54
        %p281 = pneg %p78
        %p282 = pneg %p75
        %p283 = pneg %p99
        %p284 = pneg %p96
        %p285 = pneg %p120
        %p286 = pneg %p117
        %p287 = pneg %p141
        %p288 = pneg %p138
        %p289 = pneg %p162
        %p290 = pneg %p159
        %p291 = pneg %p183
        %p292 = pneg %p180
        %p293 = pneg %p211
        %p294 = pneg %p208
        %s295 = sand.u32 %s198, 1
        %s296 = scalar_lea.sflag [#allocation6], %s295
        %s297 = sand.u32 %s198, 1
        %s298 = smul.addr %s297, 64
        %s299 = scalar_lea.vmem [#allocation5], %s298
        %s300 = smul.u32 8, %s27
        %p301 = scmp.lt.s32.totalorder %s26, 1
        %s302 = scalar_select %p301, %s26, 1
        %p303 = scmp.lt.s32.totalorder %s300, 15
        %s304 = scalar_select %p303, %s300, 15
        %s305 = smul.addr %s304, 2
        %s306 = smul.addr %s302, 32
        %s307 = sadd.s32 %s305, %s306
        %s308 = smul.addr %s307, 4
        %s309 = scalar_lea.vmem %s0, %s308
        %s310 = smul.u32 8, %s27
        %s311 = smul.u32 8, %s27
        %s313 = smul.u32 %s27, 8
        %s314 = ssub.s32 %s313, 1
        %p315 = scmp.gt.s32.totalorder %s314, 0
        %s316 = scalar_select %p315, %s314, 0
        %s317 = sadd.s32 %s313, 8
        %p318 = scmp.lt.s32.totalorder %s317, 15
        %s319 = scalar_select %p318, %s317, 15
        %s320 = smul.u32 %s316, 2
        %s321 = smul.u32 %s26, 32
        %s322 = sadd.s32 %s320, %s321
        %s323 = smul.addr %s322, 4
        %s324 = scalar_lea.vmem %s1, %s323
        %p326 = scmp.lt.u32.totalorder 8, 8
        %p327 = pneg %p326
        // Predicated region
        $region49: #{bottleneck_forward.1} parent=47 // pred_check
          _
        $region50: #{bottleneck_forward.1} parent=47 // pred_check_branch
          %329 = sbr.rel (%p326) target = $region52
        $region51: #{bottleneck_forward.1} parent=47 // pred_region
          %s344 = sand.u32 8, 7
          %p345 = scmp.eq.s32.totalorder %s344, 0
          // Predicated region
          $region64: #{bottleneck_forward.1} parent=51 // pred_check
            %p346 = pneg %p345
          $region65: #{bottleneck_forward.1} parent=51 // pred_check_branch
            %348 = sbr.rel (%p346) target = $region67
          $region66: #{bottleneck_forward.1} parent=51 // pred_region
            loop: start=0, step=1, limit=1
            $region68: #{bottleneck_forward.1} parent=66 // loop_pre_header
              _
            $region69: #{bottleneck_forward.1} parent=66 // loop_header
              %s350 = sphi 0, %s354
              %p351 = scmp.ge.s32.totalorder %s350, 1
              %s355 = sphi %s324, %s324
              %s356 = sphi [#allocation2], [#allocation2]
            $region70: #{bottleneck_forward.1} parent=66 // loop_header_branch
              %353 = sbr.rel (%p351) target = $region74
            $region71: #{bottleneck_forward.1} parent=66 // loop_body
              %v357 = vld [vmem:[%s355] sm:$0xff]
              %358 = vst [vmem:[%s356] sm:$0xff] %v357
            $region72: #{bottleneck_forward.1} parent=66 // loop_footer
              %s354 = sadd.s32 1, %s350
            $region73: #{bottleneck_forward.1} parent=66 // loop_footer_branch
              %349 = sbr.rel target = $region69
            $region74: #{bottleneck_forward.1} parent=66 // loop_exit
              _
          $region67: #{bottleneck_forward.1} parent=51 // pred_fallthru
            _
          %p359 = pneg %p345
          // Predicated region
          $region75: #{bottleneck_forward.1} parent=51 // pred_check
            _
          $region76: #{bottleneck_forward.1} parent=51 // pred_check_branch
            %361 = sbr.rel (%p345) target = $region78
          $region77: #{bottleneck_forward.1} parent=51 // pred_region
            %s362 = sand.u32 8, 7
          $region78: #{bottleneck_forward.1} parent=51 // pred_fallthru
            _
        $region52: #{bottleneck_forward.1} parent=47 // pred_fallthru
          _
        // Predicated region
        $region53: #{bottleneck_forward.1} parent=47 // pred_check
          %p330 = pneg %p326
        $region54: #{bottleneck_forward.1} parent=47 // pred_check_branch
          %332 = sbr.rel (%p330) target = $region56
        $region55: #{bottleneck_forward.1} parent=47 // pred_region
          %s333 = sshllo.u32 0, 8
          loop: start=0, step=1, limit=1
          $region57: #{bottleneck_forward.1} parent=55 // loop_pre_header
            _
          $region58: #{bottleneck_forward.1} parent=55 // loop_header
            %s335 = sphi 0, %s339
            %p336 = scmp.ge.s32.totalorder %s335, 1
            %s340 = sphi %s324, %s324
            %s341 = sphi [#allocation2], [#allocation2]
          $region59: #{bottleneck_forward.1} parent=55 // loop_header_branch
            %338 = sbr.rel (%p336) target = $region63
          $region60: #{bottleneck_forward.1} parent=55 // loop_body
            %v342 = vld [vmem:[%s340] sm:%s333]
            %343 = vst [vmem:[%s341] sm:%s333] %v342
          $region61: #{bottleneck_forward.1} parent=55 // loop_footer
            %s339 = sadd.s32 1, %s335
          $region62: #{bottleneck_forward.1} parent=55 // loop_footer_branch
            %334 = sbr.rel target = $region58
          $region63: #{bottleneck_forward.1} parent=55 // loop_exit
            _
        $region56: #{bottleneck_forward.1} parent=47 // pred_fallthru
          _
        // Predicated region
        $region79: #{bottleneck_forward.1} parent=47 // pred_check
          _
        $region80: #{bottleneck_forward.1} parent=47 // pred_check_branch
          %365 = sbr.rel (0) target = $region82
        $region81: #{bottleneck_forward.1} parent=47 // pred_region
          %366 = vsyncadd [#allocation4], 128
        $region82: #{bottleneck_forward.1} parent=47 // pred_fallthru
          _
        %s367 = smul.u32 %s319, 2
        %s368 = sadd.s32 %s367, %s321
        %s369 = smul.addr %s368, 4
        %s370 = scalar_lea.vmem %s1, %s369
        %s371 = scalar_lea.vmem [#allocation2], 8
        %s372 = scalar_lea.sflag [#allocation4], 1
        %p374 = scmp.lt.u32.totalorder 8, 8
        %p375 = pneg %p374
        // Predicated region
        $region83: #{bottleneck_forward.1} parent=47 // pred_check
          _
        $region84: #{bottleneck_forward.1} parent=47 // pred_check_branch
          %377 = sbr.rel (%p374) target = $region86
        $region85: #{bottleneck_forward.1} parent=47 // pred_region
          %s392 = sand.u32 8, 7
          %p393 = scmp.eq.s32.totalorder %s392, 0
          // Predicated region
          $region98: #{bottleneck_forward.1} parent=85 // pred_check
            %p394 = pneg %p393
          $region99: #{bottleneck_forward.1} parent=85 // pred_check_branch
            %396 = sbr.rel (%p394) target = $region101
          $region100: #{bottleneck_forward.1} parent=85 // pred_region
            loop: start=0, step=1, limit=1
            $region102: #{bottleneck_forward.1} parent=100 // loop_pre_header
              _
            $region103: #{bottleneck_forward.1} parent=100 // loop_header
              %s398 = sphi 0, %s402
              %p399 = scmp.ge.s32.totalorder %s398, 1
              %s403 = sphi %s370, %s370
              %s404 = sphi %s371, %s371
            $region104: #{bottleneck_forward.1} parent=100 // loop_header_branch
              %401 = sbr.rel (%p399) target = $region108
            $region105: #{bottleneck_forward.1} parent=100 // loop_body
              %v405 = vld [vmem:[%s403] sm:$0xff]
              %406 = vst [vmem:[%s404] sm:$0xff] %v405
            $region106: #{bottleneck_forward.1} parent=100 // loop_footer
              %s402 = sadd.s32 1, %s398
            $region107: #{bottleneck_forward.1} parent=100 // loop_footer_branch
              %397 = sbr.rel target = $region103
            $region108: #{bottleneck_forward.1} parent=100 // loop_exit
              _
          $region101: #{bottleneck_forward.1} parent=85 // pred_fallthru
            _
          %p407 = pneg %p393
          // Predicated region
          $region109: #{bottleneck_forward.1} parent=85 // pred_check
            _
          $region110: #{bottleneck_forward.1} parent=85 // pred_check_branch
            %409 = sbr.rel (%p393) target = $region112
          $region111: #{bottleneck_forward.1} parent=85 // pred_region
            %s410 = sand.u32 8, 7
          $region112: #{bottleneck_forward.1} parent=85 // pred_fallthru
            _
        $region86: #{bottleneck_forward.1} parent=47 // pred_fallthru
          _
        // Predicated region
        $region87: #{bottleneck_forward.1} parent=47 // pred_check
          %p378 = pneg %p374
        $region88: #{bottleneck_forward.1} parent=47 // pred_check_branch
          %380 = sbr.rel (%p378) target = $region90
        $region89: #{bottleneck_forward.1} parent=47 // pred_region
          %s381 = sshllo.u32 0, 8
          loop: start=0, step=1, limit=1
          $region91: #{bottleneck_forward.1} parent=89 // loop_pre_header
            _
          $region92: #{bottleneck_forward.1} parent=89 // loop_header
            %s383 = sphi 0, %s387
            %p384 = scmp.ge.s32.totalorder %s383, 1
            %s388 = sphi %s370, %s370
            %s389 = sphi %s371, %s371
          $region93: #{bottleneck_forward.1} parent=89 // loop_header_branch
            %386 = sbr.rel (%p384) target = $region97
          $region94: #{bottleneck_forward.1} parent=89 // loop_body
            %v390 = vld [vmem:[%s388] sm:%s381]
            %391 = vst [vmem:[%s389] sm:%s381] %v390
          $region95: #{bottleneck_forward.1} parent=89 // loop_footer
            %s387 = sadd.s32 1, %s383
          $region96: #{bottleneck_forward.1} parent=89 // loop_footer_branch
            %382 = sbr.rel target = $region92
          $region97: #{bottleneck_forward.1} parent=89 // loop_exit
            _
        $region90: #{bottleneck_forward.1} parent=47 // pred_fallthru
          _
        // Predicated region
        $region113: #{bottleneck_forward.1} parent=47 // pred_check
          _
        $region114: #{bottleneck_forward.1} parent=47 // pred_check_branch
          %413 = sbr.rel (0) target = $region116
        $region115: #{bottleneck_forward.1} parent=47 // pred_region
          %414 = vsyncadd %s372, 128
        $region116: #{bottleneck_forward.1} parent=47 // pred_fallthru
          _
        %v415 = vld [vmem:[%s309] sm:$0xf]
        %v416 = vld [vmem:[%s309 + $0x4] sm:$0xf]
        %v417 = vld [vmem:[%s309 + $0x8] sm:$0xf]
        %v418 = vld [vmem:[%s309 + $0xc] sm:$0xf]
        %v419 = vld [vmem:[%s309 + $0x10] sm:$0xf]
        %v420 = vld [vmem:[%s309 + $0x14] sm:$0xf]
        %v421 = vld [vmem:[%s309 + $0x18] sm:$0xf]
        %v422 = vld [vmem:[%s309 + $0x1c] sm:$0xf]
        %v423 = vld [vmem:[%s309 + $0x20] sm:$0xf]
        %v424 = vld [vmem:[%s309 + $0x24] sm:$0xf]
        %v425 = vld [vmem:[%s309 + $0x28] sm:$0xf]
        %v426 = vld [vmem:[%s309 + $0x2c] sm:$0xf]
        %v427 = vld [vmem:[%s309 + $0x30] sm:$0xf]
        %v428 = vld [vmem:[%s309 + $0x34] sm:$0xf]
        %v429 = vld [vmem:[%s309 + $0x38] sm:$0xf]
        %v430 = vld [vmem:[%s309 + $0x3c] sm:$0xf]
        %v431 = vld [vmem:[%s2] sm:$0xf]
        %v432 = vld [vmem:[%s2 + $0x4] sm:$0xf]
        %v433 = vld [vmem:[%s2 + $0x8] sm:$0xf]
        %v434 = vld [vmem:[%s2 + $0xc] sm:$0xf]
        %v435 = vld [vmem:[%s2 + $0x10] sm:$0xf]
        %v436 = vld [vmem:[%s2 + $0x14] sm:$0xf]
        %v437 = vld [vmem:[%s2 + $0x18] sm:$0xf]
        %v438 = vld [vmem:[%s2 + $0x1c] sm:$0xf]
        %v439 = vld [vmem:[%s2 + $0x20] sm:$0xf]
        %v440 = vld [vmem:[%s2 + $0x24] sm:$0xf]
        %v441 = vld [vmem:[%s2 + $0x28] sm:$0xf]
        %v442 = vld [vmem:[%s2 + $0x2c] sm:$0xf]
        %v443 = vld [vmem:[%s2 + $0x30] sm:$0xf]
        %v444 = vld [vmem:[%s2 + $0x34] sm:$0xf]
        %v445 = vld [vmem:[%s2 + $0x38] sm:$0xf]
        %v446 = vld [vmem:[%s2 + $0x3c] sm:$0xf]
        %v447 = vld [vmem:[%s3] sm:$0x1]
        %v449 = vlaneseq
        %v450 = vshrl.u32 %v449, 7
        %v451 = vsub.s32 0, %v450
        %v452 = vrot.slane %v447, %v451
        %v470 = vunpack.c.l.b16 %v415
        %v471 = vunpack.c.l.b16 %v416
        %v472 = vunpack.c.l.b16 %v417
        %v473 = vunpack.c.l.b16 %v418
        %v474 = vunpack.c.l.b16 %v419
        %v475 = vunpack.c.l.b16 %v420
        %v476 = vunpack.c.l.b16 %v421
        %v477 = vunpack.c.l.b16 %v422
        %v478 = vunpack.c.l.b16 %v423
        %v479 = vunpack.c.l.b16 %v424
        %v480 = vunpack.c.l.b16 %v425
        %v481 = vunpack.c.l.b16 %v426
        %v482 = vunpack.c.l.b16 %v427
        %v483 = vunpack.c.l.b16 %v428
        %v484 = vunpack.c.l.b16 %v429
        %v485 = vunpack.c.l.b16 %v430
        %v486 = vpack.c.b16 %v471, %v470
        %v487 = vpack.c.b16 %v473, %v472
        %v488 = vpack.c.b16 %v475, %v474
        %v489 = vpack.c.b16 %v477, %v476
        %v490 = vpack.c.b16 %v479, %v478
        %v491 = vpack.c.b16 %v481, %v480
        %v492 = vpack.c.b16 %v483, %v482
        %v493 = vpack.c.b16 %v485, %v484
        %v518 = vunpack.c.l.b16 %v431
        %v519 = vunpack.c.l.b16 %v432
        %v520 = vunpack.c.l.b16 %v433
        %v521 = vunpack.c.l.b16 %v434
        %v522 = vunpack.c.l.b16 %v435
        %v523 = vunpack.c.l.b16 %v436
        %v524 = vunpack.c.l.b16 %v437
        %v525 = vunpack.c.l.b16 %v438
        %v526 = vunpack.c.l.b16 %v439
        %v527 = vunpack.c.l.b16 %v440
        %v528 = vunpack.c.l.b16 %v441
        %v529 = vunpack.c.l.b16 %v442
        %v530 = vunpack.c.l.b16 %v443
        %v531 = vunpack.c.l.b16 %v444
        %v532 = vunpack.c.l.b16 %v445
        %v533 = vunpack.c.l.b16 %v446
        %v534 = vpack.c.b16 %v519, %v518
        %v535 = vpack.c.b16 %v521, %v520
        %v536 = vpack.c.b16 %v523, %v522
        %v537 = vpack.c.b16 %v525, %v524
        %v538 = vpack.c.b16 %v527, %v526
        %v539 = vpack.c.b16 %v529, %v528
        %v540 = vpack.c.b16 %v531, %v530
        %v541 = vpack.c.b16 %v533, %v532
        %550 = vmatprep.subr.bf16.mxu0 0
        %551 = vmatpush1.bf16.msra.mxu0 %v534
        %552 = vmatprep.subr.bf16.mxu0 0
        %553 = vmatpush1.bf16.msra.mxu0 %v535
        %554 = vmatprep.subr.bf16.mxu0 0
        %555 = vmatpush1.bf16.msra.mxu0 %v536
        %556 = vmatprep.subr.bf16.mxu0 0
        %557 = vmatpush1.bf16.msra.mxu0 %v537
        %558 = vmatprep.subr.bf16.mxu0 0
        %559 = vmatpush1.bf16.msra.mxu0 %v538
        %560 = vmatprep.subr.bf16.mxu0 0
        %561 = vmatpush1.bf16.msra.mxu0 %v539
        %562 = vmatprep.subr.bf16.mxu0 0
        %563 = vmatpush1.bf16.msra.mxu0 %v540
        %564 = vmatprep.subr.bf16.mxu0 0
        %565 = vmatpush1.bf16.msra.mxu0 %v541
        %566 = vmatprep.subr.bf16.mxu0 0
        %567 = vmatpush1.bf16.msra.mxu0 0
        %568 = vmatprep.subr.bf16.mxu0 0
        %569 = vmatpush1.bf16.msra.mxu0 0
        %570 = vmatprep.subr.bf16.mxu0 0
        %571 = vmatpush1.bf16.msra.mxu0 0
        %572 = vmatprep.subr.bf16.mxu0 0
        %573 = vmatpush1.bf16.msra.mxu0 0
        %574 = vmatprep.subr.bf16.mxu0 0
        %575 = vmatpush1.bf16.msra.mxu0 0
        %576 = vmatprep.subr.bf16.mxu0 0
        %577 = vmatpush1.bf16.msra.mxu0 0
        %578 = vmatprep.subr.bf16.mxu0 0
        %579 = vmatpush1.bf16.msra.mxu0 0
        %580 = vmatprep.subr.bf16.mxu0 0
        %581 = vmatpush1.bf16.msra.mxu0 0
        %582 = vmatprep.mubr.bf16.mxu0 0
        %583 = vmatmul.mubr.bf16.gmra.mrb[0].mxu0 %v486
        %v584 = vpop.f32.mrb[0].mxu0
        %v585 = vadd.f32 %v452, %v584
        %v586 = vpop.f32.mrb[0].mxu0
        %v587 = vpop.f32.mrb[0].mxu0
        %v588 = vadd.f32 %v452, %v587
        %v589 = vpop.f32.mrb[0].mxu0
        %590 = vmatprep.mubr.bf16.mxu0 0
        %591 = vmatmul.mubr.bf16.gmra.mrb[0].mxu0 %v487
        %v592 = vpop.f32.mrb[0].mxu0
        %v593 = vadd.f32 %v452, %v592
        %v594 = vpop.f32.mrb[0].mxu0
        %v595 = vpop.f32.mrb[0].mxu0
        %v596 = vadd.f32 %v452, %v595
        %v597 = vpop.f32.mrb[0].mxu0
        %598 = vmatprep.mubr.bf16.mxu0 0
        %599 = vmatmul.mubr.bf16.gmra.mrb[0].mxu0 %v488
        %v600 = vpop.f32.mrb[0].mxu0
        %v601 = vadd.f32 %v452, %v600
        %v602 = vpop.f32.mrb[0].mxu0
        %v603 = vpop.f32.mrb[0].mxu0
        %v604 = vadd.f32 %v452, %v603
        %v605 = vpop.f32.mrb[0].mxu0
        %606 = vmatprep.mubr.bf16.mxu0 0
        %607 = vmatmul.mubr.bf16.gmra.mrb[0].mxu0 %v489
        %v608 = vpop.f32.mrb[0].mxu0
        %v609 = vadd.f32 %v452, %v608
        %v610 = vpop.f32.mrb[0].mxu0
        %v611 = vpop.f32.mrb[0].mxu0
        %v612 = vadd.f32 %v452, %v611
        %v613 = vpop.f32.mrb[0].mxu0
        %614 = vmatprep.mubr.bf16.mxu0 0
        %615 = vmatmul.mubr.bf16.gmra.mrb[0].mxu0 %v490
        %v616 = vpop.f32.mrb[0].mxu0
        %v617 = vadd.f32 %v452, %v616
        %v618 = vpop.f32.mrb[0].mxu0
        %v619 = vpop.f32.mrb[0].mxu0
        %v620 = vadd.f32 %v452, %v619
        %v621 = vpop.f32.mrb[0].mxu0
        %622 = vmatprep.mubr.bf16.mxu0 0
        %623 = vmatmul.mubr.bf16.gmra.mrb[0].mxu0 %v491
        %v624 = vpop.f32.mrb[0].mxu0
        %v625 = vadd.f32 %v452, %v624
        %v626 = vpop.f32.mrb[0].mxu0
        %v627 = vpop.f32.mrb[0].mxu0
        %v628 = vadd.f32 %v452, %v627
        %v629 = vpop.f32.mrb[0].mxu0
        %630 = vmatprep.mubr.bf16.mxu0 0
        %631 = vmatmul.mubr.bf16.gmra.mrb[0].mxu0 %v492
        %v632 = vpop.f32.mrb[0].mxu0
        %v633 = vadd.f32 %v452, %v632
        %v634 = vpop.f32.mrb[0].mxu0
        %v635 = vpop.f32.mrb[0].mxu0
        %v636 = vadd.f32 %v452, %v635
        %v637 = vpop.f32.mrb[0].mxu0
        %638 = vmatprep.mubr.bf16.mxu0 0
        %639 = vmatmul.mubr.bf16.gmra.mrb[0].mxu0 %v493
        %v640 = vpop.f32.mrb[0].mxu0
        %v641 = vadd.f32 %v452, %v640
        %v642 = vpop.f32.mrb[0].mxu0
        %v643 = vpop.f32.mrb[0].mxu0
        %v644 = vadd.f32 %v452, %v643
        %v645 = vpop.f32.mrb[0].mxu0
        %646 = vdwg.mxu0
        %v647 = vmax.f32 %v585, 0.0
        %v648 = vmax.f32 %v588, 0.0
        %v649 = vmax.f32 %v593, 0.0
        %v650 = vmax.f32 %v596, 0.0
        %v651 = vmax.f32 %v601, 0.0
        %v652 = vmax.f32 %v604, 0.0
        %v653 = vmax.f32 %v609, 0.0
        %v654 = vmax.f32 %v612, 0.0
        %v655 = vmax.f32 %v617, 0.0
        %v656 = vmax.f32 %v620, 0.0
        %v657 = vmax.f32 %v625, 0.0
        %v658 = vmax.f32 %v628, 0.0
        %v659 = vmax.f32 %v633, 0.0
        %v660 = vmax.f32 %v636, 0.0
        %v661 = vmax.f32 %v641, 0.0
        %v662 = vmax.f32 %v644, 0.0
        %vm663 = vcmask 261120
        %664 = vst.msk [vmem:[#allocation3 + $0x18] sm:$0xff] %vm663, %v647
        %665 = vst.msk [vmem:[#allocation3 + $0x20] sm:$0xff] %vm663, %v648
        %666 = vst.msk [vmem:[#allocation3 + $0x28] sm:$0xff] %vm663, %v649
        %667 = vst.msk [vmem:[#allocation3 + $0x30] sm:$0xff] %vm663, %v650
        %668 = vst.msk [vmem:[#allocation3 + $0x38] sm:$0xff] %vm663, %v651
        %669 = vst.msk [vmem:[#allocation3 + $0x40] sm:$0xff] %vm663, %v652
        %670 = vst.msk [vmem:[#allocation3 + $0x48] sm:$0xff] %vm663, %v653
        %671 = vst.msk [vmem:[#allocation3 + $0x50] sm:$0xff] %vm663, %v654
        %672 = vst.msk [vmem:[#allocation3 + $0x58] sm:$0xff] %vm663, %v655
        %673 = vst.msk [vmem:[#allocation3 + $0x60] sm:$0xff] %vm663, %v656
        %674 = vst.msk [vmem:[#allocation3 + $0x68] sm:$0xff] %vm663, %v657
        %675 = vst.msk [vmem:[#allocation3 + $0x70] sm:$0xff] %vm663, %v658
        %676 = vst.msk [vmem:[#allocation3 + $0x78] sm:$0xff] %vm663, %v659
        %677 = vst.msk [vmem:[#allocation3 + $0x80] sm:$0xff] %vm663, %v660
        %678 = vst.msk [vmem:[#allocation3 + $0x88] sm:$0xff] %vm663, %v661
        %679 = vst.msk [vmem:[#allocation3 + $0x90] sm:$0xff] %vm663, %v662
        %680 = vst.msk [vmem:[#allocation3] sm:$0xff] %vm663, 0.0
        %681 = vst.msk [vmem:[#allocation3 + $0xa8] sm:$0xff] %vm663, 0.0
        %v682 = vlaneseq
        %v683 = vshrl.u32 %v682, 7
        %v684 = vadd.s32 %v683, 8
        %v685 = vadd.s32 %v683, 16
        %v686 = vadd.s32 %v683, 24
        %v687 = vadd.s32 %v683, 32
        %v688 = vadd.s32 %v683, 40
        %v689 = vadd.s32 %v683, 48
        %v690 = vadd.s32 %v683, 56
        %v691 = vadd.s32 %v683, 64
        %v692 = vadd.s32 %v683, 72
        %v693 = vadd.s32 %v683, 80
        %v694 = vadd.s32 %v683, 88
        %v695 = vadd.s32 %v683, 96
        %v696 = vadd.s32 %v683, 104
        %v697 = vadd.s32 %v683, 112
        %v698 = vadd.s32 %v683, 120
        %v699 = vadd.s32 %v683, 128
        %v700 = vadd.s32 %v683, 136
        %v701 = vadd.s32 %v683, 144
        %v702 = vadd.s32 %v683, 152
        %vm703 = vcmp.lt.s32.totalorder %v683, 0
        %v704 = vsub.s32 0, %v683
        %v705 = vsel %vm703, %v704, %v683
        %v706 = vshrl.u32 %v705, 4
        %v707 = vand.u32 %v705, 15
        %v708 = vsub.s32 0, %v707
        %v709 = vsel %vm703, %v708, %v707
        %vm710 = vcmp.lt.s32.totalorder %v684, 0
        %v711 = vsub.s32 0, %v684
        %v712 = vsel %vm710, %v711, %v684
        %v713 = vshrl.u32 %v712, 4
        %v714 = vand.u32 %v712, 15
        %v715 = vsub.s32 0, %v714
        %v716 = vsel %vm710, %v715, %v714
        %vm717 = vcmp.lt.s32.totalorder %v685, 0
        %v718 = vsub.s32 0, %v685
        %v719 = vsel %vm717, %v718, %v685
        %v720 = vshrl.u32 %v719, 4
        %v721 = vand.u32 %v719, 15
        %v722 = vsub.s32 0, %v721
        %v723 = vsel %vm717, %v722, %v721
        %vm724 = vcmp.lt.s32.totalorder %v686, 0
        %v725 = vsub.s32 0, %v686
        %v726 = vsel %vm724, %v725, %v686
        %v727 = vshrl.u32 %v726, 4
        %v728 = vand.u32 %v726, 15
        %v729 = vsub.s32 0, %v728
        %v730 = vsel %vm724, %v729, %v728
        %vm731 = vcmp.lt.s32.totalorder %v687, 0
        %v732 = vsub.s32 0, %v687
        %v733 = vsel %vm731, %v732, %v687
        %v734 = vshrl.u32 %v733, 4
        %v735 = vand.u32 %v733, 15
        %v736 = vsub.s32 0, %v735
        %v737 = vsel %vm731, %v736, %v735
        %vm738 = vcmp.lt.s32.totalorder %v688, 0
        %v739 = vsub.s32 0, %v688
        %v740 = vsel %vm738, %v739, %v688
        %v741 = vshrl.u32 %v740, 4
        %v742 = vand.u32 %v740, 15
        %v743 = vsub.s32 0, %v742
        %v744 = vsel %vm738, %v743, %v742
        %vm745 = vcmp.lt.s32.totalorder %v689, 0
        %v746 = vsub.s32 0, %v689
        %v747 = vsel %vm745, %v746, %v689
        %v748 = vshrl.u32 %v747, 4
        %v749 = vand.u32 %v747, 15
        %v750 = vsub.s32 0, %v749
        %v751 = vsel %vm745, %v750, %v749
        %vm752 = vcmp.lt.s32.totalorder %v690, 0
        %v753 = vsub.s32 0, %v690
        %v754 = vsel %vm752, %v753, %v690
        %v755 = vshrl.u32 %v754, 4
        %v756 = vand.u32 %v754, 15
        %v757 = vsub.s32 0, %v756
        %v758 = vsel %vm752, %v757, %v756
        %vm759 = vcmp.lt.s32.totalorder %v691, 0
        %v760 = vsub.s32 0, %v691
        %v761 = vsel %vm759, %v760, %v691
        %v762 = vshrl.u32 %v761, 4
        %v763 = vand.u32 %v761, 15
        %v764 = vsub.s32 0, %v763
        %v765 = vsel %vm759, %v764, %v763
        %vm766 = vcmp.lt.s32.totalorder %v692, 0
        %v767 = vsub.s32 0, %v692
        %v768 = vsel %vm766, %v767, %v692
        %v769 = vshrl.u32 %v768, 4
        %v770 = vand.u32 %v768, 15
        %v771 = vsub.s32 0, %v770
        %v772 = vsel %vm766, %v771, %v770
        %vm773 = vcmp.lt.s32.totalorder %v693, 0
        %v774 = vsub.s32 0, %v693
        %v775 = vsel %vm773, %v774, %v693
        %v776 = vshrl.u32 %v775, 4
        %v777 = vand.u32 %v775, 15
        %v778 = vsub.s32 0, %v777
        %v779 = vsel %vm773, %v778, %v777
        %vm780 = vcmp.lt.s32.totalorder %v694, 0
        %v781 = vsub.s32 0, %v694
        %v782 = vsel %vm780, %v781, %v694
        %v783 = vshrl.u32 %v782, 4
        %v784 = vand.u32 %v782, 15
        %v785 = vsub.s32 0, %v784
        %v786 = vsel %vm780, %v785, %v784
        %vm787 = vcmp.lt.s32.totalorder %v695, 0
        %v788 = vsub.s32 0, %v695
        %v789 = vsel %vm787, %v788, %v695
        %v790 = vshrl.u32 %v789, 4
        %v791 = vand.u32 %v789, 15
        %v792 = vsub.s32 0, %v791
        %v793 = vsel %vm787, %v792, %v791
        %vm794 = vcmp.lt.s32.totalorder %v696, 0
        %v795 = vsub.s32 0, %v696
        %v796 = vsel %vm794, %v795, %v696
        %v797 = vshrl.u32 %v796, 4
        %v798 = vand.u32 %v796, 15
        %v799 = vsub.s32 0, %v798
        %v800 = vsel %vm794, %v799, %v798
        %vm801 = vcmp.lt.s32.totalorder %v697, 0
        %v802 = vsub.s32 0, %v697
        %v803 = vsel %vm801, %v802, %v697
        %v804 = vshrl.u32 %v803, 4
        %v805 = vand.u32 %v803, 15
        %v806 = vsub.s32 0, %v805
        %v807 = vsel %vm801, %v806, %v805
        %vm808 = vcmp.lt.s32.totalorder %v698, 0
        %v809 = vsub.s32 0, %v698
        %v810 = vsel %vm808, %v809, %v698
        %v811 = vshrl.u32 %v810, 4
        %v812 = vand.u32 %v810, 15
        %v813 = vsub.s32 0, %v812
        %v814 = vsel %vm808, %v813, %v812
        %vm815 = vcmp.lt.s32.totalorder %v699, 0
        %v816 = vsub.s32 0, %v699
        %v817 = vsel %vm815, %v816, %v699
        %v818 = vshrl.u32 %v817, 4
        %v819 = vand.u32 %v817, 15
        %v820 = vsub.s32 0, %v819
        %v821 = vsel %vm815, %v820, %v819
        %vm822 = vcmp.lt.s32.totalorder %v700, 0
        %v823 = vsub.s32 0, %v700
        %v824 = vsel %vm822, %v823, %v700
        %v825 = vshrl.u32 %v824, 4
        %v826 = vand.u32 %v824, 15
        %v827 = vsub.s32 0, %v826
        %v828 = vsel %vm822, %v827, %v826
        %vm829 = vcmp.lt.s32.totalorder %v701, 0
        %v830 = vsub.s32 0, %v701
        %v831 = vsel %vm829, %v830, %v701
        %v832 = vshrl.u32 %v831, 4
        %v833 = vand.u32 %v831, 15
        %v834 = vsub.s32 0, %v833
        %v835 = vsel %vm829, %v834, %v833
        %vm836 = vcmp.lt.s32.totalorder %v702, 0
        %v837 = vsub.s32 0, %v702
        %v838 = vsel %vm836, %v837, %v702
        %v839 = vshrl.u32 %v838, 4
        %v840 = vand.u32 %v838, 15
        %v841 = vsub.s32 0, %v840
        %v842 = vsel %vm836, %v841, %v840
        %vm843 = vcmp.ne.s32.totalorder %v709, 0
        %vm844 = vcmp.ne.s32.totalorder %v716, 0
        %vm845 = vcmp.ne.s32.totalorder %v723, 0
        %vm846 = vcmp.ne.s32.totalorder %v730, 0
        %vm847 = vcmp.ne.s32.totalorder %v737, 0
        %vm848 = vcmp.ne.s32.totalorder %v744, 0
        %vm849 = vcmp.ne.s32.totalorder %v751, 0
        %vm850 = vcmp.ne.s32.totalorder %v758, 0
        %vm851 = vcmp.ne.s32.totalorder %v765, 0
        %vm852 = vcmp.ne.s32.totalorder %v772, 0
        %vm853 = vcmp.ne.s32.totalorder %v779, 0
        %vm854 = vcmp.ne.s32.totalorder %v786, 0
        %vm855 = vcmp.ne.s32.totalorder %v793, 0
        %vm856 = vcmp.ne.s32.totalorder %v800, 0
        %vm857 = vcmp.ne.s32.totalorder %v807, 0
        %vm858 = vcmp.ne.s32.totalorder %v814, 0
        %vm859 = vcmp.ne.s32.totalorder %v821, 0
        %vm860 = vcmp.ne.s32.totalorder %v828, 0
        %vm861 = vcmp.ne.s32.totalorder %v835, 0
        %vm862 = vcmp.ne.s32.totalorder %v842, 0
        %vm863 = vcmp.lt.s32.totalorder %v709, 0
        %vm864 = vcmp.lt.s32.totalorder %v716, 0
        %vm865 = vcmp.lt.s32.totalorder %v723, 0
        %vm866 = vcmp.lt.s32.totalorder %v730, 0
        %vm867 = vcmp.lt.s32.totalorder %v737, 0
        %vm868 = vcmp.lt.s32.totalorder %v744, 0
        %vm869 = vcmp.lt.s32.totalorder %v751, 0
        %vm870 = vcmp.lt.s32.totalorder %v758, 0
        %vm871 = vcmp.lt.s32.totalorder %v765, 0
        %vm872 = vcmp.lt.s32.totalorder %v772, 0
        %vm873 = vcmp.lt.s32.totalorder %v779, 0
        %vm874 = vcmp.lt.s32.totalorder %v786, 0
        %vm875 = vcmp.lt.s32.totalorder %v793, 0
        %vm876 = vcmp.lt.s32.totalorder %v800, 0
        %vm877 = vcmp.lt.s32.totalorder %v807, 0
        %vm878 = vcmp.lt.s32.totalorder %v814, 0
        %vm879 = vcmp.lt.s32.totalorder %v821, 0
        %vm880 = vcmp.lt.s32.totalorder %v828, 0
        %vm881 = vcmp.lt.s32.totalorder %v835, 0
        %vm882 = vcmp.lt.s32.totalorder %v842, 0
        %vm883 = vmand %vm863, %vm843
        %vm884 = vmand %vm864, %vm844
        %vm885 = vmand %vm865, %vm845
        %vm886 = vmand %vm866, %vm846
        %vm887 = vmand %vm867, %vm847
        %vm888 = vmand %vm868, %vm848
        %vm889 = vmand %vm869, %vm849
        %vm890 = vmand %vm870, %vm850
        %vm891 = vmand %vm871, %vm851
        %vm892 = vmand %vm872, %vm852
        %vm893 = vmand %vm873, %vm853
        %vm894 = vmand %vm874, %vm854
        %vm895 = vmand %vm875, %vm855
        %vm896 = vmand %vm876, %vm856
        %vm897 = vmand %vm877, %vm857
        %vm898 = vmand %vm878, %vm858
        %vm899 = vmand %vm879, %vm859
        %vm900 = vmand %vm880, %vm860
        %vm901 = vmand %vm881, %vm861
        %vm902 = vmand %vm882, %vm862
        %v903 = vadd.s32 %v709, 16
        %v904 = vadd.s32 %v716, 16
        %v905 = vadd.s32 %v723, 16
        %v906 = vadd.s32 %v730, 16
        %v907 = vadd.s32 %v737, 16
        %v908 = vadd.s32 %v744, 16
        %v909 = vadd.s32 %v751, 16
        %v910 = vadd.s32 %v758, 16
        %v911 = vadd.s32 %v765, 16
        %v912 = vadd.s32 %v772, 16
        %v913 = vadd.s32 %v779, 16
        %v914 = vadd.s32 %v786, 16
        %v915 = vadd.s32 %v793, 16
        %v916 = vadd.s32 %v800, 16
        %v917 = vadd.s32 %v807, 16
        %v918 = vadd.s32 %v814, 16
        %v919 = vadd.s32 %v821, 16
        %v920 = vadd.s32 %v828, 16
        %v921 = vadd.s32 %v835, 16
        %v922 = vadd.s32 %v842, 16
        %v923 = vsel %vm883, %v903, %v709
        %v924 = vsel %vm884, %v904, %v716
        %v925 = vsel %vm885, %v905, %v723
        %v926 = vsel %vm886, %v906, %v730
        %v927 = vsel %vm887, %v907, %v737
        %v928 = vsel %vm888, %v908, %v744
        %v929 = vsel %vm889, %v909, %v751
        %v930 = vsel %vm890, %v910, %v758
        %v931 = vsel %vm891, %v911, %v765
        %v932 = vsel %vm892, %v912, %v772
        %v933 = vsel %vm893, %v913, %v779
        %v934 = vsel %vm894, %v914, %v786
        %v935 = vsel %vm895, %v915, %v793
        %v936 = vsel %vm896, %v916, %v800
        %v937 = vsel %vm897, %v917, %v807
        %v938 = vsel %vm898, %v918, %v814
        %v939 = vsel %vm899, %v919, %v821
        %v940 = vsel %vm900, %v920, %v828
        %v941 = vsel %vm901, %v921, %v835
        %v942 = vsel %vm902, %v922, %v842
        %s943 = smul.u32 4, 1
        %s944 = smul.u32 %s943, 1
        %s945 = smul.u32 %s944, 2
        %s946 = smul.u32 %s945, 1
        %s947 = sshll.u32 %s946, 4
        %948 = dma.done [#allocation4], %s947
        %s949 = sshll.u32 %s946, 4
        %950 = dma.done %s372, %s949
        %v951 = vld [vmem:[#allocation2] sm:$0xff]
        %v952 = vld [vmem:[#allocation2 + $0x8] sm:$0xff]
        %v953 = vld [vmem:[%s2] sm:$0xf]
        %v954 = vld [vmem:[%s2 + $0x4] sm:$0xf]
        %v955 = vld [vmem:[%s2 + $0x8] sm:$0xf]
        %v956 = vld [vmem:[%s2 + $0xc] sm:$0xf]
        %v957 = vld [vmem:[%s2 + $0x10] sm:$0xf]
        %v958 = vld [vmem:[%s2 + $0x14] sm:$0xf]
        %v959 = vld [vmem:[%s2 + $0x18] sm:$0xf]
        %v960 = vld [vmem:[%s2 + $0x1c] sm:$0xf]
        %v961 = vld [vmem:[%s2 + $0x20] sm:$0xf]
        %v962 = vld [vmem:[%s2 + $0x24] sm:$0xf]
        %v963 = vld [vmem:[%s2 + $0x28] sm:$0xf]
        %v964 = vld [vmem:[%s2 + $0x2c] sm:$0xf]
        %v965 = vld [vmem:[%s2 + $0x30] sm:$0xf]
        %v966 = vld [vmem:[%s2 + $0x34] sm:$0xf]
        %v967 = vld [vmem:[%s2 + $0x38] sm:$0xf]
        %v968 = vld [vmem:[%s2 + $0x3c] sm:$0xf]
        %v969 = vld [vmem:[%s3] sm:$0x1]
        %v971 = vlaneseq
        %v972 = vshrl.u32 %v971, 7
        %v973 = vsub.s32 0, %v972
        %v974 = vrot.slane %v969, %v973
        %v992 = vunpack.c.l.b16 %v953
        %v993 = vunpack.c.l.b16 %v954
        %v994 = vunpack.c.l.b16 %v955
        %v995 = vunpack.c.l.b16 %v956
        %v996 = vunpack.c.l.b16 %v957
        %v997 = vunpack.c.l.b16 %v958
        %v998 = vunpack.c.l.b16 %v959
        %v999 = vunpack.c.l.b16 %v960
        %v1000 = vunpack.c.l.b16 %v961
        %v1001 = vunpack.c.l.b16 %v962
        %v1002 = vunpack.c.l.b16 %v963
        %v1003 = vunpack.c.l.b16 %v964
        %v1004 = vunpack.c.l.b16 %v965
        %v1005 = vunpack.c.l.b16 %v966
        %v1006 = vunpack.c.l.b16 %v967
        %v1007 = vunpack.c.l.b16 %v968
        %v1008 = vpack.c.b16 %v993, %v992
        %v1009 = vpack.c.b16 %v995, %v994
        %v1010 = vpack.c.b16 %v997, %v996
        %v1011 = vpack.c.b16 %v999, %v998
        %v1012 = vpack.c.b16 %v1001, %v1000
        %v1013 = vpack.c.b16 %v1003, %v1002
        %v1014 = vpack.c.b16 %v1005, %v1004
        %v1015 = vpack.c.b16 %v1007, %v1006
        %1024 = vmatprep.subr.bf16.mxu0 0
        %1025 = vmatpush1.bf16.msra.mxu0 %v1008
        %1026 = vmatprep.subr.bf16.mxu0 0
        %1027 = vmatpush1.bf16.msra.mxu0 %v1009
        %1028 = vmatprep.subr.bf16.mxu0 0
        %1029 = vmatpush1.bf16.msra.mxu0 %v1010
        %1030 = vmatprep.subr.bf16.mxu0 0
        %1031 = vmatpush1.bf16.msra.mxu0 %v1011
        %1032 = vmatprep.subr.bf16.mxu0 0
        %1033 = vmatpush1.bf16.msra.mxu0 %v1012
        %1034 = vmatprep.subr.bf16.mxu0 0
        %1035 = vmatpush1.bf16.msra.mxu0 %v1013
        %1036 = vmatprep.subr.bf16.mxu0 0
        %1037 = vmatpush1.bf16.msra.mxu0 %v1014
        %1038 = vmatprep.subr.bf16.mxu0 0
        %1039 = vmatpush1.bf16.msra.mxu0 %v1015
        %1040 = vmatprep.subr.bf16.mxu0 0
        %1041 = vmatpush1.bf16.msra.mxu0 0
        %1042 = vmatprep.subr.bf16.mxu0 0
        %1043 = vmatpush1.bf16.msra.mxu0 0
        %1044 = vmatprep.subr.bf16.mxu0 0
        %1045 = vmatpush1.bf16.msra.mxu0 0
        %1046 = vmatprep.subr.bf16.mxu0 0
        %1047 = vmatpush1.bf16.msra.mxu0 0
        %1048 = vmatprep.subr.bf16.mxu0 0
        %1049 = vmatpush1.bf16.msra.mxu0 0
        %1050 = vmatprep.subr.bf16.mxu0 0
        %1051 = vmatpush1.bf16.msra.mxu0 0
        %1052 = vmatprep.subr.bf16.mxu0 0
        %1053 = vmatpush1.bf16.msra.mxu0 0
        %1054 = vmatprep.subr.bf16.mxu0 0
        %1055 = vmatpush1.bf16.msra.mxu0 0
        %1056 = vmatprep.mubr.bf16.mxu0 0
        %1057 = vmatmul.mubr.bf16.gmra.mrb[0].mxu0 %v951
        %v1058 = vpop.f32.mrb[0].mxu0
        %v1059 = vadd.f32 %v974, %v1058
        %v1060 = vpop.f32.mrb[0].mxu0
        %v1061 = vpop.f32.mrb[0].mxu0
        %v1062 = vadd.f32 %v974, %v1061
        %v1063 = vpop.f32.mrb[0].mxu0
        %1064 = vmatprep.mubr.bf16.mxu0 0
        %1065 = vmatmul.mubr.bf16.gmra.mrb[0].mxu0 %v952
        %v1066 = vpop.f32.mrb[0].mxu0
        %v1067 = vadd.f32 %v974, %v1066
        %v1068 = vpop.f32.mrb[0].mxu0
        %v1069 = vpop.f32.mrb[0].mxu0
        %v1070 = vadd.f32 %v974, %v1069
        %v1071 = vpop.f32.mrb[0].mxu0
        %1072 = vdwg.mxu0
        %v1073 = vmax.f32 %v1059, 0.0
        %v1074 = vmax.f32 %v1062, 0.0
        %v1075 = vmax.f32 %v1067, 0.0
        %v1076 = vmax.f32 %v1070, 0.0
        %p1077 = scmp.gt.s32.totalorder %s27, 0
        %s1078 = scalar_select %p1077, 1, 0
        %v1079 = vstv %s1078
        %vm1080 = vcmp.eq.s32.totalorder %v1079, 1
        %v1081 = vsel %vm1080, %v1073, 0.0
        %v1082 = vsel %vm1080, %v1074, 0.0
        %1083 = vst.msk [vmem:[#allocation3 + $0x8] sm:$0xff] %vm663, %v1081
        %1084 = vst.msk [vmem:[#allocation3 + $0x10] sm:$0xff] %vm663, %v1082
        %p1085 = scmp.lt.s32.totalorder %s27, 1
        %s1086 = scalar_select %p1085, 1, 0
        %v1087 = vstv %s1086
        %vm1088 = vcmp.eq.s32.totalorder %v1087, 1
        %v1089 = vsel %vm1088, %v1075, 0.0
        %v1090 = vsel %vm1088, %v1076, 0.0
        %1091 = vst.msk [vmem:[#allocation3 + $0x98] sm:$0xff] %vm663, %v1089
        %1092 = vst.msk [vmem:[#allocation3 + $0xa0] sm:$0xff] %vm663, %v1090
        %v1093 = vld [vmem:[#allocation3 + $0x8] sm:$0xff]
        %v1094 = vld [vmem:[#allocation3 + $0x10] sm:$0xff]
        %v1095 = vld [vmem:[#allocation3 + $0x18] sm:$0xff]
        %v1096 = vld [vmem:[#allocation3 + $0x20] sm:$0xff]
        %v1097 = vld [vmem:[#allocation3 + $0x28] sm:$0xff]
        %v1098 = vld [vmem:[#allocation3 + $0x30] sm:$0xff]
        %v1099 = vld [vmem:[#allocation3 + $0x38] sm:$0xff]
        %v1100 = vld [vmem:[#allocation3 + $0x40] sm:$0xff]
        %v1101 = vld [vmem:[#allocation3 + $0x48] sm:$0xff]
        %v1102 = vld [vmem:[#allocation3 + $0x50] sm:$0xff]
        %v1103 = vld [vmem:[#allocation3 + $0x58] sm:$0xff]
        %v1104 = vld [vmem:[#allocation3 + $0x60] sm:$0xff]
        %v1105 = vld [vmem:[#allocation3 + $0x68] sm:$0xff]
        %v1106 = vld [vmem:[#allocation3 + $0x70] sm:$0xff]
        %v1107 = vld [vmem:[#allocation3 + $0x78] sm:$0xff]
        %v1108 = vld [vmem:[#allocation3 + $0x80] sm:$0xff]
        %v1109 = vld [vmem:[#allocation3 + $0x88] sm:$0xff]
        %v1110 = vld [vmem:[#allocation3 + $0x90] sm:$0xff]
        %v1111 = vld [vmem:[#allocation3 + $0x98] sm:$0xff]
        %v1112 = vld [vmem:[#allocation3 + $0xa0] sm:$0xff]
        %vm1113 = vcmp.eq.s32.totalorder %v923, 0
        %vm1114 = vcmp.eq.s32.totalorder %v924, 0
        %vm1115 = vcmp.eq.s32.totalorder %v925, 0
        %vm1116 = vcmp.eq.s32.totalorder %v926, 0
        %vm1117 = vcmp.eq.s32.totalorder %v927, 0
        %vm1118 = vcmp.eq.s32.totalorder %v928, 0
        %vm1119 = vcmp.eq.s32.totalorder %v929, 0
        %vm1120 = vcmp.eq.s32.totalorder %v930, 0
        %vm1121 = vcmp.eq.s32.totalorder %v931, 0
        %vm1122 = vcmp.eq.s32.totalorder %v932, 0
        %vm1123 = vcmp.eq.s32.totalorder %v933, 0
        %vm1124 = vcmp.eq.s32.totalorder %v934, 0
        %vm1125 = vcmp.eq.s32.totalorder %v935, 0
        %vm1126 = vcmp.eq.s32.totalorder %v936, 0
        %vm1127 = vcmp.eq.s32.totalorder %v937, 0
        %vm1128 = vcmp.eq.s32.totalorder %v938, 0
        %vm1129 = vcmp.eq.s32.totalorder %v939, 0
        %vm1130 = vcmp.eq.s32.totalorder %v940, 0
        %vm1131 = vcmp.eq.s32.totalorder %v941, 0
        %vm1132 = vcmp.eq.s32.totalorder %v942, 0
        %v1133 = vld [vmem:[#allocation3 + $0x7] sm:$0xff]
        %v1134 = vld [vmem:[#allocation3 + $0xf] sm:$0xff]
        %v1135 = vld [vmem:[#allocation3 + $0x17] sm:$0xff]
        %v1136 = vld [vmem:[#allocation3 + $0x1f] sm:$0xff]
        %v1137 = vld [vmem:[#allocation3 + $0x27] sm:$0xff]
        %v1138 = vld [vmem:[#allocation3 + $0x2f] sm:$0xff]
        %v1139 = vld [vmem:[#allocation3 + $0x37] sm:$0xff]
        %v1140 = vld [vmem:[#allocation3 + $0x3f] sm:$0xff]
        %v1141 = vld [vmem:[#allocation3 + $0x47] sm:$0xff]
        %v1142 = vld [vmem:[#allocation3 + $0x4f] sm:$0xff]
        %v1143 = vld [vmem:[#allocation3 + $0x57] sm:$0xff]
        %v1144 = vld [vmem:[#allocation3 + $0x5f] sm:$0xff]
        %v1145 = vld [vmem:[#allocation3 + $0x67] sm:$0xff]
        %v1146 = vld [vmem:[#allocation3 + $0x6f] sm:$0xff]
        %v1147 = vld [vmem:[#allocation3 + $0x77] sm:$0xff]
        %v1148 = vld [vmem:[#allocation3 + $0x7f] sm:$0xff]
        %v1149 = vld [vmem:[#allocation3 + $0x87] sm:$0xff]
        %v1150 = vld [vmem:[#allocation3 + $0x8f] sm:$0xff]
        %v1151 = vld [vmem:[#allocation3 + $0x97] sm:$0xff]
        %v1152 = vld [vmem:[#allocation3 + $0x9f] sm:$0xff]
        %v1153 = vsel %vm1113, 0.0, %v1133
        %v1154 = vsel %vm1114, 0.0, %v1134
        %v1155 = vsel %vm1115, 0.0, %v1135
        %v1156 = vsel %vm1116, 0.0, %v1136
        %v1157 = vsel %vm1117, 0.0, %v1137
        %v1158 = vsel %vm1118, 0.0, %v1138
        %v1159 = vsel %vm1119, 0.0, %v1139
        %v1160 = vsel %vm1120, 0.0, %v1140
        %v1161 = vsel %vm1121, 0.0, %v1141
        %v1162 = vsel %vm1122, 0.0, %v1142
        %v1163 = vsel %vm1123, 0.0, %v1143
        %v1164 = vsel %vm1124, 0.0, %v1144
        %v1165 = vsel %vm1125, 0.0, %v1145
        %v1166 = vsel %vm1126, 0.0, %v1146
        %v1167 = vsel %vm1127, 0.0, %v1147
        %v1168 = vsel %vm1128, 0.0, %v1148
        %v1169 = vsel %vm1129, 0.0, %v1149
        %v1170 = vsel %vm1130, 0.0, %v1150
        %v1171 = vsel %vm1131, 0.0, %v1151
        %v1172 = vsel %vm1132, 0.0, %v1152
        %vm1173 = vcmp.eq.s32.totalorder %v923, 15
        %vm1174 = vcmp.eq.s32.totalorder %v924, 15
        %vm1175 = vcmp.eq.s32.totalorder %v925, 15
        %vm1176 = vcmp.eq.s32.totalorder %v926, 15
        %vm1177 = vcmp.eq.s32.totalorder %v927, 15
        %vm1178 = vcmp.eq.s32.totalorder %v928, 15
        %vm1179 = vcmp.eq.s32.totalorder %v929, 15
        %vm1180 = vcmp.eq.s32.totalorder %v930, 15
        %vm1181 = vcmp.eq.s32.totalorder %v931, 15
        %vm1182 = vcmp.eq.s32.totalorder %v932, 15
        %vm1183 = vcmp.eq.s32.totalorder %v933, 15
        %vm1184 = vcmp.eq.s32.totalorder %v934, 15
        %vm1185 = vcmp.eq.s32.totalorder %v935, 15
        %vm1186 = vcmp.eq.s32.totalorder %v936, 15
        %vm1187 = vcmp.eq.s32.totalorder %v937, 15
        %vm1188 = vcmp.eq.s32.totalorder %v938, 15
        %vm1189 = vcmp.eq.s32.totalorder %v939, 15
        %vm1190 = vcmp.eq.s32.totalorder %v940, 15
        %vm1191 = vcmp.eq.s32.totalorder %v941, 15
        %vm1192 = vcmp.eq.s32.totalorder %v942, 15
        %v1193 = vld [vmem:[#allocation3 + $0x9] sm:$0xff]
        %v1194 = vld [vmem:[#allocation3 + $0x11] sm:$0xff]
        %v1195 = vld [vmem:[#allocation3 + $0x19] sm:$0xff]
        %v1196 = vld [vmem:[#allocation3 + $0x21] sm:$0xff]
        %v1197 = vld [vmem:[#allocation3 + $0x29] sm:$0xff]
        %v1198 = vld [vmem:[#allocation3 + $0x31] sm:$0xff]
        %v1199 = vld [vmem:[#allocation3 + $0x39] sm:$0xff]
        %v1200 = vld [vmem:[#allocation3 + $0x41] sm:$0xff]
        %v1201 = vld [vmem:[#allocation3 + $0x49] sm:$0xff]
        %v1202 = vld [vmem:[#allocation3 + $0x51] sm:$0xff]
        %v1203 = vld [vmem:[#allocation3 + $0x59] sm:$0xff]
        %v1204 = vld [vmem:[#allocation3 + $0x61] sm:$0xff]
        %v1205 = vld [vmem:[#allocation3 + $0x69] sm:$0xff]
        %v1206 = vld [vmem:[#allocation3 + $0x71] sm:$0xff]
        %v1207 = vld [vmem:[#allocation3 + $0x79] sm:$0xff]
        %v1208 = vld [vmem:[#allocation3 + $0x81] sm:$0xff]
        %v1209 = vld [vmem:[#allocation3 + $0x89] sm:$0xff]
        %v1210 = vld [vmem:[#allocation3 + $0x91] sm:$0xff]
        %v1211 = vld [vmem:[#allocation3 + $0x99] sm:$0xff]
        %v1212 = vld [vmem:[#allocation3 + $0xa1] sm:$0xff]
        %v1213 = vsel %vm1173, 0.0, %v1193
        %v1214 = vsel %vm1174, 0.0, %v1194
        %v1215 = vsel %vm1175, 0.0, %v1195
        %v1216 = vsel %vm1176, 0.0, %v1196
        %v1217 = vsel %vm1177, 0.0, %v1197
        %v1218 = vsel %vm1178, 0.0, %v1198
        %v1219 = vsel %vm1179, 0.0, %v1199
        %v1220 = vsel %vm1180, 0.0, %v1200
        %v1221 = vsel %vm1181, 0.0, %v1201
        %v1222 = vsel %vm1182, 0.0, %v1202
        %v1223 = vsel %vm1183, 0.0, %v1203
        %v1224 = vsel %vm1184, 0.0, %v1204
        %v1225 = vsel %vm1185, 0.0, %v1205
        %v1226 = vsel %vm1186, 0.0, %v1206
        %v1227 = vsel %vm1187, 0.0, %v1207
        %v1228 = vsel %vm1188, 0.0, %v1208
        %v1229 = vsel %vm1189, 0.0, %v1209
        %v1230 = vsel %vm1190, 0.0, %v1210
        %v1231 = vsel %vm1191, 0.0, %v1211
        %v1232 = vsel %vm1192, 0.0, %v1212
        %v1233 = vpack.c.bf16 %v1154, %v1153
        %v1234 = vpack.c.bf16 %v1156, %v1155
        %v1235 = vpack.c.bf16 %v1158, %v1157
        %v1236 = vpack.c.bf16 %v1160, %v1159
        %v1237 = vpack.c.bf16 %v1162, %v1161
        %v1238 = vpack.c.bf16 %v1164, %v1163
        %v1239 = vpack.c.bf16 %v1166, %v1165
        %v1240 = vpack.c.bf16 %v1168, %v1167
        %v1241 = vpack.c.bf16 %v1170, %v1169
        %v1242 = vpack.c.bf16 %v1172, %v1171
        %v1243 = vpack.c.bf16 %v1094, %v1093
        %v1244 = vpack.c.bf16 %v1096, %v1095
        %v1245 = vpack.c.bf16 %v1098, %v1097
        %v1246 = vpack.c.bf16 %v1100, %v1099
        %v1247 = vpack.c.bf16 %v1102, %v1101
        %v1248 = vpack.c.bf16 %v1104, %v1103
        %v1249 = vpack.c.bf16 %v1106, %v1105
        %v1250 = vpack.c.bf16 %v1108, %v1107
        %v1251 = vpack.c.bf16 %v1110, %v1109
        %v1252 = vpack.c.bf16 %v1112, %v1111
        %v1253 = vpack.c.bf16 %v1214, %v1213
        %v1254 = vpack.c.bf16 %v1216, %v1215
        %v1255 = vpack.c.bf16 %v1218, %v1217
        %v1256 = vpack.c.bf16 %v1220, %v1219
        %v1257 = vpack.c.bf16 %v1222, %v1221
        %v1258 = vpack.c.bf16 %v1224, %v1223
        %v1259 = vpack.c.bf16 %v1226, %v1225
        %v1260 = vpack.c.bf16 %v1228, %v1227
        %v1261 = vpack.c.bf16 %v1230, %v1229
        %v1262 = vpack.c.bf16 %v1232, %v1231
        %v1263 = vld [vmem:[%s4] sm:$0xf]
        %v1264 = vld [vmem:[%s4 + $0x4] sm:$0xf]
        %v1265 = vld [vmem:[%s4 + $0x8] sm:$0xf]
        %v1266 = vld [vmem:[%s4 + $0xc] sm:$0xf]
        %v1267 = vld [vmem:[%s4 + $0x10] sm:$0xf]
        %v1268 = vld [vmem:[%s4 + $0x14] sm:$0xf]
        %v1269 = vld [vmem:[%s4 + $0x18] sm:$0xf]
        %v1270 = vld [vmem:[%s4 + $0x1c] sm:$0xf]
        %v1271 = vld [vmem:[%s4 + $0x20] sm:$0xf]
        %v1272 = vld [vmem:[%s4 + $0x24] sm:$0xf]
        %v1273 = vld [vmem:[%s4 + $0x28] sm:$0xf]
        %v1274 = vld [vmem:[%s4 + $0x2c] sm:$0xf]
        %v1279 = vunpack.c.l.b16 %v1267
        %v1280 = vunpack.c.l.b16 %v1268
        %v1281 = vunpack.c.l.b16 %v1269
        %v1282 = vunpack.c.l.b16 %v1270
        %v1283 = vpack.c.b16 %v1280, %v1279
        %v1284 = vpack.c.b16 %v1282, %v1281
        %v1288 = vsel %vm663, %v1243, 0
        %v1291 = vsel %vm663, %v1244, 0
        %v1294 = vsel %vm663, %v1245, 0
        %v1297 = vsel %vm663, %v1246, 0
        %v1300 = vsel %vm663, %v1247, 0
        %v1303 = vsel %vm663, %v1248, 0
        %v1306 = vsel %vm663, %v1249, 0
        %v1309 = vsel %vm663, %v1250, 0
        %1311 = vmatprep.subr.bf16.mxu0 0
        %1312 = vmatpush1.bf16.msra.mxu0 %v1283
        %1313 = vmatprep.subr.bf16.mxu0 0
        %1314 = vmatpush1.bf16.msra.mxu0 %v1284
        %1315 = vmatprep.subr.bf16.mxu0 0
        %1316 = vmatpush1.bf16.msra.mxu0 0
        %1317 = vmatprep.subr.bf16.mxu0 0
        %1318 = vmatpush1.bf16.msra.mxu0 0
        %1319 = vmatprep.subr.bf16.mxu0 0
        %1320 = vmatpush1.bf16.msra.mxu0 0
        %1321 = vmatprep.subr.bf16.mxu0 0
        %1322 = vmatpush1.bf16.msra.mxu0 0
        %1323 = vmatprep.subr.bf16.mxu0 0
        %1324 = vmatpush1.bf16.msra.mxu0 0
        %1325 = vmatprep.subr.bf16.mxu0 0
        %1326 = vmatpush1.bf16.msra.mxu0 0
        %1327 = vmatprep.subr.bf16.mxu0 0
        %1328 = vmatpush1.bf16.msra.mxu0 0
        %1329 = vmatprep.subr.bf16.mxu0 0
        %1330 = vmatpush1.bf16.msra.mxu0 0
        %1331 = vmatprep.subr.bf16.mxu0 0
        %1332 = vmatpush1.bf16.msra.mxu0 0
        %1333 = vmatprep.subr.bf16.mxu0 0
        %1334 = vmatpush1.bf16.msra.mxu0 0
        %1335 = vmatprep.subr.bf16.mxu0 0
        %1336 = vmatpush1.bf16.msra.mxu0 0
        %1337 = vmatprep.subr.bf16.mxu0 0
        %1338 = vmatpush1.bf16.msra.mxu0 0
        %1339 = vmatprep.subr.bf16.mxu0 0
        %1340 = vmatpush1.bf16.msra.mxu0 0
        %1341 = vmatprep.subr.bf16.mxu0 0
        %1342 = vmatpush1.bf16.msra.mxu0 0
        %1343 = vmatprep.mubr.bf16.mxu0 0
        %1344 = vmatmul.mubr.bf16.gmra.mrb[0].mxu0 %v1288
        %v1345 = vpop.f32.mrb[0].mxu0
        %v1346 = vadd.f32 0.0, %v1345
        %v1347 = vpop.f32.mrb[0].mxu0
        %v1348 = vpop.f32.mrb[0].mxu0
        %v1349 = vadd.f32 0.0, %v1348
        %v1350 = vpop.f32.mrb[0].mxu0
        %1351 = vmatprep.mubr.bf16.mxu0 0
        %1352 = vmatmul.mubr.bf16.gmra.mrb[0].mxu0 %v1291
        %v1353 = vpop.f32.mrb[0].mxu0
        %v1354 = vadd.f32 0.0, %v1353
        %v1355 = vpop.f32.mrb[0].mxu0
        %v1356 = vpop.f32.mrb[0].mxu0
        %v1357 = vadd.f32 0.0, %v1356
        %v1358 = vpop.f32.mrb[0].mxu0
        %1359 = vmatprep.mubr.bf16.mxu0 0
        %1360 = vmatmul.mubr.bf16.gmra.mrb[0].mxu0 %v1294
        %v1361 = vpop.f32.mrb[0].mxu0
        %v1362 = vadd.f32 0.0, %v1361
        %v1363 = vpop.f32.mrb[0].mxu0
        %v1364 = vpop.f32.mrb[0].mxu0
        %v1365 = vadd.f32 0.0, %v1364
        %v1366 = vpop.f32.mrb[0].mxu0
        %1367 = vmatprep.mubr.bf16.mxu0 0
        %1368 = vmatmul.mubr.bf16.gmra.mrb[0].mxu0 %v1297
        %v1369 = vpop.f32.mrb[0].mxu0
        %v1370 = vadd.f32 0.0, %v1369
        %v1371 = vpop.f32.mrb[0].mxu0
        %v1372 = vpop.f32.mrb[0].mxu0
        %v1373 = vadd.f32 0.0, %v1372
        %v1374 = vpop.f32.mrb[0].mxu0
        %1375 = vmatprep.mubr.bf16.mxu0 0
        %1376 = vmatmul.mubr.bf16.gmra.mrb[0].mxu0 %v1300
        %v1377 = vpop.f32.mrb[0].mxu0
        %v1378 = vadd.f32 0.0, %v1377
        %v1379 = vpop.f32.mrb[0].mxu0
        %v1380 = vpop.f32.mrb[0].mxu0
        %v1381 = vadd.f32 0.0, %v1380
        %v1382 = vpop.f32.mrb[0].mxu0
        %1383 = vmatprep.mubr.bf16.mxu0 0
        %1384 = vmatmul.mubr.bf16.gmra.mrb[0].mxu0 %v1303
        %v1385 = vpop.f32.mrb[0].mxu0
        %v1386 = vadd.f32 0.0, %v1385
        %v1387 = vpop.f32.mrb[0].mxu0
        %v1388 = vpop.f32.mrb[0].mxu0
        %v1389 = vadd.f32 0.0, %v1388
        %v1390 = vpop.f32.mrb[0].mxu0
        %1391 = vmatprep.mubr.bf16.mxu0 0
        %1392 = vmatmul.mubr.bf16.gmra.mrb[0].mxu0 %v1306
        %v1393 = vpop.f32.mrb[0].mxu0
        %v1394 = vadd.f32 0.0, %v1393
        %v1395 = vpop.f32.mrb[0].mxu0
        %v1396 = vpop.f32.mrb[0].mxu0
        %v1397 = vadd.f32 0.0, %v1396
        %v1398 = vpop.f32.mrb[0].mxu0
        %1399 = vmatprep.mubr.bf16.mxu0 0
        %1400 = vmatmul.mubr.bf16.gmra.mrb[0].mxu0 %v1309
        %v1401 = vpop.f32.mrb[0].mxu0
        %v1402 = vadd.f32 0.0, %v1401
        %v1403 = vpop.f32.mrb[0].mxu0
        %v1404 = vpop.f32.mrb[0].mxu0
        %v1405 = vadd.f32 0.0, %v1404
        %v1406 = vpop.f32.mrb[0].mxu0
        %1407 = vdwg.mxu0
        %v1412 = vunpack.c.l.b16 %v1271
        %v1413 = vunpack.c.l.b16 %v1272
        %v1414 = vunpack.c.l.b16 %v1273
        %v1415 = vunpack.c.l.b16 %v1274
        %v1416 = vpack.c.b16 %v1413, %v1412
        %v1417 = vpack.c.b16 %v1415, %v1414
        %v1421 = vsel %vm663, %v1253, 0
        %v1424 = vsel %vm663, %v1254, 0
        %v1427 = vsel %vm663, %v1255, 0
        %v1430 = vsel %vm663, %v1256, 0
        %v1433 = vsel %vm663, %v1257, 0
        %v1436 = vsel %vm663, %v1258, 0
        %v1439 = vsel %vm663, %v1259, 0
        %v1442 = vsel %vm663, %v1260, 0
        %1444 = vmatprep.subr.bf16.mxu0 0
        %1445 = vmatpush1.bf16.msra.mxu0 %v1416
        %1446 = vmatprep.subr.bf16.mxu0 0
        %1447 = vmatpush1.bf16.msra.mxu0 %v1417
        %1448 = vmatprep.subr.bf16.mxu0 0
        %1449 = vmatpush1.bf16.msra.mxu0 0
        %1450 = vmatprep.subr.bf16.mxu0 0
        %1451 = vmatpush1.bf16.msra.mxu0 0
        %1452 = vmatprep.subr.bf16.mxu0 0
        %1453 = vmatpush1.bf16.msra.mxu0 0
        %1454 = vmatprep.subr.bf16.mxu0 0
        %1455 = vmatpush1.bf16.msra.mxu0 0
        %1456 = vmatprep.subr.bf16.mxu0 0
        %1457 = vmatpush1.bf16.msra.mxu0 0
        %1458 = vmatprep.subr.bf16.mxu0 0
        %1459 = vmatpush1.bf16.msra.mxu0 0
        %1460 = vmatprep.subr.bf16.mxu0 0
        %1461 = vmatpush1.bf16.msra.mxu0 0
        %1462 = vmatprep.subr.bf16.mxu0 0
        %1463 = vmatpush1.bf16.msra.mxu0 0
        %1464 = vmatprep.subr.bf16.mxu0 0
        %1465 = vmatpush1.bf16.msra.mxu0 0
        %1466 = vmatprep.subr.bf16.mxu0 0
        %1467 = vmatpush1.bf16.msra.mxu0 0
        %1468 = vmatprep.subr.bf16.mxu0 0
        %1469 = vmatpush1.bf16.msra.mxu0 0
        %1470 = vmatprep.subr.bf16.mxu0 0
        %1471 = vmatpush1.bf16.msra.mxu0 0
        %1472 = vmatprep.subr.bf16.mxu0 0
        %1473 = vmatpush1.bf16.msra.mxu0 0
        %1474 = vmatprep.subr.bf16.mxu0 0
        %1475 = vmatpush1.bf16.msra.mxu0 0
        %1476 = vmatprep.mubr.bf16.mxu0 0
        %1477 = vmatmul.mubr.bf16.gmra.mrb[0].mxu0 %v1421
        %v1478 = vpop.f32.mrb[0].mxu0
        %v1479 = vadd.f32 0.0, %v1478
        %v1480 = vpop.f32.mrb[0].mxu0
        %v1481 = vpop.f32.mrb[0].mxu0
        %v1482 = vadd.f32 0.0, %v1481
        %v1483 = vpop.f32.mrb[0].mxu0
        %1484 = vmatprep.mubr.bf16.mxu0 0
        %1485 = vmatmul.mubr.bf16.gmra.mrb[0].mxu0 %v1424
        %v1486 = vpop.f32.mrb[0].mxu0
        %v1487 = vadd.f32 0.0, %v1486
        %v1488 = vpop.f32.mrb[0].mxu0
        %v1489 = vpop.f32.mrb[0].mxu0
        %v1490 = vadd.f32 0.0, %v1489
        %v1491 = vpop.f32.mrb[0].mxu0
        %1492 = vmatprep.mubr.bf16.mxu0 0
        %1493 = vmatmul.mubr.bf16.gmra.mrb[0].mxu0 %v1427
        %v1494 = vpop.f32.mrb[0].mxu0
        %v1495 = vadd.f32 0.0, %v1494
        %v1496 = vpop.f32.mrb[0].mxu0
        %v1497 = vpop.f32.mrb[0].mxu0
        %v1498 = vadd.f32 0.0, %v1497
        %v1499 = vpop.f32.mrb[0].mxu0
        %1500 = vmatprep.mubr.bf16.mxu0 0
        %1501 = vmatmul.mubr.bf16.gmra.mrb[0].mxu0 %v1430
        %v1502 = vpop.f32.mrb[0].mxu0
        %v1503 = vadd.f32 0.0, %v1502
        %v1504 = vpop.f32.mrb[0].mxu0
        %v1505 = vpop.f32.mrb[0].mxu0
        %v1506 = vadd.f32 0.0, %v1505
        %v1507 = vpop.f32.mrb[0].mxu0
        %1508 = vmatprep.mubr.bf16.mxu0 0
        %1509 = vmatmul.mubr.bf16.gmra.mrb[0].mxu0 %v1433
        %v1510 = vpop.f32.mrb[0].mxu0
        %v1511 = vadd.f32 0.0, %v1510
        %v1512 = vpop.f32.mrb[0].mxu0
        %v1513 = vpop.f32.mrb[0].mxu0
        %v1514 = vadd.f32 0.0, %v1513
        %v1515 = vpop.f32.mrb[0].mxu0
        %1516 = vmatprep.mubr.bf16.mxu0 0
        %1517 = vmatmul.mubr.bf16.gmra.mrb[0].mxu0 %v1436
        %v1518 = vpop.f32.mrb[0].mxu0
        %v1519 = vadd.f32 0.0, %v1518
        %v1520 = vpop.f32.mrb[0].mxu0
        %v1521 = vpop.f32.mrb[0].mxu0
        %v1522 = vadd.f32 0.0, %v1521
        %v1523 = vpop.f32.mrb[0].mxu0
        %1524 = vmatprep.mubr.bf16.mxu0 0
        %1525 = vmatmul.mubr.bf16.gmra.mrb[0].mxu0 %v1439
        %v1526 = vpop.f32.mrb[0].mxu0
        %v1527 = vadd.f32 0.0, %v1526
        %v1528 = vpop.f32.mrb[0].mxu0
        %v1529 = vpop.f32.mrb[0].mxu0
        %v1530 = vadd.f32 0.0, %v1529
        %v1531 = vpop.f32.mrb[0].mxu0
        %1532 = vmatprep.mubr.bf16.mxu0 0
        %1533 = vmatmul.mubr.bf16.gmra.mrb[0].mxu0 %v1442
        %v1534 = vpop.f32.mrb[0].mxu0
        %v1535 = vadd.f32 0.0, %v1534
        %v1536 = vpop.f32.mrb[0].mxu0
        %v1537 = vpop.f32.mrb[0].mxu0
        %v1538 = vadd.f32 0.0, %v1537
        %v1539 = vpop.f32.mrb[0].mxu0
        %1540 = vdwg.mxu0
        %s1541 = scalar_lea.vmem %s4, 48
        %v1542 = vld [vmem:[%s1541] sm:$0xf]
        %v1543 = vld [vmem:[%s1541 + $0x4] sm:$0xf]
        %v1544 = vld [vmem:[%s1541 + $0x8] sm:$0xf]
        %v1545 = vld [vmem:[%s1541 + $0xc] sm:$0xf]
        %v1546 = vld [vmem:[%s1541 + $0x10] sm:$0xf]
        %v1547 = vld [vmem:[%s1541 + $0x14] sm:$0xf]
        %v1548 = vld [vmem:[%s1541 + $0x18] sm:$0xf]
        %v1549 = vld [vmem:[%s1541 + $0x1c] sm:$0xf]
        %v1550 = vld [vmem:[%s1541 + $0x20] sm:$0xf]
        %v1551 = vld [vmem:[%s1541 + $0x24] sm:$0xf]
        %v1552 = vld [vmem:[%s1541 + $0x28] sm:$0xf]
        %v1553 = vld [vmem:[%s1541 + $0x2c] sm:$0xf]
        %v1558 = vunpack.c.l.b16 %v1542
        %v1559 = vunpack.c.l.b16 %v1543
        %v1560 = vunpack.c.l.b16 %v1544
        %v1561 = vunpack.c.l.b16 %v1545
        %v1562 = vpack.c.b16 %v1559, %v1558
        %v1563 = vpack.c.b16 %v1561, %v1560
        %v1567 = vsel %vm663, %v1234, 0
        %v1570 = vsel %vm663, %v1235, 0
        %v1573 = vsel %vm663, %v1236, 0
        %v1576 = vsel %vm663, %v1237, 0
        %v1579 = vsel %vm663, %v1238, 0
        %v1582 = vsel %vm663, %v1239, 0
        %v1585 = vsel %vm663, %v1240, 0
        %v1588 = vsel %vm663, %v1241, 0
        %1590 = vmatprep.subr.bf16.mxu0 0
        %1591 = vmatpush1.bf16.msra.mxu0 %v1562
        %1592 = vmatprep.subr.bf16.mxu0 0
        %1593 = vmatpush1.bf16.msra.mxu0 %v1563
        %1594 = vmatprep.subr.bf16.mxu0 0
        %1595 = vmatpush1.bf16.msra.mxu0 0
        %1596 = vmatprep.subr.bf16.mxu0 0
        %1597 = vmatpush1.bf16.msra.mxu0 0
        %1598 = vmatprep.subr.bf16.mxu0 0
        %1599 = vmatpush1.bf16.msra.mxu0 0
        %1600 = vmatprep.subr.bf16.mxu0 0
        %1601 = vmatpush1.bf16.msra.mxu0 0
        %1602 = vmatprep.subr.bf16.mxu0 0
        %1603 = vmatpush1.bf16.msra.mxu0 0
        %1604 = vmatprep.subr.bf16.mxu0 0
        %1605 = vmatpush1.bf16.msra.mxu0 0
        %1606 = vmatprep.subr.bf16.mxu0 0
        %1607 = vmatpush1.bf16.msra.mxu0 0
        %1608 = vmatprep.subr.bf16.mxu0 0
        %1609 = vmatpush1.bf16.msra.mxu0 0
        %1610 = vmatprep.subr.bf16.mxu0 0
        %1611 = vmatpush1.bf16.msra.mxu0 0
        %1612 = vmatprep.subr.bf16.mxu0 0
        %1613 = vmatpush1.bf16.msra.mxu0 0
        %1614 = vmatprep.subr.bf16.mxu0 0
        %1615 = vmatpush1.bf16.msra.mxu0 0
        %1616 = vmatprep.subr.bf16.mxu0 0
        %1617 = vmatpush1.bf16.msra.mxu0 0
        %1618 = vmatprep.subr.bf16.mxu0 0
        %1619 = vmatpush1.bf16.msra.mxu0 0
        %1620 = vmatprep.subr.bf16.mxu0 0
        %1621 = vmatpush1.bf16.msra.mxu0 0
        %1622 = vmatprep.mubr.bf16.mxu0 0
        %1623 = vmatmul.mubr.bf16.gmra.mrb[0].mxu0 %v1567
        %v1624 = vpop.f32.mrb[0].mxu0
        %v1625 = vadd.f32 0.0, %v1624
        %v1626 = vpop.f32.mrb[0].mxu0
        %v1627 = vpop.f32.mrb[0].mxu0
        %v1628 = vadd.f32 0.0, %v1627
        %v1629 = vpop.f32.mrb[0].mxu0
        %1630 = vmatprep.mubr.bf16.mxu0 0
        %1631 = vmatmul.mubr.bf16.gmra.mrb[0].mxu0 %v1570
        %v1632 = vpop.f32.mrb[0].mxu0
        %v1633 = vadd.f32 0.0, %v1632
        %v1634 = vpop.f32.mrb[0].mxu0
        %v1635 = vpop.f32.mrb[0].mxu0
        %v1636 = vadd.f32 0.0, %v1635
        %v1637 = vpop.f32.mrb[0].mxu0
        %1638 = vmatprep.mubr.bf16.mxu0 0
        %1639 = vmatmul.mubr.bf16.gmra.mrb[0].mxu0 %v1573
        %v1640 = vpop.f32.mrb[0].mxu0
        %v1641 = vadd.f32 0.0, %v1640
        %v1642 = vpop.f32.mrb[0].mxu0
        %v1643 = vpop.f32.mrb[0].mxu0
        %v1644 = vadd.f32 0.0, %v1643
        %v1645 = vpop.f32.mrb[0].mxu0
        %1646 = vmatprep.mubr.bf16.mxu0 0
        %1647 = vmatmul.mubr.bf16.gmra.mrb[0].mxu0 %v1576
        %v1648 = vpop.f32.mrb[0].mxu0
        %v1649 = vadd.f32 0.0, %v1648
        %v1650 = vpop.f32.mrb[0].mxu0
        %v1651 = vpop.f32.mrb[0].mxu0
        %v1652 = vadd.f32 0.0, %v1651
        %v1653 = vpop.f32.mrb[0].mxu0
        %1654 = vmatprep.mubr.bf16.mxu0 0
        %1655 = vmatmul.mubr.bf16.gmra.mrb[0].mxu0 %v1579
        %v1656 = vpop.f32.mrb[0].mxu0
        %v1657 = vadd.f32 0.0, %v1656
        %v1658 = vpop.f32.mrb[0].mxu0
        %v1659 = vpop.f32.mrb[0].mxu0
        %v1660 = vadd.f32 0.0, %v1659
        %v1661 = vpop.f32.mrb[0].mxu0
        %1662 = vmatprep.mubr.bf16.mxu0 0
        %1663 = vmatmul.mubr.bf16.gmra.mrb[0].mxu0 %v1582
        %v1664 = vpop.f32.mrb[0].mxu0
        %v1665 = vadd.f32 0.0, %v1664
        %v1666 = vpop.f32.mrb[0].mxu0
        %v1667 = vpop.f32.mrb[0].mxu0
        %v1668 = vadd.f32 0.0, %v1667
        %v1669 = vpop.f32.mrb[0].mxu0
        %1670 = vmatprep.mubr.bf16.mxu0 0
        %1671 = vmatmul.mubr.bf16.gmra.mrb[0].mxu0 %v1585
        %v1672 = vpop.f32.mrb[0].mxu0
        %v1673 = vadd.f32 0.0, %v1672
        %v1674 = vpop.f32.mrb[0].mxu0
        %v1675 = vpop.f32.mrb[0].mxu0
        %v1676 = vadd.f32 0.0, %v1675
        %v1677 = vpop.f32.mrb[0].mxu0
        %1678 = vmatprep.mubr.bf16.mxu0 0
        %1679 = vmatmul.mubr.bf16.gmra.mrb[0].mxu0 %v1588
        %v1680 = vpop.f32.mrb[0].mxu0
        %v1681 = vadd.f32 0.0, %v1680
        %v1682 = vpop.f32.mrb[0].mxu0
        %v1683 = vpop.f32.mrb[0].mxu0
        %v1684 = vadd.f32 0.0, %v1683
        %v1685 = vpop.f32.mrb[0].mxu0
        %1686 = vdwg.mxu0
        %v1691 = vunpack.c.l.b16 %v1546
        %v1692 = vunpack.c.l.b16 %v1547
        %v1693 = vunpack.c.l.b16 %v1548
        %v1694 = vunpack.c.l.b16 %v1549
        %v1695 = vpack.c.b16 %v1692, %v1691
        %v1696 = vpack.c.b16 %v1694, %v1693
        %v1700 = vsel %vm663, %v1251, 0
        %1702 = vmatprep.subr.bf16.mxu0 0
        %1703 = vmatpush1.bf16.msra.mxu0 %v1695
        %1704 = vmatprep.subr.bf16.mxu0 0
        %1705 = vmatpush1.bf16.msra.mxu0 %v1696
        %1706 = vmatprep.subr.bf16.mxu0 0
        %1707 = vmatpush1.bf16.msra.mxu0 0
        %1708 = vmatprep.subr.bf16.mxu0 0
        %1709 = vmatpush1.bf16.msra.mxu0 0
        %1710 = vmatprep.subr.bf16.mxu0 0
        %1711 = vmatpush1.bf16.msra.mxu0 0
        %1712 = vmatprep.subr.bf16.mxu0 0
        %1713 = vmatpush1.bf16.msra.mxu0 0
        %1714 = vmatprep.subr.bf16.mxu0 0
        %1715 = vmatpush1.bf16.msra.mxu0 0
        %1716 = vmatprep.subr.bf16.mxu0 0
        %1717 = vmatpush1.bf16.msra.mxu0 0
        %1718 = vmatprep.subr.bf16.mxu0 0
        %1719 = vmatpush1.bf16.msra.mxu0 0
        %1720 = vmatprep.subr.bf16.mxu0 0
        %1721 = vmatpush1.bf16.msra.mxu0 0
        %1722 = vmatprep.subr.bf16.mxu0 0
        %1723 = vmatpush1.bf16.msra.mxu0 0
        %1724 = vmatprep.subr.bf16.mxu0 0
        %1725 = vmatpush1.bf16.msra.mxu0 0
        %1726 = vmatprep.subr.bf16.mxu0 0
        %1727 = vmatpush1.bf16.msra.mxu0 0
        %1728 = vmatprep.subr.bf16.mxu0 0
        %1729 = vmatpush1.bf16.msra.mxu0 0
        %1730 = vmatprep.subr.bf16.mxu0 0
        %1731 = vmatpush1.bf16.msra.mxu0 0
        %1732 = vmatprep.subr.bf16.mxu0 0
        %1733 = vmatpush1.bf16.msra.mxu0 0
        %1734 = vmatprep.mubr.bf16.mxu0 0
        %1735 = vmatmul.mubr.bf16.gmra.mrb[0].mxu0 %v1291
        %v1736 = vpop.f32.mrb[0].mxu0
        %v1737 = vadd.f32 0.0, %v1736
        %v1738 = vpop.f32.mrb[0].mxu0
        %v1739 = vpop.f32.mrb[0].mxu0
        %v1740 = vadd.f32 0.0, %v1739
        %v1741 = vpop.f32.mrb[0].mxu0
        %1742 = vmatprep.mubr.bf16.mxu0 0
        %1743 = vmatmul.mubr.bf16.gmra.mrb[0].mxu0 %v1294
        %v1744 = vpop.f32.mrb[0].mxu0
        %v1745 = vadd.f32 0.0, %v1744
        %v1746 = vpop.f32.mrb[0].mxu0
        %v1747 = vpop.f32.mrb[0].mxu0
        %v1748 = vadd.f32 0.0, %v1747
        %v1749 = vpop.f32.mrb[0].mxu0
        %1750 = vmatprep.mubr.bf16.mxu0 0
        %1751 = vmatmul.mubr.bf16.gmra.mrb[0].mxu0 %v1297
        %v1752 = vpop.f32.mrb[0].mxu0
        %v1753 = vadd.f32 0.0, %v1752
        %v1754 = vpop.f32.mrb[0].mxu0
        %v1755 = vpop.f32.mrb[0].mxu0
        %v1756 = vadd.f32 0.0, %v1755
        %v1757 = vpop.f32.mrb[0].mxu0
        %1758 = vmatprep.mubr.bf16.mxu0 0
        %1759 = vmatmul.mubr.bf16.gmra.mrb[0].mxu0 %v1300
        %v1760 = vpop.f32.mrb[0].mxu0
        %v1761 = vadd.f32 0.0, %v1760
        %v1762 = vpop.f32.mrb[0].mxu0
        %v1763 = vpop.f32.mrb[0].mxu0
        %v1764 = vadd.f32 0.0, %v1763
        %v1765 = vpop.f32.mrb[0].mxu0
        %1766 = vmatprep.mubr.bf16.mxu0 0
        %1767 = vmatmul.mubr.bf16.gmra.mrb[0].mxu0 %v1303
        %v1768 = vpop.f32.mrb[0].mxu0
        %v1769 = vadd.f32 0.0, %v1768
        %v1770 = vpop.f32.mrb[0].mxu0
        %v1771 = vpop.f32.mrb[0].mxu0
        %v1772 = vadd.f32 0.0, %v1771
        %v1773 = vpop.f32.mrb[0].mxu0
        %1774 = vmatprep.mubr.bf16.mxu0 0
        %1775 = vmatmul.mubr.bf16.gmra.mrb[0].mxu0 %v1306
        %v1776 = vpop.f32.mrb[0].mxu0
        %v1777 = vadd.f32 0.0, %v1776
        %v1778 = vpop.f32.mrb[0].mxu0
        %v1779 = vpop.f32.mrb[0].mxu0
        %v1780 = vadd.f32 0.0, %v1779
        %v1781 = vpop.f32.mrb[0].mxu0
        %1782 = vmatprep.mubr.bf16.mxu0 0
        %1783 = vmatmul.mubr.bf16.gmra.mrb[0].mxu0 %v1309
        %v1784 = vpop.f32.mrb[0].mxu0
        %v1785 = vadd.f32 0.0, %v1784
        %v1786 = vpop.f32.mrb[0].mxu0
        %v1787 = vpop.f32.mrb[0].mxu0
        %v1788 = vadd.f32 0.0, %v1787
        %v1789 = vpop.f32.mrb[0].mxu0
        %1790 = vmatprep.mubr.bf16.mxu0 0
        %1791 = vmatmul.mubr.bf16.gmra.mrb[0].mxu0 %v1700
        %v1792 = vpop.f32.mrb[0].mxu0
        %v1793 = vadd.f32 0.0, %v1792
        %v1794 = vpop.f32.mrb[0].mxu0
        %v1795 = vpop.f32.mrb[0].mxu0
        %v1796 = vadd.f32 0.0, %v1795
        %v1797 = vpop.f32.mrb[0].mxu0
        %1798 = vdwg.mxu0
        %v1803 = vunpack.c.l.b16 %v1550
        %v1804 = vunpack.c.l.b16 %v1551
        %v1805 = vunpack.c.l.b16 %v1552
        %v1806 = vunpack.c.l.b16 %v1553
        %v1807 = vpack.c.b16 %v1804, %v1803
        %v1808 = vpack.c.b16 %v1806, %v1805
        %v1812 = vsel %vm663, %v1261, 0
        %1814 = vmatprep.subr.bf16.mxu0 0
        %1815 = vmatpush1.bf16.msra.mxu0 %v1807
        %1816 = vmatprep.subr.bf16.mxu0 0
        %1817 = vmatpush1.bf16.msra.mxu0 %v1808
        %1818 = vmatprep.subr.bf16.mxu0 0
        %1819 = vmatpush1.bf16.msra.mxu0 0
        %1820 = vmatprep.subr.bf16.mxu0 0
        %1821 = vmatpush1.bf16.msra.mxu0 0
        %1822 = vmatprep.subr.bf16.mxu0 0
        %1823 = vmatpush1.bf16.msra.mxu0 0
        %1824 = vmatprep.subr.bf16.mxu0 0
        %1825 = vmatpush1.bf16.msra.mxu0 0
        %1826 = vmatprep.subr.bf16.mxu0 0
        %1827 = vmatpush1.bf16.msra.mxu0 0
        %1828 = vmatprep.subr.bf16.mxu0 0
        %1829 = vmatpush1.bf16.msra.mxu0 0
        %1830 = vmatprep.subr.bf16.mxu0 0
        %1831 = vmatpush1.bf16.msra.mxu0 0
        %1832 = vmatprep.subr.bf16.mxu0 0
        %1833 = vmatpush1.bf16.msra.mxu0 0
        %1834 = vmatprep.subr.bf16.mxu0 0
        %1835 = vmatpush1.bf16.msra.mxu0 0
        %1836 = vmatprep.subr.bf16.mxu0 0
        %1837 = vmatpush1.bf16.msra.mxu0 0
        %1838 = vmatprep.subr.bf16.mxu0 0
        %1839 = vmatpush1.bf16.msra.mxu0 0
        %1840 = vmatprep.subr.bf16.mxu0 0
        %1841 = vmatpush1.bf16.msra.mxu0 0
        %1842 = vmatprep.subr.bf16.mxu0 0
        %1843 = vmatpush1.bf16.msra.mxu0 0
        %1844 = vmatprep.subr.bf16.mxu0 0
        %1845 = vmatpush1.bf16.msra.mxu0 0
        %1846 = vmatprep.mubr.bf16.mxu0 0
        %1847 = vmatmul.mubr.bf16.gmra.mrb[0].mxu0 %v1424
        %v1848 = vpop.f32.mrb[0].mxu0
        %v1849 = vadd.f32 0.0, %v1848
        %v1850 = vpop.f32.mrb[0].mxu0
        %v1851 = vpop.f32.mrb[0].mxu0
        %v1852 = vadd.f32 0.0, %v1851
        %v1853 = vpop.f32.mrb[0].mxu0
        %1854 = vmatprep.mubr.bf16.mxu0 0
        %1855 = vmatmul.mubr.bf16.gmra.mrb[0].mxu0 %v1427
        %v1856 = vpop.f32.mrb[0].mxu0
        %v1857 = vadd.f32 0.0, %v1856
        %v1858 = vpop.f32.mrb[0].mxu0
        %v1859 = vpop.f32.mrb[0].mxu0
        %v1860 = vadd.f32 0.0, %v1859
        %v1861 = vpop.f32.mrb[0].mxu0
        %1862 = vmatprep.mubr.bf16.mxu0 0
        %1863 = vmatmul.mubr.bf16.gmra.mrb[0].mxu0 %v1430
        %v1864 = vpop.f32.mrb[0].mxu0
        %v1865 = vadd.f32 0.0, %v1864
        %v1866 = vpop.f32.mrb[0].mxu0
        %v1867 = vpop.f32.mrb[0].mxu0
        %v1868 = vadd.f32 0.0, %v1867
        %v1869 = vpop.f32.mrb[0].mxu0
        %1870 = vmatprep.mubr.bf16.mxu0 0
        %1871 = vmatmul.mubr.bf16.gmra.mrb[0].mxu0 %v1433
        %v1872 = vpop.f32.mrb[0].mxu0
        %v1873 = vadd.f32 0.0, %v1872
        %v1874 = vpop.f32.mrb[0].mxu0
        %v1875 = vpop.f32.mrb[0].mxu0
        %v1876 = vadd.f32 0.0, %v1875
        %v1877 = vpop.f32.mrb[0].mxu0
        %1878 = vmatprep.mubr.bf16.mxu0 0
        %1879 = vmatmul.mubr.bf16.gmra.mrb[0].mxu0 %v1436
        %v1880 = vpop.f32.mrb[0].mxu0
        %v1881 = vadd.f32 0.0, %v1880
        %v1882 = vpop.f32.mrb[0].mxu0
        %v1883 = vpop.f32.mrb[0].mxu0
        %v1884 = vadd.f32 0.0, %v1883
        %v1885 = vpop.f32.mrb[0].mxu0
        %1886 = vmatprep.mubr.bf16.mxu0 0
        %1887 = vmatmul.mubr.bf16.gmra.mrb[0].mxu0 %v1439
        %v1888 = vpop.f32.mrb[0].mxu0
        %v1889 = vadd.f32 0.0, %v1888
        %v1890 = vpop.f32.mrb[0].mxu0
        %v1891 = vpop.f32.mrb[0].mxu0
        %v1892 = vadd.f32 0.0, %v1891
        %v1893 = vpop.f32.mrb[0].mxu0
        %1894 = vmatprep.mubr.bf16.mxu0 0
        %1895 = vmatmul.mubr.bf16.gmra.mrb[0].mxu0 %v1442
        %v1896 = vpop.f32.mrb[0].mxu0
        %v1897 = vadd.f32 0.0, %v1896
        %v1898 = vpop.f32.mrb[0].mxu0
        %v1899 = vpop.f32.mrb[0].mxu0
        %v1900 = vadd.f32 0.0, %v1899
        %v1901 = vpop.f32.mrb[0].mxu0
        %1902 = vmatprep.mubr.bf16.mxu0 0
        %1903 = vmatmul.mubr.bf16.gmra.mrb[0].mxu0 %v1812
        %v1904 = vpop.f32.mrb[0].mxu0
        %v1905 = vadd.f32 0.0, %v1904
        %v1906 = vpop.f32.mrb[0].mxu0
        %v1907 = vpop.f32.mrb[0].mxu0
        %v1908 = vadd.f32 0.0, %v1907
        %v1909 = vpop.f32.mrb[0].mxu0
        %1910 = vdwg.mxu0
        %s1911 = scalar_lea.vmem %s4, 96
        %v1912 = vld [vmem:[%s1911] sm:$0xf]
        %v1913 = vld [vmem:[%s1911 + $0x4] sm:$0xf]
        %v1914 = vld [vmem:[%s1911 + $0x8] sm:$0xf]
        %v1915 = vld [vmem:[%s1911 + $0xc] sm:$0xf]
        %v1916 = vld [vmem:[%s1911 + $0x10] sm:$0xf]
        %v1917 = vld [vmem:[%s1911 + $0x14] sm:$0xf]
        %v1918 = vld [vmem:[%s1911 + $0x18] sm:$0xf]
        %v1919 = vld [vmem:[%s1911 + $0x1c] sm:$0xf]
        %v1920 = vld [vmem:[%s1911 + $0x20] sm:$0xf]
        %v1921 = vld [vmem:[%s1911 + $0x24] sm:$0xf]
        %v1922 = vld [vmem:[%s1911 + $0x28] sm:$0xf]
        %v1923 = vld [vmem:[%s1911 + $0x2c] sm:$0xf]
        %v1928 = vunpack.c.l.b16 %v1912
        %v1929 = vunpack.c.l.b16 %v1913
        %v1930 = vunpack.c.l.b16 %v1914
        %v1931 = vunpack.c.l.b16 %v1915
        %v1932 = vpack.c.b16 %v1929, %v1928
        %v1933 = vpack.c.b16 %v1931, %v1930
        %v1937 = vsel %vm663, %v1242, 0
        %1939 = vmatprep.subr.bf16.mxu0 0
        %1940 = vmatpush1.bf16.msra.mxu0 %v1932
        %1941 = vmatprep.subr.bf16.mxu0 0
        %1942 = vmatpush1.bf16.msra.mxu0 %v1933
        %1943 = vmatprep.subr.bf16.mxu0 0
        %1944 = vmatpush1.bf16.msra.mxu0 0
        %1945 = vmatprep.subr.bf16.mxu0 0
        %1946 = vmatpush1.bf16.msra.mxu0 0
        %1947 = vmatprep.subr.bf16.mxu0 0
        %1948 = vmatpush1.bf16.msra.mxu0 0
        %1949 = vmatprep.subr.bf16.mxu0 0
        %1950 = vmatpush1.bf16.msra.mxu0 0
        %1951 = vmatprep.subr.bf16.mxu0 0
        %1952 = vmatpush1.bf16.msra.mxu0 0
        %1953 = vmatprep.subr.bf16.mxu0 0
        %1954 = vmatpush1.bf16.msra.mxu0 0
        %1955 = vmatprep.subr.bf16.mxu0 0
        %1956 = vmatpush1.bf16.msra.mxu0 0
        %1957 = vmatprep.subr.bf16.mxu0 0
        %1958 = vmatpush1.bf16.msra.mxu0 0
        %1959 = vmatprep.subr.bf16.mxu0 0
        %1960 = vmatpush1.bf16.msra.mxu0 0
        %1961 = vmatprep.subr.bf16.mxu0 0
        %1962 = vmatpush1.bf16.msra.mxu0 0
        %1963 = vmatprep.subr.bf16.mxu0 0
        %1964 = vmatpush1.bf16.msra.mxu0 0
        %1965 = vmatprep.subr.bf16.mxu0 0
        %1966 = vmatpush1.bf16.msra.mxu0 0
        %1967 = vmatprep.subr.bf16.mxu0 0
        %1968 = vmatpush1.bf16.msra.mxu0 0
        %1969 = vmatprep.subr.bf16.mxu0 0
        %1970 = vmatpush1.bf16.msra.mxu0 0
        %1971 = vmatprep.mubr.bf16.mxu0 0
        %1972 = vmatmul.mubr.bf16.gmra.mrb[0].mxu0 %v1570
        %v1973 = vpop.f32.mrb[0].mxu0
        %v1974 = vadd.f32 0.0, %v1973
        %v1975 = vpop.f32.mrb[0].mxu0
        %v1976 = vpop.f32.mrb[0].mxu0
        %v1977 = vadd.f32 0.0, %v1976
        %v1978 = vpop.f32.mrb[0].mxu0
        %1979 = vmatprep.mubr.bf16.mxu0 0
        %1980 = vmatmul.mubr.bf16.gmra.mrb[0].mxu0 %v1573
        %v1981 = vpop.f32.mrb[0].mxu0
        %v1982 = vadd.f32 0.0, %v1981
        %v1983 = vpop.f32.mrb[0].mxu0
        %v1984 = vpop.f32.mrb[0].mxu0
        %v1985 = vadd.f32 0.0, %v1984
        %v1986 = vpop.f32.mrb[0].mxu0
        %1987 = vmatprep.mubr.bf16.mxu0 0
        %1988 = vmatmul.mubr.bf16.gmra.mrb[0].mxu0 %v1576
        %v1989 = vpop.f32.mrb[0].mxu0
        %v1990 = vadd.f32 0.0, %v1989
        %v1991 = vpop.f32.mrb[0].mxu0
        %v1992 = vpop.f32.mrb[0].mxu0
        %v1993 = vadd.f32 0.0, %v1992
        %v1994 = vpop.f32.mrb[0].mxu0
        %1995 = vmatprep.mubr.bf16.mxu0 0
        %1996 = vmatmul.mubr.bf16.gmra.mrb[0].mxu0 %v1579
        %v1997 = vpop.f32.mrb[0].mxu0
        %v1998 = vadd.f32 0.0, %v1997
        %v1999 = vpop.f32.mrb[0].mxu0
        %v2000 = vpop.f32.mrb[0].mxu0
        %v2001 = vadd.f32 0.0, %v2000
        %v2002 = vpop.f32.mrb[0].mxu0
        %2003 = vmatprep.mubr.bf16.mxu0 0
        %2004 = vmatmul.mubr.bf16.gmra.mrb[0].mxu0 %v1582
        %v2005 = vpop.f32.mrb[0].mxu0
        %v2006 = vadd.f32 0.0, %v2005
        %v2007 = vpop.f32.mrb[0].mxu0
        %v2008 = vpop.f32.mrb[0].mxu0
        %v2009 = vadd.f32 0.0, %v2008
        %v2010 = vpop.f32.mrb[0].mxu0
        %2011 = vmatprep.mubr.bf16.mxu0 0
        %2012 = vmatmul.mubr.bf16.gmra.mrb[0].mxu0 %v1585
        %v2013 = vpop.f32.mrb[0].mxu0
        %v2014 = vadd.f32 0.0, %v2013
        %v2015 = vpop.f32.mrb[0].mxu0
        %v2016 = vpop.f32.mrb[0].mxu0
        %v2017 = vadd.f32 0.0, %v2016
        %v2018 = vpop.f32.mrb[0].mxu0
        %2019 = vmatprep.mubr.bf16.mxu0 0
        %2020 = vmatmul.mubr.bf16.gmra.mrb[0].mxu0 %v1588
        %v2021 = vpop.f32.mrb[0].mxu0
        %v2022 = vadd.f32 0.0, %v2021
        %v2023 = vpop.f32.mrb[0].mxu0
        %v2024 = vpop.f32.mrb[0].mxu0
        %v2025 = vadd.f32 0.0, %v2024
        %v2026 = vpop.f32.mrb[0].mxu0
        %2027 = vmatprep.mubr.bf16.mxu0 0
        %2028 = vmatmul.mubr.bf16.gmra.mrb[0].mxu0 %v1937
        %v2029 = vpop.f32.mrb[0].mxu0
        %v2030 = vadd.f32 0.0, %v2029
        %v2031 = vpop.f32.mrb[0].mxu0
        %v2032 = vpop.f32.mrb[0].mxu0
        %v2033 = vadd.f32 0.0, %v2032
        %v2034 = vpop.f32.mrb[0].mxu0
        %2035 = vdwg.mxu0
        %v2040 = vunpack.c.l.b16 %v1916
        %v2041 = vunpack.c.l.b16 %v1917
        %v2042 = vunpack.c.l.b16 %v1918
        %v2043 = vunpack.c.l.b16 %v1919
        %v2044 = vpack.c.b16 %v2041, %v2040
        %v2045 = vpack.c.b16 %v2043, %v2042
        %v2049 = vsel %vm663, %v1252, 0
        %2051 = vmatprep.subr.bf16.mxu0 0
        %2052 = vmatpush1.bf16.msra.mxu0 %v2044
        %2053 = vmatprep.subr.bf16.mxu0 0
        %2054 = vmatpush1.bf16.msra.mxu0 %v2045
        %2055 = vmatprep.subr.bf16.mxu0 0
        %2056 = vmatpush1.bf16.msra.mxu0 0
        %2057 = vmatprep.subr.bf16.mxu0 0
        %2058 = vmatpush1.bf16.msra.mxu0 0
        %2059 = vmatprep.subr.bf16.mxu0 0
        %2060 = vmatpush1.bf16.msra.mxu0 0
        %2061 = vmatprep.subr.bf16.mxu0 0
        %2062 = vmatpush1.bf16.msra.mxu0 0
        %2063 = vmatprep.subr.bf16.mxu0 0
        %2064 = vmatpush1.bf16.msra.mxu0 0
        %2065 = vmatprep.subr.bf16.mxu0 0
        %2066 = vmatpush1.bf16.msra.mxu0 0
        %2067 = vmatprep.subr.bf16.mxu0 0
        %2068 = vmatpush1.bf16.msra.mxu0 0
        %2069 = vmatprep.subr.bf16.mxu0 0
        %2070 = vmatpush1.bf16.msra.mxu0 0
        %2071 = vmatprep.subr.bf16.mxu0 0
        %2072 = vmatpush1.bf16.msra.mxu0 0
        %2073 = vmatprep.subr.bf16.mxu0 0
        %2074 = vmatpush1.bf16.msra.mxu0 0
        %2075 = vmatprep.subr.bf16.mxu0 0
        %2076 = vmatpush1.bf16.msra.mxu0 0
        %2077 = vmatprep.subr.bf16.mxu0 0
        %2078 = vmatpush1.bf16.msra.mxu0 0
        %2079 = vmatprep.subr.bf16.mxu0 0
        %2080 = vmatpush1.bf16.msra.mxu0 0
        %2081 = vmatprep.subr.bf16.mxu0 0
        %2082 = vmatpush1.bf16.msra.mxu0 0
        %2083 = vmatprep.mubr.bf16.mxu0 0
        %2084 = vmatmul.mubr.bf16.gmra.mrb[0].mxu0 %v1294
        %v2085 = vpop.f32.mrb[0].mxu0
        %v2086 = vadd.f32 0.0, %v2085
        %v2087 = vpop.f32.mrb[0].mxu0
        %v2088 = vpop.f32.mrb[0].mxu0
        %v2089 = vadd.f32 0.0, %v2088
        %v2090 = vpop.f32.mrb[0].mxu0
        %2091 = vmatprep.mubr.bf16.mxu0 0
        %2092 = vmatmul.mubr.bf16.gmra.mrb[0].mxu0 %v1297
        %v2093 = vpop.f32.mrb[0].mxu0
        %v2094 = vadd.f32 0.0, %v2093
        %v2095 = vpop.f32.mrb[0].mxu0
        %v2096 = vpop.f32.mrb[0].mxu0
        %v2097 = vadd.f32 0.0, %v2096
        %v2098 = vpop.f32.mrb[0].mxu0
        %2099 = vmatprep.mubr.bf16.mxu0 0
        %2100 = vmatmul.mubr.bf16.gmra.mrb[0].mxu0 %v1300
        %v2101 = vpop.f32.mrb[0].mxu0
        %v2102 = vadd.f32 0.0, %v2101
        %v2103 = vpop.f32.mrb[0].mxu0
        %v2104 = vpop.f32.mrb[0].mxu0
        %v2105 = vadd.f32 0.0, %v2104
        %v2106 = vpop.f32.mrb[0].mxu0
        %2107 = vmatprep.mubr.bf16.mxu0 0
        %2108 = vmatmul.mubr.bf16.gmra.mrb[0].mxu0 %v1303
        %v2109 = vpop.f32.mrb[0].mxu0
        %v2110 = vadd.f32 0.0, %v2109
        %v2111 = vpop.f32.mrb[0].mxu0
        %v2112 = vpop.f32.mrb[0].mxu0
        %v2113 = vadd.f32 0.0, %v2112
        %v2114 = vpop.f32.mrb[0].mxu0
        %2115 = vmatprep.mubr.bf16.mxu0 0
        %2116 = vmatmul.mubr.bf16.gmra.mrb[0].mxu0 %v1306
        %v2117 = vpop.f32.mrb[0].mxu0
        %v2118 = vadd.f32 0.0, %v2117
        %v2119 = vpop.f32.mrb[0].mxu0
        %v2120 = vpop.f32.mrb[0].mxu0
        %v2121 = vadd.f32 0.0, %v2120
        %v2122 = vpop.f32.mrb[0].mxu0
        %2123 = vmatprep.mubr.bf16.mxu0 0
        %2124 = vmatmul.mubr.bf16.gmra.mrb[0].mxu0 %v1309
        %v2125 = vpop.f32.mrb[0].mxu0
        %v2126 = vadd.f32 0.0, %v2125
        %v2127 = vpop.f32.mrb[0].mxu0
        %v2128 = vpop.f32.mrb[0].mxu0
        %v2129 = vadd.f32 0.0, %v2128
        %v2130 = vpop.f32.mrb[0].mxu0
        %2131 = vmatprep.mubr.bf16.mxu0 0
        %2132 = vmatmul.mubr.bf16.gmra.mrb[0].mxu0 %v1700
        %v2133 = vpop.f32.mrb[0].mxu0
        %v2134 = vadd.f32 0.0, %v2133
        %v2135 = vpop.f32.mrb[0].mxu0
        %v2136 = vpop.f32.mrb[0].mxu0
        %v2137 = vadd.f32 0.0, %v2136
        %v2138 = vpop.f32.mrb[0].mxu0
        %2139 = vmatprep.mubr.bf16.mxu0 0
        %2140 = vmatmul.mubr.bf16.gmra.mrb[0].mxu0 %v2049
        %v2141 = vpop.f32.mrb[0].mxu0
        %v2142 = vadd.f32 0.0, %v2141
        %v2143 = vpop.f32.mrb[0].mxu0
        %v2144 = vpop.f32.mrb[0].mxu0
        %v2145 = vadd.f32 0.0, %v2144
        %v2146 = vpop.f32.mrb[0].mxu0
        %2147 = vdwg.mxu0
        %v2152 = vunpack.c.l.b16 %v1920
        %v2153 = vunpack.c.l.b16 %v1921
        %v2154 = vunpack.c.l.b16 %v1922
        %v2155 = vunpack.c.l.b16 %v1923
        %v2156 = vpack.c.b16 %v2153, %v2152
        %v2157 = vpack.c.b16 %v2155, %v2154
        %v2161 = vsel %vm663, %v1262, 0
        %2163 = vmatprep.subr.bf16.mxu0 0
        %2164 = vmatpush1.bf16.msra.mxu0 %v2156
        %2165 = vmatprep.subr.bf16.mxu0 0
        %2166 = vmatpush1.bf16.msra.mxu0 %v2157
        %2167 = vmatprep.subr.bf16.mxu0 0
        %2168 = vmatpush1.bf16.msra.mxu0 0
        %2169 = vmatprep.subr.bf16.mxu0 0
        %2170 = vmatpush1.bf16.msra.mxu0 0
        %2171 = vmatprep.subr.bf16.mxu0 0
        %2172 = vmatpush1.bf16.msra.mxu0 0
        %2173 = vmatprep.subr.bf16.mxu0 0
        %2174 = vmatpush1.bf16.msra.mxu0 0
        %2175 = vmatprep.subr.bf16.mxu0 0
        %2176 = vmatpush1.bf16.msra.mxu0 0
        %2177 = vmatprep.subr.bf16.mxu0 0
        %2178 = vmatpush1.bf16.msra.mxu0 0
        %2179 = vmatprep.subr.bf16.mxu0 0
        %2180 = vmatpush1.bf16.msra.mxu0 0
        %2181 = vmatprep.subr.bf16.mxu0 0
        %2182 = vmatpush1.bf16.msra.mxu0 0
        %2183 = vmatprep.subr.bf16.mxu0 0
        %2184 = vmatpush1.bf16.msra.mxu0 0
        %2185 = vmatprep.subr.bf16.mxu0 0
        %2186 = vmatpush1.bf16.msra.mxu0 0
        %2187 = vmatprep.subr.bf16.mxu0 0
        %2188 = vmatpush1.bf16.msra.mxu0 0
        %2189 = vmatprep.subr.bf16.mxu0 0
        %2190 = vmatpush1.bf16.msra.mxu0 0
        %2191 = vmatprep.subr.bf16.mxu0 0
        %2192 = vmatpush1.bf16.msra.mxu0 0
        %2193 = vmatprep.subr.bf16.mxu0 0
        %2194 = vmatpush1.bf16.msra.mxu0 0
        %2195 = vmatprep.mubr.bf16.mxu0 0
        %2196 = vmatmul.mubr.bf16.gmra.mrb[0].mxu0 %v1427
        %v2197 = vpop.f32.mrb[0].mxu0
        %v2198 = vadd.f32 0.0, %v2197
        %v2199 = vpop.f32.mrb[0].mxu0
        %v2200 = vpop.f32.mrb[0].mxu0
        %v2201 = vadd.f32 0.0, %v2200
        %v2202 = vpop.f32.mrb[0].mxu0
        %2203 = vmatprep.mubr.bf16.mxu0 0
        %2204 = vmatmul.mubr.bf16.gmra.mrb[0].mxu0 %v1430
        %v2205 = vpop.f32.mrb[0].mxu0
        %v2206 = vadd.f32 0.0, %v2205
        %v2207 = vpop.f32.mrb[0].mxu0
        %v2208 = vpop.f32.mrb[0].mxu0
        %v2209 = vadd.f32 0.0, %v2208
        %v2210 = vpop.f32.mrb[0].mxu0
        %2211 = vmatprep.mubr.bf16.mxu0 0
        %2212 = vmatmul.mubr.bf16.gmra.mrb[0].mxu0 %v1433
        %v2213 = vpop.f32.mrb[0].mxu0
        %v2214 = vadd.f32 0.0, %v2213
        %v2215 = vpop.f32.mrb[0].mxu0
        %v2216 = vpop.f32.mrb[0].mxu0
        %v2217 = vadd.f32 0.0, %v2216
        %v2218 = vpop.f32.mrb[0].mxu0
        %2219 = vmatprep.mubr.bf16.mxu0 0
        %2220 = vmatmul.mubr.bf16.gmra.mrb[0].mxu0 %v1436
        %v2221 = vpop.f32.mrb[0].mxu0
        %v2222 = vadd.f32 0.0, %v2221
        %v2223 = vpop.f32.mrb[0].mxu0
        %v2224 = vpop.f32.mrb[0].mxu0
        %v2225 = vadd.f32 0.0, %v2224
        %v2226 = vpop.f32.mrb[0].mxu0
        %2227 = vmatprep.mubr.bf16.mxu0 0
        %2228 = vmatmul.mubr.bf16.gmra.mrb[0].mxu0 %v1439
        %v2229 = vpop.f32.mrb[0].mxu0
        %v2230 = vadd.f32 0.0, %v2229
        %v2231 = vpop.f32.mrb[0].mxu0
        %v2232 = vpop.f32.mrb[0].mxu0
        %v2233 = vadd.f32 0.0, %v2232
        %v2234 = vpop.f32.mrb[0].mxu0
        %2235 = vmatprep.mubr.bf16.mxu0 0
        %2236 = vmatmul.mubr.bf16.gmra.mrb[0].mxu0 %v1442
        %v2237 = vpop.f32.mrb[0].mxu0
        %v2238 = vadd.f32 0.0, %v2237
        %v2239 = vpop.f32.mrb[0].mxu0
        %v2240 = vpop.f32.mrb[0].mxu0
        %v2241 = vadd.f32 0.0, %v2240
        %v2242 = vpop.f32.mrb[0].mxu0
        %2243 = vmatprep.mubr.bf16.mxu0 0
        %2244 = vmatmul.mubr.bf16.gmra.mrb[0].mxu0 %v1812
        %v2245 = vpop.f32.mrb[0].mxu0
        %v2246 = vadd.f32 0.0, %v2245
        %v2247 = vpop.f32.mrb[0].mxu0
        %v2248 = vpop.f32.mrb[0].mxu0
        %v2249 = vadd.f32 0.0, %v2248
        %v2250 = vpop.f32.mrb[0].mxu0
        %2251 = vmatprep.mubr.bf16.mxu0 0
        %2252 = vmatmul.mubr.bf16.gmra.mrb[0].mxu0 %v2161
        %v2253 = vpop.f32.mrb[0].mxu0
        %v2254 = vadd.f32 0.0, %v2253
        %v2255 = vpop.f32.mrb[0].mxu0
        %v2256 = vpop.f32.mrb[0].mxu0
        %v2257 = vadd.f32 0.0, %v2256
        %v2258 = vpop.f32.mrb[0].mxu0
        %2259 = vdwg.mxu0
        %v2264 = vunpack.c.l.b16 %v1263
        %v2265 = vunpack.c.l.b16 %v1264
        %v2266 = vunpack.c.l.b16 %v1265
        %v2267 = vunpack.c.l.b16 %v1266
        %v2268 = vpack.c.b16 %v2265, %v2264
        %v2269 = vpack.c.b16 %v2267, %v2266
        %v2273 = vsel %vm663, %v1233, 0
        %2275 = vmatprep.subr.bf16.mxu0 0
        %2276 = vmatpush1.bf16.msra.mxu0 %v2268
        %2277 = vmatprep.subr.bf16.mxu0 0
        %2278 = vmatpush1.bf16.msra.mxu0 %v2269
        %2279 = vmatprep.subr.bf16.mxu0 0
        %2280 = vmatpush1.bf16.msra.mxu0 0
        %2281 = vmatprep.subr.bf16.mxu0 0
        %2282 = vmatpush1.bf16.msra.mxu0 0
        %2283 = vmatprep.subr.bf16.mxu0 0
        %2284 = vmatpush1.bf16.msra.mxu0 0
        %2285 = vmatprep.subr.bf16.mxu0 0
        %2286 = vmatpush1.bf16.msra.mxu0 0
        %2287 = vmatprep.subr.bf16.mxu0 0
        %2288 = vmatpush1.bf16.msra.mxu0 0
        %2289 = vmatprep.subr.bf16.mxu0 0
        %2290 = vmatpush1.bf16.msra.mxu0 0
        %2291 = vmatprep.subr.bf16.mxu0 0
        %2292 = vmatpush1.bf16.msra.mxu0 0
        %2293 = vmatprep.subr.bf16.mxu0 0
        %2294 = vmatpush1.bf16.msra.mxu0 0
        %2295 = vmatprep.subr.bf16.mxu0 0
        %2296 = vmatpush1.bf16.msra.mxu0 0
        %2297 = vmatprep.subr.bf16.mxu0 0
        %2298 = vmatpush1.bf16.msra.mxu0 0
        %2299 = vmatprep.subr.bf16.mxu0 0
        %2300 = vmatpush1.bf16.msra.mxu0 0
        %2301 = vmatprep.subr.bf16.mxu0 0
        %2302 = vmatpush1.bf16.msra.mxu0 0
        %2303 = vmatprep.subr.bf16.mxu0 0
        %2304 = vmatpush1.bf16.msra.mxu0 0
        %2305 = vmatprep.subr.bf16.mxu0 0
        %2306 = vmatpush1.bf16.msra.mxu0 0
        %2307 = vmatprep.mubr.bf16.mxu0 0
        %2308 = vmatmul.mubr.bf16.gmra.mrb[0].mxu0 %v2273
        %v2309 = vpop.f32.mrb[0].mxu0
        %v2310 = vadd.f32 %v1346, %v2309
        %v2311 = vpop.f32.mrb[0].mxu0
        %v2312 = vpop.f32.mrb[0].mxu0
        %v2313 = vadd.f32 %v1349, %v2312
        %v2314 = vpop.f32.mrb[0].mxu0
        %2315 = vmatprep.mubr.bf16.mxu0 0
        %2316 = vmatmul.mubr.bf16.gmra.mrb[0].mxu0 %v1567
        %v2317 = vpop.f32.mrb[0].mxu0
        %v2318 = vadd.f32 %v1354, %v2317
        %v2319 = vpop.f32.mrb[0].mxu0
        %v2320 = vpop.f32.mrb[0].mxu0
        %v2321 = vadd.f32 %v1357, %v2320
        %v2322 = vpop.f32.mrb[0].mxu0
        %2323 = vmatprep.mubr.bf16.mxu0 0
        %2324 = vmatmul.mubr.bf16.gmra.mrb[0].mxu0 %v1570
        %v2325 = vpop.f32.mrb[0].mxu0
        %v2326 = vadd.f32 %v1362, %v2325
        %v2327 = vpop.f32.mrb[0].mxu0
        %v2328 = vpop.f32.mrb[0].mxu0
        %v2329 = vadd.f32 %v1365, %v2328
        %v2330 = vpop.f32.mrb[0].mxu0
        %2331 = vmatprep.mubr.bf16.mxu0 0
        %2332 = vmatmul.mubr.bf16.gmra.mrb[0].mxu0 %v1573
        %v2333 = vpop.f32.mrb[0].mxu0
        %v2334 = vadd.f32 %v1370, %v2333
        %v2335 = vpop.f32.mrb[0].mxu0
        %v2336 = vpop.f32.mrb[0].mxu0
        %v2337 = vadd.f32 %v1373, %v2336
        %v2338 = vpop.f32.mrb[0].mxu0
        %2339 = vmatprep.mubr.bf16.mxu0 0
        %2340 = vmatmul.mubr.bf16.gmra.mrb[0].mxu0 %v1576
        %v2341 = vpop.f32.mrb[0].mxu0
        %v2342 = vadd.f32 %v1378, %v2341
        %v2343 = vpop.f32.mrb[0].mxu0
        %v2344 = vpop.f32.mrb[0].mxu0
        %v2345 = vadd.f32 %v1381, %v2344
        %v2346 = vpop.f32.mrb[0].mxu0
        %2347 = vmatprep.mubr.bf16.mxu0 0
        %2348 = vmatmul.mubr.bf16.gmra.mrb[0].mxu0 %v1579
        %v2349 = vpop.f32.mrb[0].mxu0
        %v2350 = vadd.f32 %v1386, %v2349
        %v2351 = vpop.f32.mrb[0].mxu0
        %v2352 = vpop.f32.mrb[0].mxu0
        %v2353 = vadd.f32 %v1389, %v2352
        %v2354 = vpop.f32.mrb[0].mxu0
        %2355 = vmatprep.mubr.bf16.mxu0 0
        %2356 = vmatmul.mubr.bf16.gmra.mrb[0].mxu0 %v1582
        %v2357 = vpop.f32.mrb[0].mxu0
        %v2358 = vadd.f32 %v1394, %v2357
        %v2359 = vpop.f32.mrb[0].mxu0
        %v2360 = vpop.f32.mrb[0].mxu0
        %v2361 = vadd.f32 %v1397, %v2360
        %v2362 = vpop.f32.mrb[0].mxu0
        %2363 = vmatprep.mubr.bf16.mxu0 0
        %2364 = vmatmul.mubr.bf16.gmra.mrb[0].mxu0 %v1585
        %v2365 = vpop.f32.mrb[0].mxu0
        %v2366 = vadd.f32 %v1402, %v2365
        %v2367 = vpop.f32.mrb[0].mxu0
        %v2368 = vpop.f32.mrb[0].mxu0
        %v2369 = vadd.f32 %v1405, %v2368
        %v2370 = vpop.f32.mrb[0].mxu0
        %2371 = vdwg.mxu0
        %v2372 = vadd.f32 %v2310, %v1479
        %v2373 = vadd.f32 %v2313, %v1482
        %v2374 = vadd.f32 %v2318, %v1487
        %v2375 = vadd.f32 %v2321, %v1490
        %v2376 = vadd.f32 %v2326, %v1495
        %v2377 = vadd.f32 %v2329, %v1498
        %v2378 = vadd.f32 %v2334, %v1503
        %v2379 = vadd.f32 %v2337, %v1506
        %v2380 = vadd.f32 %v2342, %v1511
        %v2381 = vadd.f32 %v2345, %v1514
        %v2382 = vadd.f32 %v2350, %v1519
        %v2383 = vadd.f32 %v2353, %v1522
        %v2384 = vadd.f32 %v2358, %v1527
        %v2385 = vadd.f32 %v2361, %v1530
        %v2386 = vadd.f32 %v2366, %v1535
        %v2387 = vadd.f32 %v2369, %v1538
        %v2388 = vadd.f32 %v2372, %v1625
        %v2389 = vadd.f32 %v2373, %v1628
        %v2390 = vadd.f32 %v2374, %v1633
        %v2391 = vadd.f32 %v2375, %v1636
        %v2392 = vadd.f32 %v2376, %v1641
        %v2393 = vadd.f32 %v2377, %v1644
        %v2394 = vadd.f32 %v2378, %v1649
        %v2395 = vadd.f32 %v2379, %v1652
        %v2396 = vadd.f32 %v2380, %v1657
        %v2397 = vadd.f32 %v2381, %v1660
        %v2398 = vadd.f32 %v2382, %v1665
        %v2399 = vadd.f32 %v2383, %v1668
        %v2400 = vadd.f32 %v2384, %v1673
        %v2401 = vadd.f32 %v2385, %v1676
        %v2402 = vadd.f32 %v2386, %v1681
        %v2403 = vadd.f32 %v2387, %v1684
        %v2404 = vadd.f32 %v2388, %v1737
        %v2405 = vadd.f32 %v2389, %v1740
        %v2406 = vadd.f32 %v2390, %v1745
        %v2407 = vadd.f32 %v2391, %v1748
        %v2408 = vadd.f32 %v2392, %v1753
        %v2409 = vadd.f32 %v2393, %v1756
        %v2410 = vadd.f32 %v2394, %v1761
        %v2411 = vadd.f32 %v2395, %v1764
        %v2412 = vadd.f32 %v2396, %v1769
        %v2413 = vadd.f32 %v2397, %v1772
        %v2414 = vadd.f32 %v2398, %v1777
        %v2415 = vadd.f32 %v2399, %v1780
        %v2416 = vadd.f32 %v2400, %v1785
        %v2417 = vadd.f32 %v2401, %v1788
        %v2418 = vadd.f32 %v2402, %v1793
        %v2419 = vadd.f32 %v2403, %v1796
        %v2420 = vadd.f32 %v2404, %v1849
        %v2421 = vadd.f32 %v2405, %v1852
        %v2422 = vadd.f32 %v2406, %v1857
        %v2423 = vadd.f32 %v2407, %v1860
        %v2424 = vadd.f32 %v2408, %v1865
        %v2425 = vadd.f32 %v2409, %v1868
        %v2426 = vadd.f32 %v2410, %v1873
        %v2427 = vadd.f32 %v2411, %v1876
        %v2428 = vadd.f32 %v2412, %v1881
        %v2429 = vadd.f32 %v2413, %v1884
        %v2430 = vadd.f32 %v2414, %v1889
        %v2431 = vadd.f32 %v2415, %v1892
        %v2432 = vadd.f32 %v2416, %v1897
        %v2433 = vadd.f32 %v2417, %v1900
        %v2434 = vadd.f32 %v2418, %v1905
        %v2435 = vadd.f32 %v2419, %v1908
        %v2436 = vadd.f32 %v2420, %v1974
        %v2437 = vadd.f32 %v2421, %v1977
        %v2438 = vadd.f32 %v2422, %v1982
        %v2439 = vadd.f32 %v2423, %v1985
        %v2440 = vadd.f32 %v2424, %v1990
        %v2441 = vadd.f32 %v2425, %v1993
        %v2442 = vadd.f32 %v2426, %v1998
        %v2443 = vadd.f32 %v2427, %v2001
        %v2444 = vadd.f32 %v2428, %v2006
        %v2445 = vadd.f32 %v2429, %v2009
        %v2446 = vadd.f32 %v2430, %v2014
        %v2447 = vadd.f32 %v2431, %v2017
        %v2448 = vadd.f32 %v2432, %v2022
        %v2449 = vadd.f32 %v2433, %v2025
        %v2450 = vadd.f32 %v2434, %v2030
        %v2451 = vadd.f32 %v2435, %v2033
        %v2452 = vadd.f32 %v2436, %v2086
        %v2453 = vadd.f32 %v2437, %v2089
        %v2454 = vadd.f32 %v2438, %v2094
        %v2455 = vadd.f32 %v2439, %v2097
        %v2456 = vadd.f32 %v2440, %v2102
        %v2457 = vadd.f32 %v2441, %v2105
        %v2458 = vadd.f32 %v2442, %v2110
        %v2459 = vadd.f32 %v2443, %v2113
        %v2460 = vadd.f32 %v2444, %v2118
        %v2461 = vadd.f32 %v2445, %v2121
        %v2462 = vadd.f32 %v2446, %v2126
        %v2463 = vadd.f32 %v2447, %v2129
        %v2464 = vadd.f32 %v2448, %v2134
        %v2465 = vadd.f32 %v2449, %v2137
        %v2466 = vadd.f32 %v2450, %v2142
        %v2467 = vadd.f32 %v2451, %v2145
        %v2468 = vadd.f32 %v2452, %v2198
        %v2469 = vadd.f32 %v2453, %v2201
        %v2470 = vadd.f32 %v2454, %v2206
        %v2471 = vadd.f32 %v2455, %v2209
        %v2472 = vadd.f32 %v2456, %v2214
        %v2473 = vadd.f32 %v2457, %v2217
        %v2474 = vadd.f32 %v2458, %v2222
        %v2475 = vadd.f32 %v2459, %v2225
        %v2476 = vadd.f32 %v2460, %v2230
        %v2477 = vadd.f32 %v2461, %v2233
        %v2478 = vadd.f32 %v2462, %v2238
        %v2479 = vadd.f32 %v2463, %v2241
        %v2480 = vadd.f32 %v2464, %v2246
        %v2481 = vadd.f32 %v2465, %v2249
        %v2482 = vadd.f32 %v2466, %v2254
        %v2483 = vadd.f32 %v2467, %v2257
        %v2484 = vld [vmem:[%s5] sm:$0x1]
        %v2486 = vlaneseq
        %v2487 = vshrl.u32 %v2486, 7
        %v2488 = vsub.s32 0, %v2487
        %v2489 = vrot.slane %v2484, %v2488
        %v2491 = vadd.f32 %v2468, %v2489
        %v2492 = vadd.f32 %v2469, %v2489
        %v2493 = vadd.f32 %v2470, %v2489
        %v2494 = vadd.f32 %v2471, %v2489
        %v2495 = vadd.f32 %v2472, %v2489
        %v2496 = vadd.f32 %v2473, %v2489
        %v2497 = vadd.f32 %v2474, %v2489
        %v2498 = vadd.f32 %v2475, %v2489
        %v2499 = vadd.f32 %v2476, %v2489
        %v2500 = vadd.f32 %v2477, %v2489
        %v2501 = vadd.f32 %v2478, %v2489
        %v2502 = vadd.f32 %v2479, %v2489
        %v2503 = vadd.f32 %v2480, %v2489
        %v2504 = vadd.f32 %v2481, %v2489
        %v2505 = vadd.f32 %v2482, %v2489
        %v2506 = vadd.f32 %v2483, %v2489
        %v2507 = vmax.f32 %v2491, 0.0
        %v2508 = vmax.f32 %v2492, 0.0
        %v2509 = vmax.f32 %v2493, 0.0
        %v2510 = vmax.f32 %v2494, 0.0
        %v2511 = vmax.f32 %v2495, 0.0
        %v2512 = vmax.f32 %v2496, 0.0
        %v2513 = vmax.f32 %v2497, 0.0
        %v2514 = vmax.f32 %v2498, 0.0
        %v2515 = vmax.f32 %v2499, 0.0
        %v2516 = vmax.f32 %v2500, 0.0
        %v2517 = vmax.f32 %v2501, 0.0
        %v2518 = vmax.f32 %v2502, 0.0
        %v2519 = vmax.f32 %v2503, 0.0
        %v2520 = vmax.f32 %v2504, 0.0
        %v2521 = vmax.f32 %v2505, 0.0
        %v2522 = vmax.f32 %v2506, 0.0
        %v2523 = vpack.c.bf16 %v2508, %v2507
        %v2524 = vpack.c.bf16 %v2510, %v2509
        %v2525 = vpack.c.bf16 %v2512, %v2511
        %v2526 = vpack.c.bf16 %v2514, %v2513
        %v2527 = vpack.c.bf16 %v2516, %v2515
        %v2528 = vpack.c.bf16 %v2518, %v2517
        %v2529 = vpack.c.bf16 %v2520, %v2519
        %v2530 = vpack.c.bf16 %v2522, %v2521
        %v2531 = vld [vmem:[%s6] sm:$0xf]
        %v2532 = vld [vmem:[%s6 + $0x4] sm:$0xf]
        %v2533 = vld [vmem:[%s6 + $0x8] sm:$0xf]
        %v2534 = vld [vmem:[%s6 + $0xc] sm:$0xf]
        %v2535 = vld [vmem:[%s7] sm:$0x1]
        %v2537 = vlaneseq
        %v2538 = vshrl.u32 %v2537, 7
        %v2539 = vsub.s32 0, %v2538
        %v2540 = vrot.slane %v2535, %v2539
        %v2546 = vunpack.c.l.b16 %v2531
        %v2547 = vunpack.c.l.b16 %v2532
        %v2548 = vunpack.c.l.b16 %v2533
        %v2549 = vunpack.c.l.b16 %v2534
        %v2550 = vpack.c.b16 %v2547, %v2546
        %v2551 = vpack.c.b16 %v2549, %v2548
        %v2555 = vsel %vm663, %v2523, 0
        %v2558 = vsel %vm663, %v2524, 0
        %v2561 = vsel %vm663, %v2525, 0
        %v2564 = vsel %vm663, %v2526, 0
        %v2567 = vsel %vm663, %v2527, 0
        %v2570 = vsel %vm663, %v2528, 0
        %v2573 = vsel %vm663, %v2529, 0
        %v2576 = vsel %vm663, %v2530, 0
        %2578 = vmatprep.subr.bf16.mxu0 0
        %2579 = vmatpush1.bf16.msra.mxu0 %v2550
        %2580 = vmatprep.subr.bf16.mxu0 0
        %2581 = vmatpush1.bf16.msra.mxu0 %v2551
        %2582 = vmatprep.subr.bf16.mxu0 0
        %2583 = vmatpush1.bf16.msra.mxu0 0
        %2584 = vmatprep.subr.bf16.mxu0 0
        %2585 = vmatpush1.bf16.msra.mxu0 0
        %2586 = vmatprep.subr.bf16.mxu0 0
        %2587 = vmatpush1.bf16.msra.mxu0 0
        %2588 = vmatprep.subr.bf16.mxu0 0
        %2589 = vmatpush1.bf16.msra.mxu0 0
        %2590 = vmatprep.subr.bf16.mxu0 0
        %2591 = vmatpush1.bf16.msra.mxu0 0
        %2592 = vmatprep.subr.bf16.mxu0 0
        %2593 = vmatpush1.bf16.msra.mxu0 0
        %2594 = vmatprep.subr.bf16.mxu0 0
        %2595 = vmatpush1.bf16.msra.mxu0 0
        %2596 = vmatprep.subr.bf16.mxu0 0
        %2597 = vmatpush1.bf16.msra.mxu0 0
        %2598 = vmatprep.subr.bf16.mxu0 0
        %2599 = vmatpush1.bf16.msra.mxu0 0
        %2600 = vmatprep.subr.bf16.mxu0 0
        %2601 = vmatpush1.bf16.msra.mxu0 0
        %2602 = vmatprep.subr.bf16.mxu0 0
        %2603 = vmatpush1.bf16.msra.mxu0 0
        %2604 = vmatprep.subr.bf16.mxu0 0
        %2605 = vmatpush1.bf16.msra.mxu0 0
        %2606 = vmatprep.subr.bf16.mxu0 0
        %2607 = vmatpush1.bf16.msra.mxu0 0
        %2608 = vmatprep.subr.bf16.mxu0 0
        %2609 = vmatpush1.bf16.msra.mxu0 0
        %2610 = vmatprep.mubr.bf16.mxu0 0
        %2611 = vmatmul.mubr.bf16.gmra.mrb[0].mxu0 %v2555
        %v2612 = vpop.f32.mrb[0].mxu0
        %v2613 = vadd.f32 %v2540, %v2612
        %v2614 = vpop.f32.mrb[0].mxu0
        %v2615 = vpop.f32.mrb[0].mxu0
        %v2616 = vadd.f32 %v2540, %v2615
        %v2617 = vpop.f32.mrb[0].mxu0
        %2618 = vmatprep.mubr.bf16.mxu0 0
        %2619 = vmatmul.mubr.bf16.gmra.mrb[0].mxu0 %v2558
        %v2620 = vpop.f32.mrb[0].mxu0
        %v2621 = vadd.f32 %v2540, %v2620
        %v2622 = vpop.f32.mrb[0].mxu0
        %v2623 = vpop.f32.mrb[0].mxu0
        %v2624 = vadd.f32 %v2540, %v2623
        %v2625 = vpop.f32.mrb[0].mxu0
        %2626 = vmatprep.mubr.bf16.mxu0 0
        %2627 = vmatmul.mubr.bf16.gmra.mrb[0].mxu0 %v2561
        %v2628 = vpop.f32.mrb[0].mxu0
        %v2629 = vadd.f32 %v2540, %v2628
        %v2630 = vpop.f32.mrb[0].mxu0
        %v2631 = vpop.f32.mrb[0].mxu0
        %v2632 = vadd.f32 %v2540, %v2631
        %v2633 = vpop.f32.mrb[0].mxu0
        %2634 = vmatprep.mubr.bf16.mxu0 0
        %2635 = vmatmul.mubr.bf16.gmra.mrb[0].mxu0 %v2564
        %v2636 = vpop.f32.mrb[0].mxu0
        %v2637 = vadd.f32 %v2540, %v2636
        %v2638 = vpop.f32.mrb[0].mxu0
        %v2639 = vpop.f32.mrb[0].mxu0
        %v2640 = vadd.f32 %v2540, %v2639
        %v2641 = vpop.f32.mrb[0].mxu0
        %2642 = vmatprep.mubr.bf16.mxu0 0
        %2643 = vmatmul.mubr.bf16.gmra.mrb[0].mxu0 %v2567
        %v2644 = vpop.f32.mrb[0].mxu0
        %v2645 = vadd.f32 %v2540, %v2644
        %v2646 = vpop.f32.mrb[0].mxu0
        %v2647 = vpop.f32.mrb[0].mxu0
        %v2648 = vadd.f32 %v2540, %v2647
        %v2649 = vpop.f32.mrb[0].mxu0
        %2650 = vmatprep.mubr.bf16.mxu0 0
        %2651 = vmatmul.mubr.bf16.gmra.mrb[0].mxu0 %v2570
        %v2652 = vpop.f32.mrb[0].mxu0
        %v2653 = vadd.f32 %v2540, %v2652
        %v2654 = vpop.f32.mrb[0].mxu0
        %v2655 = vpop.f32.mrb[0].mxu0
        %v2656 = vadd.f32 %v2540, %v2655
        %v2657 = vpop.f32.mrb[0].mxu0
        %2658 = vmatprep.mubr.bf16.mxu0 0
        %2659 = vmatmul.mubr.bf16.gmra.mrb[0].mxu0 %v2573
        %v2660 = vpop.f32.mrb[0].mxu0
        %v2661 = vadd.f32 %v2540, %v2660
        %v2662 = vpop.f32.mrb[0].mxu0
        %v2663 = vpop.f32.mrb[0].mxu0
        %v2664 = vadd.f32 %v2540, %v2663
        %v2665 = vpop.f32.mrb[0].mxu0
        %2666 = vmatprep.mubr.bf16.mxu0 0
        %2667 = vmatmul.mubr.bf16.gmra.mrb[0].mxu0 %v2576
        %v2668 = vpop.f32.mrb[0].mxu0
        %v2669 = vadd.f32 %v2540, %v2668
        %v2670 = vpop.f32.mrb[0].mxu0
        %v2671 = vpop.f32.mrb[0].mxu0
        %v2672 = vadd.f32 %v2540, %v2671
        %v2673 = vpop.f32.mrb[0].mxu0
        %2674 = vdwg.mxu0
        %v2675 = vunpack.c.l.bf16 %v415
        %v2676 = vunpack.c.l.bf16 %v416
        %v2677 = vunpack.c.l.bf16 %v417
        %v2678 = vunpack.c.l.bf16 %v418
        %v2679 = vunpack.c.l.bf16 %v419
        %v2680 = vunpack.c.l.bf16 %v420
        %v2681 = vunpack.c.l.bf16 %v421
        %v2682 = vunpack.c.l.bf16 %v422
        %v2683 = vunpack.c.l.bf16 %v423
        %v2684 = vunpack.c.l.bf16 %v424
        %v2685 = vunpack.c.l.bf16 %v425
        %v2686 = vunpack.c.l.bf16 %v426
        %v2687 = vunpack.c.l.bf16 %v427
        %v2688 = vunpack.c.l.bf16 %v428
        %v2689 = vunpack.c.l.bf16 %v429
        %v2690 = vunpack.c.l.bf16 %v430
        %v2691 = vadd.f32 %v2613, %v2675
        %v2692 = vadd.f32 %v2616, %v2676
        %v2693 = vadd.f32 %v2621, %v2677
        %v2694 = vadd.f32 %v2624, %v2678
        %v2695 = vadd.f32 %v2629, %v2679
        %v2696 = vadd.f32 %v2632, %v2680
        %v2697 = vadd.f32 %v2637, %v2681
        %v2698 = vadd.f32 %v2640, %v2682
        %v2699 = vadd.f32 %v2645, %v2683
        %v2700 = vadd.f32 %v2648, %v2684
        %v2701 = vadd.f32 %v2653, %v2685
        %v2702 = vadd.f32 %v2656, %v2686
        %v2703 = vadd.f32 %v2661, %v2687
        %v2704 = vadd.f32 %v2664, %v2688
        %v2705 = vadd.f32 %v2669, %v2689
        %v2706 = vadd.f32 %v2672, %v2690
        %v2707 = vmax.f32 %v2691, 0.0
        %v2708 = vmax.f32 %v2692, 0.0
        %v2709 = vmax.f32 %v2693, 0.0
        %v2710 = vmax.f32 %v2694, 0.0
        %v2711 = vmax.f32 %v2695, 0.0
        %v2712 = vmax.f32 %v2696, 0.0
        %v2713 = vmax.f32 %v2697, 0.0
        %v2714 = vmax.f32 %v2698, 0.0
        %v2715 = vmax.f32 %v2699, 0.0
        %v2716 = vmax.f32 %v2700, 0.0
        %v2717 = vmax.f32 %v2701, 0.0
        %v2718 = vmax.f32 %v2702, 0.0
        %v2719 = vmax.f32 %v2703, 0.0
        %v2720 = vmax.f32 %v2704, 0.0
        %v2721 = vmax.f32 %v2705, 0.0
        %v2722 = vmax.f32 %v2706, 0.0
        %v2723 = vpack.c.bf16 %v2708, %v2707
        %v2724 = vpack.c.bf16 %v2710, %v2709
        %v2725 = vpack.c.bf16 %v2712, %v2711
        %v2726 = vpack.c.bf16 %v2714, %v2713
        %v2727 = vpack.c.bf16 %v2716, %v2715
        %v2728 = vpack.c.bf16 %v2718, %v2717
        %v2729 = vpack.c.bf16 %v2720, %v2719
        %v2730 = vpack.c.bf16 %v2722, %v2721
        %v2739 = vunpack.c.l.b16 %v2723
        %v2740 = vunpack.c.h.b16 %v2723
        %v2741 = vunpack.c.l.b16 %v2724
        %v2742 = vunpack.c.h.b16 %v2724
        %v2743 = vunpack.c.l.b16 %v2725
        %v2744 = vunpack.c.h.b16 %v2725
        %v2745 = vunpack.c.l.b16 %v2726
        %v2746 = vunpack.c.h.b16 %v2726
        %v2747 = vunpack.c.l.b16 %v2727
        %v2748 = vunpack.c.h.b16 %v2727
        %v2749 = vunpack.c.l.b16 %v2728
        %v2750 = vunpack.c.h.b16 %v2728
        %v2751 = vunpack.c.l.b16 %v2729
        %v2752 = vunpack.c.h.b16 %v2729
        %v2753 = vunpack.c.l.b16 %v2730
        %v2754 = vunpack.c.h.b16 %v2730
        %v2755 = vpack.c.b16 %v2739, %v2739
        %v2756 = vpack.c.b16 %v2740, %v2740
        %v2757 = vpack.c.b16 %v2741, %v2741
        %v2758 = vpack.c.b16 %v2742, %v2742
        %v2759 = vpack.c.b16 %v2743, %v2743
        %v2760 = vpack.c.b16 %v2744, %v2744
        %v2761 = vpack.c.b16 %v2745, %v2745
        %v2762 = vpack.c.b16 %v2746, %v2746
        %v2763 = vpack.c.b16 %v2747, %v2747
        %v2764 = vpack.c.b16 %v2748, %v2748
        %v2765 = vpack.c.b16 %v2749, %v2749
        %v2766 = vpack.c.b16 %v2750, %v2750
        %v2767 = vpack.c.b16 %v2751, %v2751
        %v2768 = vpack.c.b16 %v2752, %v2752
        %v2769 = vpack.c.b16 %v2753, %v2753
        %v2770 = vpack.c.b16 %v2754, %v2754
        %2787 = vst [vmem:[%s299] sm:$0xf] %v2755
        %2788 = vst [vmem:[%s299 + $0x4] sm:$0xf] %v2756
        %2789 = vst [vmem:[%s299 + $0x8] sm:$0xf] %v2757
        %2790 = vst [vmem:[%s299 + $0xc] sm:$0xf] %v2758
        %2791 = vst [vmem:[%s299 + $0x10] sm:$0xf] %v2759
        %2792 = vst [vmem:[%s299 + $0x14] sm:$0xf] %v2760
        %2793 = vst [vmem:[%s299 + $0x18] sm:$0xf] %v2761
        %2794 = vst [vmem:[%s299 + $0x1c] sm:$0xf] %v2762
        %2795 = vst [vmem:[%s299 + $0x20] sm:$0xf] %v2763
        %2796 = vst [vmem:[%s299 + $0x24] sm:$0xf] %v2764
        %2797 = vst [vmem:[%s299 + $0x28] sm:$0xf] %v2765
        %2798 = vst [vmem:[%s299 + $0x2c] sm:$0xf] %v2766
        %2799 = vst [vmem:[%s299 + $0x30] sm:$0xf] %v2767
        %2800 = vst [vmem:[%s299 + $0x34] sm:$0xf] %v2768
        %2801 = vst [vmem:[%s299 + $0x38] sm:$0xf] %v2769
        %2802 = vst [vmem:[%s299 + $0x3c] sm:$0xf] %v2770
        %s2803 = sand.u32 %s198, 1
        %s2804 = scalar_lea.sflag [#allocation6], %s2803
        %s2805 = sand.u32 %s198, 1
        %s2806 = smul.addr %s2805, 64
        %s2807 = scalar_lea.vmem [#allocation5], %s2806
        // Predicated region
        $region117: #{bottleneck_forward.1} parent=47 // pred_check
          %p2808 = pneg %p208
        $region118: #{bottleneck_forward.1} parent=47 // pred_check_branch
          %2810 = sbr.rel (%p2808) target = $region120
        $region119: #{bottleneck_forward.1} parent=47 // pred_region
          %s2811 = smul.u32 8, %s27
          %s2813 = ssub.s32 1024, 1024
          %2814 = vsyncadd %s2804, %s2813
          %s2815 = smul.addr %s2811, 2
          %s2816 = smul.addr %s26, 32
          %s2817 = sadd.s32 %s2815, %s2816
          %s2818 = smul.addr %s2817, 64
          %s2819 = scalar_lea.hbm %s8, %s2818
          %s2820 = sshll.u32 %s2807, 4
          %s2821 = int_to_ptr.vmem [resolvable:$true] %s2820
          %2826 = dma.vmem_to_hbm [thread:$0]  %s2821, 1024, %s2819, %s2804, 64, 64, 4
        $region120: #{bottleneck_forward.1} parent=47 // pred_fallthru
          _
      $region48: #{bottleneck_forward.1} parent=5 // pred_fallthru
        _
      %p2827 = scmp.le.s32.totalorder 2, %s17
      // Predicated region
      $region121: #{bottleneck_forward.1} parent=5 // pred_check
        %p2828 = pneg %p2827
      $region122: #{bottleneck_forward.1} parent=5 // pred_check_branch
        %2830 = sbr.rel (%p2828) target = $region124
      $region123: #{bottleneck_forward.1} parent=5 // pred_region
        %s2831 = ssub.s32 %s17, 2
        // Predicated region
        $region125: #{bottleneck_forward.1} parent=123 // pred_check
          %p2832 = pneg %p214
        $region126: #{bottleneck_forward.1} parent=123 // pred_check_branch
          %2834 = sbr.rel (%p2832) target = $region128
        $region127: #{bottleneck_forward.1} parent=123 // pred_region
          %s2835 = sand.u32 %s199, 1
          %s2836 = scalar_lea.sflag [#allocation6], %s2835
          %s2837 = sand.u32 %s199, 1
          %s2838 = smul.addr %s2837, 64
          %s2839 = scalar_lea.vmem [#allocation5], %s2838
          %2840 = dma.done %s2836, 1024
        $region128: #{bottleneck_forward.1} parent=123 // pred_fallthru
          _
      $region124: #{bottleneck_forward.1} parent=5 // pred_fallthru
        _
    $region6: #{bottleneck_forward.1} parent=1 // loop_footer
      %s21 = sadd.s32 1, %s17
    $region7: #{bottleneck_forward.1} parent=1 // loop_footer_branch
      %16 = sbr.rel target = $region3
    $region8: #{bottleneck_forward.1} parent=1 // loop_exit
      _
    %2841 = vsyncpa [#allocation6], 1
    %s2842 = scalar_lea.sflag [#allocation6], 1
    %2843 = vsyncpa %s2842, 1
  %2844 = vsyncmov [#allocation4]
  %s2845 = vpop.sfrf %2844
  %p2846 = scmp.eq.s32.totalorder %s2845, 0
  %p2847 = pneg %p2846
  %2849 = shalt.err (%p2847)
  %s2850 = scalar_lea.sflag [#allocation4], 1
  %2851 = vsyncmov %s2850
  %s2852 = vpop.sfrf %2851
  %p2853 = scmp.eq.s32.totalorder %s2852, 0
  %p2854 = pneg %p2853
  %2856 = shalt.err (%p2854)

</llo_original>
